<compile_context>
chip_gen: v5e
topology: v5e:2x2
jax: 0.10.0
libtpu: 0.0.40
codegen_flags: <defaults>
</compile_context>

<pallas_src>
import jax
import jax.numpy as jnp
from jax.experimental import pallas as pl
from jax.experimental.pallas import tpu as pltpu

_TM = 256                      # M-tile rows (feedback: 256-1024)
_LANE = 128                    # lane width / channel-padding quantum
_VMEM_LIMIT = 48 * 1024 * 1024 # explicit scoped-VMEM budget (fits v7x's 64 MiB)


def _round_up(x, m):
    return (x + m - 1) // m * m


# ---------------------------------------------------------------------------
# Pallas kernels
# ---------------------------------------------------------------------------
def _mm_bn_stats_kernel(a_ref, w_ref, b_ref, y_ref, s_ref, ss_ref, acc_ref):
    # a: (tm, tk) bf16   w: (tk, Cn) bf16   b: (1, Cn) f32
    # y: (tm, Cn) bf16   s, ss: (1, 8, Cn) f32  (per-M-tile partial BN stats)
    # acc: (tm, Cn) f32 scratch, resident across the K grid axis.
    k = pl.program_id(1)

    @pl.when(k == 0)
    def _():
        acc_ref[...] = jnp.zeros_like(acc_ref)

    acc_ref[...] += jnp.dot(a_ref[...], w_ref[...],
                            preferred_element_type=jnp.float32)

    @pl.when(k == pl.num_programs(1) - 1)
    def _():
        cn = acc_ref.shape[1]
        y = acc_ref[...] + b_ref[...]
        y_ref[...] = y.astype(y_ref.dtype)
        sy = jnp.sum(y, axis=0, keepdims=True)          # (1, Cn)
        syy = jnp.sum(y * y, axis=0, keepdims=True)     # (1, Cn)
        s_ref[...] = jnp.broadcast_to(sy[None], (1, 8, cn))
        ss_ref[...] = jnp.broadcast_to(syy[None], (1, 8, cn))


def _affine_relu_kernel(y_ref, s_ref, t_ref, o_ref):
    # y: (tm, Cn) bf16   s, t: (1, Cn) f32   o: (tm, Cn) bf16
    y = y_ref[...].astype(jnp.float32)
    o_ref[...] = jnp.maximum(y * s_ref[...] + t_ref[...], 0.0).astype(o_ref.dtype)


# ---------------------------------------------------------------------------
# Pallas wrappers
# ---------------------------------------------------------------------------
def _matmul_bn_stats(patches, w2d, bias):
    """patches: (M, Kd) bf16; w2d: (Kd, Cn) bf16, Cn % 128 == 0; bias: (Cn,) f32.

    Returns y (M, Cn) bf16 plus per-M-tile partial sums / sums-of-squares (f32)
    of the (pre-cast) accumulator, for fused BatchNorm statistics.
    """
    m, kd = patches.shape
    cn = w2d.shape[1]
    assert cn % _LANE == 0
    kd_p = _round_up(kd, _LANE)
    tk = 256 if kd_p % 256 == 0 else _LANE    # 256-multiples feed v6e/v7x MXU
    m_p = _round_up(m, _TM)
    a = jnp.pad(patches, ((0, m_p - m), (0, kd_p - kd)))
    w = jnp.pad(w2d, ((0, kd_p - kd), (0, 0)))
    nm, nk = m_p // _TM, kd_p // tk

    y, s, ss = pl.pallas_call(
        _mm_bn_stats_kernel,
        out_shape=(jax.ShapeDtypeStruct((m_p, cn), jnp.bfloat16),
                   jax.ShapeDtypeStruct((nm, 8, cn), jnp.float32),
                   jax.ShapeDtypeStruct((nm, 8, cn), jnp.float32)),
        grid=(nm, nk),
        in_specs=[pl.BlockSpec((_TM, tk), lambda i, k: (i, k)),
                  pl.BlockSpec((tk, cn), lambda i, k: (k, 0)),
                  pl.BlockSpec((1, cn), lambda i, k: (0, 0))],
        out_specs=(pl.BlockSpec((_TM, cn), lambda i, k: (i, 0)),
                   pl.BlockSpec((1, 8, cn), lambda i, k: (i, 0, 0)),
                   pl.BlockSpec((1, 8, cn), lambda i, k: (i, 0, 0))),
        scratch_shapes=[pltpu.VMEM((_TM, cn), jnp.float32)],
        compiler_params=pltpu.CompilerParams(
            dimension_semantics=("parallel", "arbitrary"),
            vmem_limit_bytes=_VMEM_LIMIT),
    )(a, w, bias.reshape(1, cn).astype(jnp.float32))
    return y[:m], s, ss


def _affine_relu(y2d, scale, shift):
    # y2d: (M, Cn) bf16; scale/shift: (Cn,) f32 -> (M, Cn) bf16
    m, cn = y2d.shape
    m_p = _round_up(m, _TM)
    y = jnp.pad(y2d, ((0, m_p - m), (0, 0)))
    out = pl.pallas_call(
        _affine_relu_kernel,
        out_shape=jax.ShapeDtypeStruct((m_p, cn), jnp.bfloat16),
        grid=(m_p // _TM,),
        in_specs=[pl.BlockSpec((_TM, cn), lambda i: (i, 0)),
                  pl.BlockSpec((1, cn), lambda i: (0, 0)),
                  pl.BlockSpec((1, cn), lambda i: (0, 0))],
        out_specs=pl.BlockSpec((_TM, cn), lambda i: (i, 0)),
        compiler_params=pltpu.CompilerParams(
            dimension_semantics=("parallel",),
            vmem_limit_bytes=_VMEM_LIMIT),
    )(y, scale.reshape(1, cn).astype(jnp.float32),
      shift.reshape(1, cn).astype(jnp.float32))
    return out[:m]


# ---------------------------------------------------------------------------
# JAX glue (patch extraction, BN statistics, layer assembly)
# ---------------------------------------------------------------------------
def _im2col_3x3(x):
    # x: (N, H, W, C) -> (N*H*W, 9*C), tap-major / C-minor, pad=1.
    n, h, w, c = x.shape
    xp = jnp.pad(x, ((0, 0), (1, 1), (1, 1), (0, 0)))
    cols = [xp[:, dy:dy + h, dx:dx + w, :] for dy in range(3) for dx in range(3)]
    p = jnp.stack(cols, axis=3)            # (N, H, W, 9, C)
    return p.reshape(n * h * w, 9 * c)


def _bn_scale_shift(s, ss, count, gamma_p, beta_p, eps=1e-5):
    # Training-mode BatchNorm2d: batch statistics, biased variance.
    tot = jnp.sum(s[:, 0, :], axis=0)
    tot2 = jnp.sum(ss[:, 0, :], axis=0)
    mean = tot / count
    var = tot2 / count - mean * mean
    scale = gamma_p / jnp.sqrt(var + eps)
    shift = beta_p - mean * scale
    return scale, shift


def conv3x3_bn_relu(x, w_kkio, gamma, beta):
    # x: (N, H, W, C_act) bf16 (possibly zero-padded channels);
    # w_kkio: (3, 3, Cin_real, Cout_real) f32.  Conv bias is folded away: it
    # cancels exactly against the BatchNorm batch mean.
    n, h, wd, c_act = x.shape
    kk, _, cin, cout = w_kkio.shape
    assert kk == 3 and c_act >= cin
    cout_p = _round_up(cout, _LANE)
    w = jnp.pad(w_kkio, ((0, 0), (0, 0), (0, c_act - cin), (0, cout_p - cout)))
    w2d = w.reshape(9 * c_act, cout_p).astype(jnp.bfloat16)
    patches = _im2col_3x3(x)
    y, s, ss = _matmul_bn_stats(patches, w2d, jnp.zeros((cout_p,), jnp.float32))
    gamma_p = jnp.pad(gamma, (0, cout_p - cout))   # zero gamma/beta on padded
    beta_p = jnp.pad(beta, (0, cout_p - cout))     # channels keep them at 0
    scale, shift = _bn_scale_shift(s, ss, n * h * wd, gamma_p, beta_p)
    out = _affine_relu(y, scale, shift)
    return out.reshape(n, h, wd, cout_p)


def conv_transpose_4x4_s2_p1(x, w_iokk, bias):
    # PyTorch ConvTranspose2d(kernel=4, stride=2, padding=1) via the 4
    # sub-pixel-phase decomposition packed into one (9*Cin, 4*Cout) matmul.
    # Phase (r, s) of the output (row/col parity) is a 2x2 correlation of the
    # 1-padded input with kernel taps w[3-r-2dy, 3-s-2dx].
    n, h, wd, c_act = x.shape
    cin, cout, kk, _ = w_iokk.shape
    assert kk == 4 and c_act >= cin
    cpad = _round_up(cout, 32)                       # 4*cpad is lane-dense
    w9 = jnp.zeros((3, 3, c_act, 4 * cpad), jnp.float32)
    for r in range(2):
        for s in range(2):
            p = r * 2 + s
            for dy in range(2):
                for dx in range(2):
                    tap = w_iokk[:, :, 3 - r - 2 * dy, 3 - s - 2 * dx]  # (Cin, Cout)
                    w9 = w9.at[r + dy, s + dx, :cin,
                               p * cpad:p * cpad + cout].set(tap)
    b9 = jnp.zeros((4 * cpad,), jnp.float32)
    for p in range(4):
        b9 = b9.at[p * cpad:p * cpad + cout].set(bias)

    patches = _im2col_3x3(x)
    y, _, _ = _matmul_bn_stats(
        patches, w9.reshape(9 * c_act, 4 * cpad).astype(jnp.bfloat16), b9)
    y = y.reshape(n, h, wd, 2, 2, cpad)              # (..., r, s, C)
    y = jnp.transpose(y, (0, 1, 3, 2, 4, 5)).reshape(n, 2 * h, 2 * wd, cpad)
    return y


# ---------------------------------------------------------------------------
# Parameters (deterministic, synthetic — not a checkpoint load)
# ---------------------------------------------------------------------------
def _init_conv(key, cin, cout, k=3):
    k1, k2 = jax.random.split(key)
    bound = 1.0 / float(cin * k * k) ** 0.5
    w = jax.random.uniform(k1, (k, k, cin, cout), jnp.float32, -bound, bound)
    b = jax.random.uniform(k2, (cout,), jnp.float32, -bound, bound)
    return {"w": w, "b": b}           # bias only used by the f32 reference


def _init_deconv(key, cin, cout, k=4):
    k1, k2 = jax.random.split(key)
    bound = 1.0 / float(cout * k * k) ** 0.5
    w = jax.random.uniform(k1, (cin, cout, k, k), jnp.float32, -bound, bound)
    b = jax.random.uniform(k2, (cout,), jnp.float32, -bound, bound)
    return {"w": w, "b": b}


def _init_bn(c):
    return {"gamma": jnp.ones((c,), jnp.float32),
            "beta": jnp.zeros((c,), jnp.float32)}


def up_init(key, in_plane, out_plane):
    k1, k2, k3 = jax.random.split(key, 3)
    return {"deconv": _init_deconv(k1, in_plane, out_plane),
            "c1": _init_conv(k2, out_plane, out_plane, 3), "bn1": _init_bn(out_plane),
            "c2": _init_conv(k3, out_plane, out_plane, 3), "bn2": _init_bn(out_plane)}


# ---------------------------------------------------------------------------
# Forward pass (Pallas) + pure-JAX f32 reference
# ---------------------------------------------------------------------------
def up_forward(params, x_nchw):
    x = jnp.transpose(x_nchw, (0, 2, 3, 1)).astype(jnp.bfloat16)   # NCHW -> NHWC
    y = conv_transpose_4x4_s2_p1(x, params["deconv"]["w"], params["deconv"]["b"])
    y = conv3x3_bn_relu(y, params["c1"]["w"],
                        params["bn1"]["gamma"], params["bn1"]["beta"])
    y = conv3x3_bn_relu(y, params["c2"]["w"],
                        params["bn2"]["gamma"], params["bn2"]["beta"])
    out_plane = params["c2"]["w"].shape[-1]
    y = y[..., :out_plane]                                         # drop channel padding
    return jnp.transpose(y, (0, 3, 1, 2)).astype(jnp.float32)      # NHWC -> NCHW


def up_reference(params, x_nchw):
    # Pure-JAX f32 reference of the PyTorch module (biases included).
    x = jnp.transpose(x_nchw, (0, 2, 3, 1)).astype(jnp.float32)
    w = params["deconv"]["w"]                                      # (Cin, Cout, 4, 4)
    wf = jnp.transpose(w[:, :, ::-1, ::-1], (2, 3, 0, 1))          # (4,4,Cin,Cout)
    y = jax.lax.conv_general_dilated(
        x, wf, window_strides=(1, 1), padding=[(2, 2), (2, 2)],
        lhs_dilation=(2, 2), dimension_numbers=("NHWC", "HWIO", "NHWC"))
    y = y + params["deconv"]["b"]

    def cbr(y, wk, bias, gamma, beta):
        y = jax.lax.conv_general_dilated(
            y, wk, window_strides=(1, 1), padding=[(1, 1), (1, 1)],
            dimension_numbers=("NHWC", "HWIO", "NHWC")) + bias
        mean = jnp.mean(y, axis=(0, 1, 2))
        var = jnp.mean((y - mean) ** 2, axis=(0, 1, 2))
        y = (y - mean) / jnp.sqrt(var + 1e-5) * gamma + beta
        return jnp.maximum(y, 0.0)

    y = cbr(y, params["c1"]["w"], params["c1"]["b"],
            params["bn1"]["gamma"], params["bn1"]["beta"])
    y = cbr(y, params["c2"]["w"], params["c2"]["b"],
            params["bn2"]["gamma"], params["bn2"]["beta"])
    return jnp.transpose(y, (0, 3, 1, 2))


# ---------------------------------------------------------------------------
if __name__ == "__main__":
    key = jax.random.PRNGKey(0)
    k_x, k_p = jax.random.split(key)

    N, IN_PLANE, OUT_PLANE, H, W = 2, 32, 16, 16, 16
    x = jax.random.normal(k_x, (N, IN_PLANE, H, W), jnp.float32)   # NCHW input
    params = up_init(k_p, IN_PLANE, OUT_PLANE)

    out = jax.jit(up_forward)(params, x)
    jax.block_until_ready(out)

    assert out.shape == (N, OUT_PLANE, 2 * H, 2 * W), out.shape
    assert bool(jnp.all(jnp.isfinite(out)))

    ref = up_reference(params, x)
    err = float(jnp.linalg.norm(out - ref) / (jnp.linalg.norm(ref) + 1e-8))
    assert err < 5e-2, f"relative error vs f32 reference too high: {err}"

    print("KERNEL_OK")
</pallas_src>

<mosaic_0001>
module attributes {stable_mosaic.version = 11 : i64} {
  func.func @_mm_bn_stats_kernel(%arg0: i32, %arg1: i32, %arg2: memref<256x128xbf16, #tpu.memory_space<vmem>>, %arg3: memref<128x128xbf16, #tpu.memory_space<vmem>>, %arg4: memref<1x128xf32, #tpu.memory_space<vmem>>, %arg5: memref<256x128xbf16, #tpu.memory_space<vmem>>, %arg6: memref<1x8x128xf32, #tpu.memory_space<vmem>>, %arg7: memref<1x8x128xf32, #tpu.memory_space<vmem>>, %arg8: memref<256x128xf32, #tpu.memory_space<vmem>>) attributes {dimension_semantics = [#tpu.dimension_semantics<parallel>, #tpu.dimension_semantics<arbitrary>], iteration_bounds = array<i64: 2, 3>, scalar_prefetch = 0 : i64, scratch_operands = 1 : i64, tpu.core_type = #tpu.core_type<tc>, window_params = [{transform_indices = @transform_0, window_bounds = array<i64: 256, 128>}, {transform_indices = @transform_1, window_bounds = array<i64: 128, 128>}, {pipeline_mode = #tpu.pipeline_mode<synchronous>, transform_indices = @transform_2, window_bounds = array<i64: 1, 128>}, {transform_indices = @transform_3, window_bounds = array<i64: 256, 128>}, {transform_indices = @transform_4, window_bounds = array<i64: 1, 8, 128>}, {transform_indices = @transform_5, window_bounds = array<i64: 1, 8, 128>}]} {
    %c0_i32 = arith.constant 0 : i32
    %0 = arith.cmpi eq, %arg1, %c0_i32 : i32
    %1 = arith.extui %0 : i1 to i32
    %c0_i32_0 = arith.constant 0 : i32
    %2 = arith.cmpi ne, %1, %c0_i32_0 : i32
    scf.if %2 {
      %cst_9 = arith.constant 0.000000e+00 : f32
      %12 = vector.broadcast %cst_9 : f32 to vector<256x128xf32>
      %c0_10 = arith.constant 0 : index
      %c0_11 = arith.constant 0 : index
      %13 = vector.load %arg8[%c0_10, %c0_11] : memref<256x128xf32, #tpu.memory_space<vmem>>, vector<256x128xf32>
      tpu.vector_store %arg8[%c0_10, %c0_11], %12 {strides = array<i32>} : memref<256x128xf32, #tpu.memory_space<vmem>>, vector<256x128xf32>,
    } else {
    }
    %c0 = arith.constant 0 : index
    %c0_1 = arith.constant 0 : index
    %3 = vector.load %arg8[%c0, %c0_1] : memref<256x128xf32, #tpu.memory_space<vmem>>, vector<256x128xf32>
    %c0_2 = arith.constant 0 : index
    %c0_3 = arith.constant 0 : index
    %4 = vector.load %arg2[%c0_2, %c0_3] : memref<256x128xbf16, #tpu.memory_space<vmem>>, vector<256x128xbf16>
    %c0_4 = arith.constant 0 : index
    %c0_5 = arith.constant 0 : index
    %5 = vector.load %arg3[%c0_4, %c0_5] : memref<128x128xbf16, #tpu.memory_space<vmem>>, vector<128x128xbf16>
    %cst = arith.constant dense<0.000000e+00> : vector<256x128xf32>
    %6 = tpu.matmul %4, %5, %cst {dimension_numbers = #tpu.dot_dimension_numbers<[1], [0], [0], [1], [0, 0, 1, 1], [], []>} : vector<256x128xbf16>, vector<128x128xbf16>, vector<256x128xf32> -> vector<256x128xf32>
    %7 = arith.addf %3, %6 : vector<256x128xf32>
    %c0_6 = arith.constant 0 : index
    %c0_7 = arith.constant 0 : index
    %8 = vector.load %arg8[%c0_6, %c0_7] : memref<256x128xf32, #tpu.memory_space<vmem>>, vector<256x128xf32>
    tpu.vector_store %arg8[%c0_6, %c0_7], %7 {strides = array<i32>} : memref<256x128xf32, #tpu.memory_space<vmem>>, vector<256x128xf32>,
    %c2_i32 = arith.constant 2 : i32
    %9 = arith.cmpi eq, %arg1, %c2_i32 : i32
    %10 = arith.extui %9 : i1 to i32
    %c0_i32_8 = arith.constant 0 : i32
    %11 = arith.cmpi ne, %10, %c0_i32_8 : i32
    scf.if %11 {
      %c0_9 = arith.constant 0 : index
      %c0_10 = arith.constant 0 : index
      %12 = vector.load %arg8[%c0_9, %c0_10] : memref<256x128xf32, #tpu.memory_space<vmem>>, vector<256x128xf32>
      %c0_11 = arith.constant 0 : index
      %c0_12 = arith.constant 0 : index
      %13 = vector.load %arg4[%c0_11, %c0_12] : memref<1x128xf32, #tpu.memory_space<vmem>>, vector<1x128xf32>
      %14 = vector.broadcast %13 : vector<1x128xf32> to vector<256x128xf32>
      %15 = arith.addf %12, %14 : vector<256x128xf32>
      %16 = arith.truncf %15 : vector<256x128xf32> to vector<256x128xbf16>
      %c0_13 = arith.constant 0 : index
      %c0_14 = arith.constant 0 : index
      %17 = vector.load %arg5[%c0_13, %c0_14] : memref<256x128xbf16, #tpu.memory_space<vmem>>, vector<256x128xbf16>
      tpu.vector_store %arg5[%c0_13, %c0_14], %16 {strides = array<i32>} : memref<256x128xbf16, #tpu.memory_space<vmem>>, vector<256x128xbf16>,
      %cst_15 = arith.constant dense<0.000000e+00> : vector<128xf32>
      %18 = vector.multi_reduction <add>, %15, %cst_15 [0] : vector<256x128xf32> to vector<128xf32>
      %19 = vector.shape_cast %18 : vector<128xf32> to vector<1x128xf32>
      %20 = arith.mulf %15, %15 : vector<256x128xf32>
      %cst_16 = arith.constant dense<0.000000e+00> : vector<128xf32>
      %21 = vector.multi_reduction <add>, %20, %cst_16 [0] : vector<256x128xf32> to vector<128xf32>
      %22 = vector.shape_cast %21 : vector<128xf32> to vector<1x128xf32>
      %23 = vector.shape_cast %19 : vector<1x128xf32> to vector<1x1x128xf32>
      %24 = vector.shape_cast %23 : vector<1x1x128xf32> to vector<1x1x128xf32>
      %25 = vector.broadcast %24 : vector<1x1x128xf32> to vector<1x8x128xf32>
      %c0_17 = arith.constant 0 : index
      %c0_18 = arith.constant 0 : index
      %c0_19 = arith.constant 0 : index
      %26 = vector.load %arg6[%c0_17, %c0_18, %c0_19] : memref<1x8x128xf32, #tpu.memory_space<vmem>>, vector<1x8x128xf32>
      tpu.vector_store %arg6[%c0_17, %c0_18, %c0_19], %25 {strides = array<i32>} : memref<1x8x128xf32, #tpu.memory_space<vmem>>, vector<1x8x128xf32>,
      %27 = vector.shape_cast %22 : vector<1x128xf32> to vector<1x1x128xf32>
      %28 = vector.shape_cast %27 : vector<1x1x128xf32> to vector<1x1x128xf32>
      %29 = vector.broadcast %28 : vector<1x1x128xf32> to vector<1x8x128xf32>
      %c0_20 = arith.constant 0 : index
      %c0_21 = arith.constant 0 : index
      %c0_22 = arith.constant 0 : index
      %30 = vector.load %arg7[%c0_20, %c0_21, %c0_22] : memref<1x8x128xf32, #tpu.memory_space<vmem>>, vector<1x8x128xf32>
      tpu.vector_store %arg7[%c0_20, %c0_21, %c0_22], %29 {strides = array<i32>} : memref<1x8x128xf32, #tpu.memory_space<vmem>>, vector<1x8x128xf32>,
    } else {
    }
    return
  }
  func.func @transform_0(%arg0: i32, %arg1: i32) -> (i32, i32) {
    %c0_i32 = arith.constant 0 : i32
    return %arg0, %arg1 : i32, i32
  }
  func.func @transform_1(%arg0: i32, %arg1: i32) -> (i32, i32) {
    %c0_i32 = arith.constant 0 : i32
    %c0_i32_0 = arith.constant 0 : i32
    return %arg1, %c0_i32 : i32, i32
  }
  func.func @transform_2(%arg0: i32, %arg1: i32) -> (i32, i32) {
    %c0_i32 = arith.constant 0 : i32
    %c0_i32_0 = arith.constant 0 : i32
    %c0_i32_1 = arith.constant 0 : i32
    return %c0_i32, %c0_i32_0 : i32, i32
  }
  func.func @transform_3(%arg0: i32, %arg1: i32) -> (i32, i32) {
    %c0_i32 = arith.constant 0 : i32
    %c0_i32_0 = arith.constant 0 : i32
    return %arg0, %c0_i32 : i32, i32
  }
  func.func @transform_4(%arg0: i32, %arg1: i32) -> (i32, i32, i32) {
    %c0_i32 = arith.constant 0 : i32
    %c0_i32_0 = arith.constant 0 : i32
    %c0_i32_1 = arith.constant 0 : i32
    return %arg0, %c0_i32, %c0_i32_0 : i32, i32, i32
  }
  func.func @transform_5(%arg0: i32, %arg1: i32) -> (i32, i32, i32) {
    %c0_i32 = arith.constant 0 : i32
    %c0_i32_0 = arith.constant 0 : i32
    %c0_i32_1 = arith.constant 0 : i32
    return %arg0, %c0_i32, %c0_i32_0 : i32, i32, i32
  }
}

module attributes {stable_mosaic.version = 11 : i64} {
  func.func @_mm_bn_stats_kernel(%arg0: i32, %arg1: i32, %arg2: memref<256x128xbf16, #tpu.memory_space<vmem>>, %arg3: memref<128x128xbf16, #tpu.memory_space<vmem>>, %arg4: memref<1x128xf32, #tpu.memory_space<vmem>>, %arg5: memref<256x128xbf16, #tpu.memory_space<vmem>>, %arg6: memref<1x8x128xf32, #tpu.memory_space<vmem>>, %arg7: memref<1x8x128xf32, #tpu.memory_space<vmem>>, %arg8: memref<256x128xf32, #tpu.memory_space<vmem>>) attributes {dimension_semantics = [#tpu.dimension_semantics<parallel>, #tpu.dimension_semantics<arbitrary>], iteration_bounds = array<i64: 8, 3>, scalar_prefetch = 0 : i64, scratch_operands = 1 : i64, tpu.core_type = #tpu.core_type<tc>, window_params = [{transform_indices = @transform_0, window_bounds = array<i64: 256, 128>}, {transform_indices = @transform_1, window_bounds = array<i64: 128, 128>}, {pipeline_mode = #tpu.pipeline_mode<synchronous>, transform_indices = @transform_2, window_bounds = array<i64: 1, 128>}, {transform_indices = @transform_3, window_bounds = array<i64: 256, 128>}, {transform_indices = @transform_4, window_bounds = array<i64: 1, 8, 128>}, {transform_indices = @transform_5, window_bounds = array<i64: 1, 8, 128>}]} {
    %c0_i32 = arith.constant 0 : i32
    %0 = arith.cmpi eq, %arg1, %c0_i32 : i32
    %1 = arith.extui %0 : i1 to i32
    %c0_i32_0 = arith.constant 0 : i32
    %2 = arith.cmpi ne, %1, %c0_i32_0 : i32
    scf.if %2 {
      %cst_9 = arith.constant 0.000000e+00 : f32
      %12 = vector.broadcast %cst_9 : f32 to vector<256x128xf32>
      %c0_10 = arith.constant 0 : index
      %c0_11 = arith.constant 0 : index
      %13 = vector.load %arg8[%c0_10, %c0_11] : memref<256x128xf32, #tpu.memory_space<vmem>>, vector<256x128xf32>
      tpu.vector_store %arg8[%c0_10, %c0_11], %12 {strides = array<i32>} : memref<256x128xf32, #tpu.memory_space<vmem>>, vector<256x128xf32>,
    } else {
    }
    %c0 = arith.constant 0 : index
    %c0_1 = arith.constant 0 : index
    %3 = vector.load %arg8[%c0, %c0_1] : memref<256x128xf32, #tpu.memory_space<vmem>>, vector<256x128xf32>
    %c0_2 = arith.constant 0 : index
    %c0_3 = arith.constant 0 : index
    %4 = vector.load %arg2[%c0_2, %c0_3] : memref<256x128xbf16, #tpu.memory_space<vmem>>, vector<256x128xbf16>
    %c0_4 = arith.constant 0 : index
    %c0_5 = arith.constant 0 : index
    %5 = vector.load %arg3[%c0_4, %c0_5] : memref<128x128xbf16, #tpu.memory_space<vmem>>, vector<128x128xbf16>
    %cst = arith.constant dense<0.000000e+00> : vector<256x128xf32>
    %6 = tpu.matmul %4, %5, %cst {dimension_numbers = #tpu.dot_dimension_numbers<[1], [0], [0], [1], [0, 0, 1, 1], [], []>} : vector<256x128xbf16>, vector<128x128xbf16>, vector<256x128xf32> -> vector<256x128xf32>
    %7 = arith.addf %3, %6 : vector<256x128xf32>
    %c0_6 = arith.constant 0 : index
    %c0_7 = arith.constant 0 : index
    %8 = vector.load %arg8[%c0_6, %c0_7] : memref<256x128xf32, #tpu.memory_space<vmem>>, vector<256x128xf32>
    tpu.vector_store %arg8[%c0_6, %c0_7], %7 {strides = array<i32>} : memref<256x128xf32, #tpu.memory_space<vmem>>, vector<256x128xf32>,
    %c2_i32 = arith.constant 2 : i32
    %9 = arith.cmpi eq, %arg1, %c2_i32 : i32
    %10 = arith.extui %9 : i1 to i32
    %c0_i32_8 = arith.constant 0 : i32
    %11 = arith.cmpi ne, %10, %c0_i32_8 : i32
    scf.if %11 {
      %c0_9 = arith.constant 0 : index
      %c0_10 = arith.constant 0 : index
      %12 = vector.load %arg8[%c0_9, %c0_10] : memref<256x128xf32, #tpu.memory_space<vmem>>, vector<256x128xf32>
      %c0_11 = arith.constant 0 : index
      %c0_12 = arith.constant 0 : index
      %13 = vector.load %arg4[%c0_11, %c0_12] : memref<1x128xf32, #tpu.memory_space<vmem>>, vector<1x128xf32>
      %14 = vector.broadcast %13 : vector<1x128xf32> to vector<256x128xf32>
      %15 = arith.addf %12, %14 : vector<256x128xf32>
      %16 = arith.truncf %15 : vector<256x128xf32> to vector<256x128xbf16>
      %c0_13 = arith.constant 0 : index
      %c0_14 = arith.constant 0 : index
      %17 = vector.load %arg5[%c0_13, %c0_14] : memref<256x128xbf16, #tpu.memory_space<vmem>>, vector<256x128xbf16>
      tpu.vector_store %arg5[%c0_13, %c0_14], %16 {strides = array<i32>} : memref<256x128xbf16, #tpu.memory_space<vmem>>, vector<256x128xbf16>,
      %cst_15 = arith.constant dense<0.000000e+00> : vector<128xf32>
      %18 = vector.multi_reduction <add>, %15, %cst_15 [0] : vector<256x128xf32> to vector<128xf32>
      %19 = vector.shape_cast %18 : vector<128xf32> to vector<1x128xf32>
      %20 = arith.mulf %15, %15 : vector<256x128xf32>
      %cst_16 = arith.constant dense<0.000000e+00> : vector<128xf32>
      %21 = vector.multi_reduction <add>, %20, %cst_16 [0] : vector<256x128xf32> to vector<128xf32>
      %22 = vector.shape_cast %21 : vector<128xf32> to vector<1x128xf32>
      %23 = vector.shape_cast %19 : vector<1x128xf32> to vector<1x1x128xf32>
      %24 = vector.shape_cast %23 : vector<1x1x128xf32> to vector<1x1x128xf32>
      %25 = vector.broadcast %24 : vector<1x1x128xf32> to vector<1x8x128xf32>
      %c0_17 = arith.constant 0 : index
      %c0_18 = arith.constant 0 : index
      %c0_19 = arith.constant 0 : index
      %26 = vector.load %arg6[%c0_17, %c0_18, %c0_19] : memref<1x8x128xf32, #tpu.memory_space<vmem>>, vector<1x8x128xf32>
      tpu.vector_store %arg6[%c0_17, %c0_18, %c0_19], %25 {strides = array<i32>} : memref<1x8x128xf32, #tpu.memory_space<vmem>>, vector<1x8x128xf32>,
      %27 = vector.shape_cast %22 : vector<1x128xf32> to vector<1x1x128xf32>
      %28 = vector.shape_cast %27 : vector<1x1x128xf32> to vector<1x1x128xf32>
      %29 = vector.broadcast %28 : vector<1x1x128xf32> to vector<1x8x128xf32>
      %c0_20 = arith.constant 0 : index
      %c0_21 = arith.constant 0 : index
      %c0_22 = arith.constant 0 : index
      %30 = vector.load %arg7[%c0_20, %c0_21, %c0_22] : memref<1x8x128xf32, #tpu.memory_space<vmem>>, vector<1x8x128xf32>
      tpu.vector_store %arg7[%c0_20, %c0_21, %c0_22], %29 {strides = array<i32>} : memref<1x8x128xf32, #tpu.memory_space<vmem>>, vector<1x8x128xf32>,
    } else {
    }
    return
  }
  func.func @transform_0(%arg0: i32, %arg1: i32) -> (i32, i32) {
    %c0_i32 = arith.constant 0 : i32
    return %arg0, %arg1 : i32, i32
  }
  func.func @transform_1(%arg0: i32, %arg1: i32) -> (i32, i32) {
    %c0_i32 = arith.constant 0 : i32
    %c0_i32_0 = arith.constant 0 : i32
    return %arg1, %c0_i32 : i32, i32
  }
  func.func @transform_2(%arg0: i32, %arg1: i32) -> (i32, i32) {
    %c0_i32 = arith.constant 0 : i32
    %c0_i32_0 = arith.constant 0 : i32
    %c0_i32_1 = arith.constant 0 : i32
    return %c0_i32, %c0_i32_0 : i32, i32
  }
  func.func @transform_3(%arg0: i32, %arg1: i32) -> (i32, i32) {
    %c0_i32 = arith.constant 0 : i32
    %c0_i32_0 = arith.constant 0 : i32
    return %arg0, %c0_i32 : i32, i32
  }
  func.func @transform_4(%arg0: i32, %arg1: i32) -> (i32, i32, i32) {
    %c0_i32 = arith.constant 0 : i32
    %c0_i32_0 = arith.constant 0 : i32
    %c0_i32_1 = arith.constant 0 : i32
    return %arg0, %c0_i32, %c0_i32_0 : i32, i32, i32
  }
  func.func @transform_5(%arg0: i32, %arg1: i32) -> (i32, i32, i32) {
    %c0_i32 = arith.constant 0 : i32
    %c0_i32_0 = arith.constant 0 : i32
    %c0_i32_1 = arith.constant 0 : i32
    return %arg0, %c0_i32, %c0_i32_0 : i32, i32, i32
  }
}

module attributes {stable_mosaic.version = 11 : i64} {
  func.func @_affine_relu_kernel(%arg0: i32, %arg1: memref<256x128xbf16, #tpu.memory_space<vmem>>, %arg2: memref<1x128xf32, #tpu.memory_space<vmem>>, %arg3: memref<1x128xf32, #tpu.memory_space<vmem>>, %arg4: memref<256x128xbf16, #tpu.memory_space<vmem>>) attributes {dimension_semantics = [#tpu.dimension_semantics<parallel>], iteration_bounds = array<i64: 8>, scalar_prefetch = 0 : i64, scratch_operands = 0 : i64, tpu.core_type = #tpu.core_type<tc>, window_params = [{transform_indices = @transform_0, window_bounds = array<i64: 256, 128>}, {pipeline_mode = #tpu.pipeline_mode<synchronous>, transform_indices = @transform_1, window_bounds = array<i64: 1, 128>}, {pipeline_mode = #tpu.pipeline_mode<synchronous>, transform_indices = @transform_2, window_bounds = array<i64: 1, 128>}, {transform_indices = @transform_3, window_bounds = array<i64: 256, 128>}]} {
    %c0 = arith.constant 0 : index
    %c0_0 = arith.constant 0 : index
    %0 = vector.load %arg1[%c0, %c0_0] : memref<256x128xbf16, #tpu.memory_space<vmem>>, vector<256x128xbf16>
    %1 = arith.extf %0 : vector<256x128xbf16> to vector<256x128xf32>
    %c0_1 = arith.constant 0 : index
    %c0_2 = arith.constant 0 : index
    %2 = vector.load %arg2[%c0_1, %c0_2] : memref<1x128xf32, #tpu.memory_space<vmem>>, vector<1x128xf32>
    %3 = vector.broadcast %2 : vector<1x128xf32> to vector<256x128xf32>
    %4 = arith.mulf %1, %3 : vector<256x128xf32>
    %c0_3 = arith.constant 0 : index
    %c0_4 = arith.constant 0 : index
    %5 = vector.load %arg3[%c0_3, %c0_4] : memref<1x128xf32, #tpu.memory_space<vmem>>, vector<1x128xf32>
    %6 = vector.broadcast %5 : vector<1x128xf32> to vector<256x128xf32>
    %7 = arith.addf %4, %6 : vector<256x128xf32>
    %cst = arith.constant 0.000000e+00 : f32
    %8 = vector.broadcast %cst : f32 to vector<256x128xf32>
    %9 = arith.maximumf %7, %8 : vector<256x128xf32>
    %10 = arith.truncf %9 : vector<256x128xf32> to vector<256x128xbf16>
    %c0_5 = arith.constant 0 : index
    %c0_6 = arith.constant 0 : index
    %11 = vector.load %arg4[%c0_5, %c0_6] : memref<256x128xbf16, #tpu.memory_space<vmem>>, vector<256x128xbf16>
    tpu.vector_store %arg4[%c0_5, %c0_6], %10 {strides = array<i32>} : memref<256x128xbf16, #tpu.memory_space<vmem>>, vector<256x128xbf16>,
    return
  }
  func.func @transform_0(%arg0: i32) -> (i32, i32) {
    %c0_i32 = arith.constant 0 : i32
    %c0_i32_0 = arith.constant 0 : i32
    return %arg0, %c0_i32 : i32, i32
  }
  func.func @transform_1(%arg0: i32) -> (i32, i32) {
    %c0_i32 = arith.constant 0 : i32
    %c0_i32_0 = arith.constant 0 : i32
    %c0_i32_1 = arith.constant 0 : i32
    return %c0_i32, %c0_i32_0 : i32, i32
  }
  func.func @transform_2(%arg0: i32) -> (i32, i32) {
    %c0_i32 = arith.constant 0 : i32
    %c0_i32_0 = arith.constant 0 : i32
    %c0_i32_1 = arith.constant 0 : i32
    return %c0_i32, %c0_i32_0 : i32, i32
  }
  func.func @transform_3(%arg0: i32) -> (i32, i32) {
    %c0_i32 = arith.constant 0 : i32
    %c0_i32_0 = arith.constant 0 : i32
    return %arg0, %c0_i32 : i32, i32
  }
}

module attributes {stable_mosaic.version = 11 : i64} {
  func.func @_mm_bn_stats_kernel(%arg0: i32, %arg1: i32, %arg2: memref<256x128xbf16, #tpu.memory_space<vmem>>, %arg3: memref<128x128xbf16, #tpu.memory_space<vmem>>, %arg4: memref<1x128xf32, #tpu.memory_space<vmem>>, %arg5: memref<256x128xbf16, #tpu.memory_space<vmem>>, %arg6: memref<1x8x128xf32, #tpu.memory_space<vmem>>, %arg7: memref<1x8x128xf32, #tpu.memory_space<vmem>>, %arg8: memref<256x128xf32, #tpu.memory_space<vmem>>) attributes {dimension_semantics = [#tpu.dimension_semantics<parallel>, #tpu.dimension_semantics<arbitrary>], iteration_bounds = array<i64: 8, 9>, scalar_prefetch = 0 : i64, scratch_operands = 1 : i64, tpu.core_type = #tpu.core_type<tc>, window_params = [{transform_indices = @transform_0, window_bounds = array<i64: 256, 128>}, {transform_indices = @transform_1, window_bounds = array<i64: 128, 128>}, {pipeline_mode = #tpu.pipeline_mode<synchronous>, transform_indices = @transform_2, window_bounds = array<i64: 1, 128>}, {transform_indices = @transform_3, window_bounds = array<i64: 256, 128>}, {transform_indices = @transform_4, window_bounds = array<i64: 1, 8, 128>}, {transform_indices = @transform_5, window_bounds = array<i64: 1, 8, 128>}]} {
    %c0_i32 = arith.constant 0 : i32
    %0 = arith.cmpi eq, %arg1, %c0_i32 : i32
    %1 = arith.extui %0 : i1 to i32
    %c0_i32_0 = arith.constant 0 : i32
    %2 = arith.cmpi ne, %1, %c0_i32_0 : i32
    scf.if %2 {
      %cst_9 = arith.constant 0.000000e+00 : f32
      %12 = vector.broadcast %cst_9 : f32 to vector<256x128xf32>
      %c0_10 = arith.constant 0 : index
      %c0_11 = arith.constant 0 : index
      %13 = vector.load %arg8[%c0_10, %c0_11] : memref<256x128xf32, #tpu.memory_space<vmem>>, vector<256x128xf32>
      tpu.vector_store %arg8[%c0_10, %c0_11], %12 {strides = array<i32>} : memref<256x128xf32, #tpu.memory_space<vmem>>, vector<256x128xf32>,
    } else {
    }
    %c0 = arith.constant 0 : index
    %c0_1 = arith.constant 0 : index
    %3 = vector.load %arg8[%c0, %c0_1] : memref<256x128xf32, #tpu.memory_space<vmem>>, vector<256x128xf32>
    %c0_2 = arith.constant 0 : index
    %c0_3 = arith.constant 0 : index
    %4 = vector.load %arg2[%c0_2, %c0_3] : memref<256x128xbf16, #tpu.memory_space<vmem>>, vector<256x128xbf16>
    %c0_4 = arith.constant 0 : index
    %c0_5 = arith.constant 0 : index
    %5 = vector.load %arg3[%c0_4, %c0_5] : memref<128x128xbf16, #tpu.memory_space<vmem>>, vector<128x128xbf16>
    %cst = arith.constant dense<0.000000e+00> : vector<256x128xf32>
    %6 = tpu.matmul %4, %5, %cst {dimension_numbers = #tpu.dot_dimension_numbers<[1], [0], [0], [1], [0, 0, 1, 1], [], []>} : vector<256x128xbf16>, vector<128x128xbf16>, vector<256x128xf32> -> vector<256x128xf32>
    %7 = arith.addf %3, %6 : vector<256x128xf32>
    %c0_6 = arith.constant 0 : index
    %c0_7 = arith.constant 0 : index
    %8 = vector.load %arg8[%c0_6, %c0_7] : memref<256x128xf32, #tpu.memory_space<vmem>>, vector<256x128xf32>
    tpu.vector_store %arg8[%c0_6, %c0_7], %7 {strides = array<i32>} : memref<256x128xf32, #tpu.memory_space<vmem>>, vector<256x128xf32>,
    %c8_i32 = arith.constant 8 : i32
    %9 = arith.cmpi eq, %arg1, %c8_i32 : i32
    %10 = arith.extui %9 : i1 to i32
    %c0_i32_8 = arith.constant 0 : i32
    %11 = arith.cmpi ne, %10, %c0_i32_8 : i32
    scf.if %11 {
      %c0_9 = arith.constant 0 : index
      %c0_10 = arith.constant 0 : index
      %12 = vector.load %arg8[%c0_9, %c0_10] : memref<256x128xf32, #tpu.memory_space<vmem>>, vector<256x128xf32>
      %c0_11 = arith.constant 0 : index
      %c0_12 = arith.constant 0 : index
      %13 = vector.load %arg4[%c0_11, %c0_12] : memref<1x128xf32, #tpu.memory_space<vmem>>, vector<1x128xf32>
      %14 = vector.broadcast %13 : vector<1x128xf32> to vector<256x128xf32>
      %15 = arith.addf %12, %14 : vector<256x128xf32>
      %16 = arith.truncf %15 : vector<256x128xf32> to vector<256x128xbf16>
      %c0_13 = arith.constant 0 : index
      %c0_14 = arith.constant 0 : index
      %17 = vector.load %arg5[%c0_13, %c0_14] : memref<256x128xbf16, #tpu.memory_space<vmem>>, vector<256x128xbf16>
      tpu.vector_store %arg5[%c0_13, %c0_14], %16 {strides = array<i32>} : memref<256x128xbf16, #tpu.memory_space<vmem>>, vector<256x128xbf16>,
      %cst_15 = arith.constant dense<0.000000e+00> : vector<128xf32>
      %18 = vector.multi_reduction <add>, %15, %cst_15 [0] : vector<256x128xf32> to vector<128xf32>
      %19 = vector.shape_cast %18 : vector<128xf32> to vector<1x128xf32>
      %20 = arith.mulf %15, %15 : vector<256x128xf32>
      %cst_16 = arith.constant dense<0.000000e+00> : vector<128xf32>
      %21 = vector.multi_reduction <add>, %20, %cst_16 [0] : vector<256x128xf32> to vector<128xf32>
      %22 = vector.shape_cast %21 : vector<128xf32> to vector<1x128xf32>
      %23 = vector.shape_cast %19 : vector<1x128xf32> to vector<1x1x128xf32>
      %24 = vector.shape_cast %23 : vector<1x1x128xf32> to vector<1x1x128xf32>
      %25 = vector.broadcast %24 : vector<1x1x128xf32> to vector<1x8x128xf32>
      %c0_17 = arith.constant 0 : index
      %c0_18 = arith.constant 0 : index
      %c0_19 = arith.constant 0 : index
      %26 = vector.load %arg6[%c0_17, %c0_18, %c0_19] : memref<1x8x128xf32, #tpu.memory_space<vmem>>, vector<1x8x128xf32>
      tpu.vector_store %arg6[%c0_17, %c0_18, %c0_19], %25 {strides = array<i32>} : memref<1x8x128xf32, #tpu.memory_space<vmem>>, vector<1x8x128xf32>,
      %27 = vector.shape_cast %22 : vector<1x128xf32> to vector<1x1x128xf32>
      %28 = vector.shape_cast %27 : vector<1x1x128xf32> to vector<1x1x128xf32>
      %29 = vector.broadcast %28 : vector<1x1x128xf32> to vector<1x8x128xf32>
      %c0_20 = arith.constant 0 : index
      %c0_21 = arith.constant 0 : index
      %c0_22 = arith.constant 0 : index
      %30 = vector.load %arg7[%c0_20, %c0_21, %c0_22] : memref<1x8x128xf32, #tpu.memory_space<vmem>>, vector<1x8x128xf32>
      tpu.vector_store %arg7[%c0_20, %c0_21, %c0_22], %29 {strides = array<i32>} : memref<1x8x128xf32, #tpu.memory_space<vmem>>, vector<1x8x128xf32>,
    } else {
    }
    return
  }
  func.func @transform_0(%arg0: i32, %arg1: i32) -> (i32, i32) {
    %c0_i32 = arith.constant 0 : i32
    return %arg0, %arg1 : i32, i32
  }
  func.func @transform_1(%arg0: i32, %arg1: i32) -> (i32, i32) {
    %c0_i32 = arith.constant 0 : i32
    %c0_i32_0 = arith.constant 0 : i32
    return %arg1, %c0_i32 : i32, i32
  }
  func.func @transform_2(%arg0: i32, %arg1: i32) -> (i32, i32) {
    %c0_i32 = arith.constant 0 : i32
    %c0_i32_0 = arith.constant 0 : i32
    %c0_i32_1 = arith.constant 0 : i32
    return %c0_i32, %c0_i32_0 : i32, i32
  }
  func.func @transform_3(%arg0: i32, %arg1: i32) -> (i32, i32) {
    %c0_i32 = arith.constant 0 : i32
    %c0_i32_0 = arith.constant 0 : i32
    return %arg0, %c0_i32 : i32, i32
  }
  func.func @transform_4(%arg0: i32, %arg1: i32) -> (i32, i32, i32) {
    %c0_i32 = arith.constant 0 : i32
    %c0_i32_0 = arith.constant 0 : i32
    %c0_i32_1 = arith.constant 0 : i32
    return %arg0, %c0_i32, %c0_i32_0 : i32, i32, i32
  }
  func.func @transform_5(%arg0: i32, %arg1: i32) -> (i32, i32, i32) {
    %c0_i32 = arith.constant 0 : i32
    %c0_i32_0 = arith.constant 0 : i32
    %c0_i32_1 = arith.constant 0 : i32
    return %arg0, %c0_i32, %c0_i32_0 : i32, i32, i32
  }
}

</mosaic_0001>

<llo_original>
// kernel: up_forward.5
$region0: #{up_forward.5}
  #allocation0 [shape = 'u32[]', space=smem, size = 0x4, offset = 0x4, fixed_abs, tag = 'smem constant byte address 0x4 - core index']
  #allocation1 [shape = 'u32[72,128]{1,0:T(1,128)}', space=vmem, size = 0x9000, scoped, tag = 'internal scratch']
  #allocation2 [shape = 'f32[256,128]{1,0:T(8,128)}', space=vmem, size = 0x20000, scoped, tag = 'scratch operand']
  %s0 = inlined_call_operand.vmem [shape: bf16[512,384], index: 0, kind: input, shape index: {}]
  %s1 = inlined_call_operand.vmem [shape: bf16[384,128], index: 1, kind: input, shape index: {}]
  %s2 = inlined_call_operand.vmem [shape: f32[1,128], index: 2, kind: input, shape index: {}]
  %s3 = inlined_call_operand.vmem [shape: bf16[512,128], index: 3, kind: output, shape index: {0}]
  %s4 = inlined_call_operand.hbm [shape: f32[2,8,128], index: 4, kind: output, shape index: {1}]
  %s5 = inlined_call_operand.hbm [shape: f32[2,8,128], index: 5, kind: output, shape index: {2}]
  %6 = xla_tuple %s3, %s4, %s5
  %s7 = sld [smem:[#allocation0]]
  $region110: #{up_forward.5} parent=0
    _
  %s9 = ssub.s32 1, %s7
  %s10 = scalar_select 0, %s9, %s7
  $region1: #{up_forward.5} parent=0
    #allocation3 [shape = 'u8[131072]{0}', space=vmem, size = 0x20000, scoped, tag = 'input window, operand 0']
    #allocation4 [shape = 'u8[8192]{0}', space=vmem, size = 0x2000, scoped, tag = 'output window, operand 1']
    #allocation5 [shape = 's32[2]{0}', space=sflag, size = 0x8, scoped, tag = 'scoped memory for up_forward.5']
    #allocation6 [shape = 'u8[8192]{0}', space=vmem, size = 0x2000, scoped, tag = 'output window, operand 2']
    #allocation7 [shape = 's32[2]{0}', space=sflag, size = 0x8, scoped, tag = 'scoped memory for up_forward.5']
    %11 = vsyncpa [#allocation5], 0
    %s12 = scalar_lea.sflag [#allocation5], 1
    %13 = vsyncpa %s12, 0
    %14 = vsyncpa [#allocation7], 0
    %s15 = scalar_lea.sflag [#allocation7], 1
    %16 = vsyncpa %s15, 0
    loop: start=0, step=1, limit=8
    $region2: #{up_forward.5} parent=1 // loop_pre_header
      _
    $region3: #{up_forward.5} parent=1 // loop_header
      %s18 = sphi 0, %s22
      %p19 = scmp.ge.s32.totalorder %s18, 8
      %s25 = sphi 0, %s37
      %s26 = sphi 0, %s33
      %s27 = sphi 0, %s25
      %s28 = sphi 0, %s26
      %s29 = sphi 0, %s27
      %s30 = sphi 0, %s28
      %s42 = sphi 0, %s44
      %s45 = sphi 0, %s42
      %s46 = sphi 0, %s45
      %s62 = sphi 0, %s46
      %s68 = sphi 0, %s70
      %s71 = sphi 0, %s68
      %s72 = sphi 0, %s71
      %s88 = sphi 0, %s72
      %s92 = sphi 0, %s92
      %s94 = sphi 0, %s92
      %s95 = sphi 0, %s94
      %s109 = sphi 0, %s95
      %s115 = sphi 0, %s117
      %s118 = sphi 0, %s115
      %s119 = sphi 0, %s118
      %s135 = sphi 0, %s119
      %s141 = sphi 0, %s143
      %s144 = sphi 0, %s141
      %s145 = sphi 0, %s144
      %s161 = sphi 0, %s145
      %s167 = sphi 0, %s169
      %s170 = sphi 0, %s167
      %s171 = sphi 0, %s170
      %s187 = sphi 0, %s171
    $region4: #{up_forward.5} parent=1 // loop_header_branch
      %21 = sbr.rel (%p19) target = $region8
    $region5: #{up_forward.5} parent=1 // loop_body
      %s23 = ssub.s32 %s18, 1
      %s24 = ssub.s32 %s18, 2
      %s31 = sadd.s32 1, %s26
      %p32 = scmp.ge.s32.totalorder %s31, 3
      %s33 = scalar_select %p32, 0, %s31
      %s34 = sadd.s32 1, %s25
      %s35 = scalar_select %p32, %s34, %s25
      %p36 = scmp.ge.s32.totalorder %s35, 2
      %s37 = scalar_select %p36, 0, %s35
      %s38 = ssub.s32 %s25, %s37
      %s39 = ssub.s32 %s26, %s33
      %s40 = sor.u32 %s38, %s39
      %p41 = scmp.eq.s32.totalorder %s40, 0
      %s43 = sadd.s32 %s42, 1
      %s44 = scalar_select %p41, %s42, %s43
      %p47 = pneg %p41
      %p48 = scmp.eq.s32.totalorder %s18, 5
      %p49 = por %p47, %p48
      %p50 = scmp.ne.s32.totalorder %s42, %s45
      %p51 = scmp.eq.s32.totalorder %s18, 0
      %p52 = por %p50, %p51
      %p53 = scmp.ne.s32.totalorder %s42, %s45
      %p54 = scmp.eq.s32.totalorder %s23, 5
      %p55 = por %p53, %p54
      %p56 = scmp.ne.s32.totalorder %s45, %s46
      %p57 = scmp.eq.s32.totalorder %s23, 0
      %p58 = por %p56, %p57
      %p59 = scmp.ne.s32.totalorder %s45, %s46
      %p60 = scmp.eq.s32.totalorder %s24, 5
      %p61 = por %p59, %p60
      %p63 = scmp.ne.s32.totalorder %s46, %s62
      %p64 = scmp.eq.s32.totalorder %s24, 0
      %p65 = por %p63, %p64
      %s66 = ssub.s32 %s26, %s33
      %p67 = scmp.eq.s32.totalorder %s66, 0
      %s69 = sadd.s32 %s68, 1
      %s70 = scalar_select %p67, %s68, %s69
      %p73 = pneg %p67
      %p74 = scmp.eq.s32.totalorder %s18, 5
      %p75 = por %p73, %p74
      %p76 = scmp.ne.s32.totalorder %s68, %s71
      %p77 = scmp.eq.s32.totalorder %s18, 0
      %p78 = por %p76, %p77
      %p79 = scmp.ne.s32.totalorder %s68, %s71
      %p80 = scmp.eq.s32.totalorder %s23, 5
      %p81 = por %p79, %p80
      %p82 = scmp.ne.s32.totalorder %s71, %s72
      %p83 = scmp.eq.s32.totalorder %s23, 0
      %p84 = por %p82, %p83
      %p85 = scmp.ne.s32.totalorder %s71, %s72
      %p86 = scmp.eq.s32.totalorder %s24, 5
      %p87 = por %p85, %p86
      %p89 = scmp.ne.s32.totalorder %s72, %s88
      %p90 = scmp.eq.s32.totalorder %s24, 0
      %p91 = por %p89, %p90
      %s93 = sadd.s32 %s92, 1
      %p96 = scmp.eq.s32.totalorder %s18, 5
      %p97 = scmp.ne.s32.totalorder %s92, %s94
      %p98 = scmp.eq.s32.totalorder %s18, 0
      %p99 = por %p97, %p98
      %p100 = scmp.ne.s32.totalorder %s92, %s94
      %p101 = scmp.eq.s32.totalorder %s23, 5
      %p102 = por %p100, %p101
      %p103 = scmp.ne.s32.totalorder %s94, %s95
      %p104 = scmp.eq.s32.totalorder %s23, 0
      %p105 = por %p103, %p104
      %p106 = scmp.ne.s32.totalorder %s94, %s95
      %p107 = scmp.eq.s32.totalorder %s24, 5
      %p108 = por %p106, %p107
      %p110 = scmp.ne.s32.totalorder %s95, %s109
      %p111 = scmp.eq.s32.totalorder %s24, 0
      %p112 = por %p110, %p111
      %s113 = ssub.s32 %s25, %s37
      %p114 = scmp.eq.s32.totalorder %s113, 0
      %s116 = sadd.s32 %s115, 1
      %s117 = scalar_select %p114, %s115, %s116
      %p120 = pneg %p114
      %p121 = scmp.eq.s32.totalorder %s18, 5
      %p122 = por %p120, %p121
      %p123 = scmp.ne.s32.totalorder %s115, %s118
      %p124 = scmp.eq.s32.totalorder %s18, 0
      %p125 = por %p123, %p124
      %p126 = scmp.ne.s32.totalorder %s115, %s118
      %p127 = scmp.eq.s32.totalorder %s23, 5
      %p128 = por %p126, %p127
      %p129 = scmp.ne.s32.totalorder %s118, %s119
      %p130 = scmp.eq.s32.totalorder %s23, 0
      %p131 = por %p129, %p130
      %p132 = scmp.ne.s32.totalorder %s118, %s119
      %p133 = scmp.eq.s32.totalorder %s24, 5
      %p134 = por %p132, %p133
      %p136 = scmp.ne.s32.totalorder %s119, %s135
      %p137 = scmp.eq.s32.totalorder %s24, 0
      %p138 = por %p136, %p137
      %s139 = ssub.s32 %s25, %s37
      %p140 = scmp.eq.s32.totalorder %s139, 0
      %s142 = sadd.s32 %s141, 1
      %s143 = scalar_select %p140, %s141, %s142
      %p146 = pneg %p140
      %p147 = scmp.eq.s32.totalorder %s18, 5
      %p148 = por %p146, %p147
      %p149 = scmp.ne.s32.totalorder %s141, %s144
      %p150 = scmp.eq.s32.totalorder %s18, 0
      %p151 = por %p149, %p150
      %p152 = scmp.ne.s32.totalorder %s141, %s144
      %p153 = scmp.eq.s32.totalorder %s23, 5
      %p154 = por %p152, %p153
      %p155 = scmp.ne.s32.totalorder %s144, %s145
      %p156 = scmp.eq.s32.totalorder %s23, 0
      %p157 = por %p155, %p156
      %p158 = scmp.ne.s32.totalorder %s144, %s145
      %p159 = scmp.eq.s32.totalorder %s24, 5
      %p160 = por %p158, %p159
      %p162 = scmp.ne.s32.totalorder %s145, %s161
      %p163 = scmp.eq.s32.totalorder %s24, 0
      %p164 = por %p162, %p163
      %s165 = ssub.s32 %s25, %s37
      %p166 = scmp.eq.s32.totalorder %s165, 0
      %s168 = sadd.s32 %s167, 1
      %s169 = scalar_select %p166, %s167, %s168
      %p172 = pneg %p166
      %p173 = scmp.eq.s32.totalorder %s18, 5
      %p174 = por %p172, %p173
      %p175 = scmp.ne.s32.totalorder %s167, %s170
      %p176 = scmp.eq.s32.totalorder %s18, 0
      %p177 = por %p175, %p176
      %p178 = scmp.ne.s32.totalorder %s167, %s170
      %p179 = scmp.eq.s32.totalorder %s23, 5
      %p180 = por %p178, %p179
      %p181 = scmp.ne.s32.totalorder %s170, %s171
      %p182 = scmp.eq.s32.totalorder %s23, 0
      %p183 = por %p181, %p182
      %p184 = scmp.ne.s32.totalorder %s170, %s171
      %p185 = scmp.eq.s32.totalorder %s24, 5
      %p186 = por %p184, %p185
      %p188 = scmp.ne.s32.totalorder %s171, %s187
      %p189 = scmp.eq.s32.totalorder %s24, 0
      %p190 = por %p188, %p189
      %p191 = scmp.le.s32.totalorder 1, %s18
      %p192 = scmp.lt.s32.totalorder %s18, 7
      %p193 = pnand %p191, %p192
      %p194 = pneg %p193
      // Predicated region
      $region9: #{up_forward.5} parent=5 // pred_check
        _
      $region10: #{up_forward.5} parent=5 // pred_check_branch
        %196 = sbr.rel (%p193) target = $region12
      $region11: #{up_forward.5} parent=5 // pred_region
        %s197 = ssub.s32 %s18, 1
        // Predicated region
        $region13: #{up_forward.5} parent=11 // pred_check
          %p198 = pneg %p105
        $region14: #{up_forward.5} parent=11 // pred_check_branch
          %200 = sbr.rel (%p198) target = $region16
        $region15: #{up_forward.5} parent=11 // pred_region
          _
        $region16: #{up_forward.5} parent=11 // pred_fallthru
          _
      $region12: #{up_forward.5} parent=5 // pred_fallthru
        _
      %p201 = scmp.lt.s32.totalorder %s18, 6
      // Predicated region
      $region17: #{up_forward.5} parent=5 // pred_check
        %p202 = pneg %p201
      $region18: #{up_forward.5} parent=5 // pred_check_branch
        %204 = sbr.rel (%p202) target = $region20
      $region19: #{up_forward.5} parent=5 // pred_region
        // Predicated region
        $region21: #{up_forward.5} parent=19 // pred_check
          %p205 = pneg %p52
        $region22: #{up_forward.5} parent=19 // pred_check_branch
          %207 = sbr.rel (%p205) target = $region24
        $region23: #{up_forward.5} parent=19 // pred_region
          %s208 = sand.u32 %s42, 1
          %s209 = sand.u32 %s42, 1
          %s210 = smul.addr %s209, 128
          %s211 = scalar_lea.vmem [#allocation3], %s210
          %s212 = smul.u32 32, %s25
          %s213 = smul.addr %s212, 3
          %s214 = sadd.s32 %s26, %s213
          %s215 = smul.addr %s214, 4
          %s216 = scalar_lea.vmem %s0, %s215
          // Predicated region
          $region25: #{up_forward.5} parent=23 // pred_check
            _
          $region26: #{up_forward.5} parent=23 // pred_check_branch
            %218 = sbr.rel (0) target = $region28
          $region27: #{up_forward.5} parent=23 // pred_region
            // Predicated region
            $region29: #{up_forward.5} parent=27 // pred_check
              _
            $region30: #{up_forward.5} parent=27 // pred_check_branch
              %220 = sbr.rel target = $region32
            $region31: #{up_forward.5} parent=27 // pred_region
              // Predicated region
              $region44: #{up_forward.5} parent=31 // pred_check
                _
              $region45: #{up_forward.5} parent=31 // pred_check_branch
                %298 = sbr.rel (0) target = $region47
              $region46: #{up_forward.5} parent=31 // pred_region
                loop: start=0, step=1, limit=1
                $region48: #{up_forward.5} parent=46 // loop_pre_header
                  _
                $region49: #{up_forward.5} parent=46 // loop_header
                  %s300 = sphi 0, %s304
                  %p301 = scmp.ge.s32.totalorder %s300, 1
                  %s305 = sphi %s216, %s216
                  %s306 = sphi %s211, %s211
                $region50: #{up_forward.5} parent=46 // loop_header_branch
                  %303 = sbr.rel (%p301) target = $region54
                $region51: #{up_forward.5} parent=46 // loop_body
                  _
                $region52: #{up_forward.5} parent=46 // loop_footer
                  %s304 = sadd.s32 1, %s300
                $region53: #{up_forward.5} parent=46 // loop_footer_branch
                  %299 = sbr.rel target = $region49
                $region54: #{up_forward.5} parent=46 // loop_exit
                  _
                %s308 = ssub.s32 16, 1
                loop: start=0, step=1, limit=1
                $region55: #{up_forward.5} parent=46 // loop_pre_header
                  _
                $region56: #{up_forward.5} parent=46 // loop_header
                  %s310 = sphi 0, %s314
                  %p311 = scmp.ge.s32.totalorder %s310, 1
                  %s315 = sphi %s216, %s216
                  %s316 = sphi %s211, %s211
                $region57: #{up_forward.5} parent=46 // loop_header_branch
                  %313 = sbr.rel (%p311) target = $region61
                $region58: #{up_forward.5} parent=46 // loop_body
                  %v317 = vld [vmem:[%s315] sm:%s308]
                  %318 = vst [vmem:[%s316] sm:%s308] %v317
                  %v319 = vld [vmem:[%s315 + $0xc] sm:%s308]
                  %320 = vst [vmem:[%s316 + $0x4] sm:%s308] %v319
                  %v321 = vld [vmem:[%s315 + $0x18] sm:%s308]
                  %322 = vst [vmem:[%s316 + $0x8] sm:%s308] %v321
                  %v323 = vld [vmem:[%s315 + $0x24] sm:%s308]
                  %324 = vst [vmem:[%s316 + $0xc] sm:%s308] %v323
                  %v325 = vld [vmem:[%s315 + $0x30] sm:%s308]
                  %326 = vst [vmem:[%s316 + $0x10] sm:%s308] %v325
                  %v327 = vld [vmem:[%s315 + $0x3c] sm:%s308]
                  %328 = vst [vmem:[%s316 + $0x14] sm:%s308] %v327
                  %v329 = vld [vmem:[%s315 + $0x48] sm:%s308]
                  %330 = vst [vmem:[%s316 + $0x18] sm:%s308] %v329
                  %v331 = vld [vmem:[%s315 + $0x54] sm:%s308]
                  %332 = vst [vmem:[%s316 + $0x1c] sm:%s308] %v331
                  %v333 = vld [vmem:[%s315 + $0x60] sm:%s308]
                  %334 = vst [vmem:[%s316 + $0x20] sm:%s308] %v333
                  %v335 = vld [vmem:[%s315 + $0x6c] sm:%s308]
                  %336 = vst [vmem:[%s316 + $0x24] sm:%s308] %v335
                  %v337 = vld [vmem:[%s315 + $0x78] sm:%s308]
                  %338 = vst [vmem:[%s316 + $0x28] sm:%s308] %v337
                  %v339 = vld [vmem:[%s315 + $0x84] sm:%s308]
                  %340 = vst [vmem:[%s316 + $0x2c] sm:%s308] %v339
                  %v341 = vld [vmem:[%s315 + $0x90] sm:%s308]
                  %342 = vst [vmem:[%s316 + $0x30] sm:%s308] %v341
                  %v343 = vld [vmem:[%s315 + $0x9c] sm:%s308]
                  %344 = vst [vmem:[%s316 + $0x34] sm:%s308] %v343
                  %v345 = vld [vmem:[%s315 + $0xa8] sm:%s308]
                  %346 = vst [vmem:[%s316 + $0x38] sm:%s308] %v345
                  %v347 = vld [vmem:[%s315 + $0xb4] sm:%s308]
                  %348 = vst [vmem:[%s316 + $0x3c] sm:%s308] %v347
                  %v349 = vld [vmem:[%s315 + $0xc0] sm:%s308]
                  %350 = vst [vmem:[%s316 + $0x40] sm:%s308] %v349
                  %v351 = vld [vmem:[%s315 + $0xcc] sm:%s308]
                  %352 = vst [vmem:[%s316 + $0x44] sm:%s308] %v351
                  %v353 = vld [vmem:[%s315 + $0xd8] sm:%s308]
                  %354 = vst [vmem:[%s316 + $0x48] sm:%s308] %v353
                  %v355 = vld [vmem:[%s315 + $0xe4] sm:%s308]
                  %356 = vst [vmem:[%s316 + $0x4c] sm:%s308] %v355
                  %v357 = vld [vmem:[%s315 + $0xf0] sm:%s308]
                  %358 = vst [vmem:[%s316 + $0x50] sm:%s308] %v357
                  %v359 = vld [vmem:[%s315 + $0xfc] sm:%s308]
                  %360 = vst [vmem:[%s316 + $0x54] sm:%s308] %v359
                  %v361 = vld [vmem:[%s315 + $0x108] sm:%s308]
                  %362 = vst [vmem:[%s316 + $0x58] sm:%s308] %v361
                  %v363 = vld [vmem:[%s315 + $0x114] sm:%s308]
                  %364 = vst [vmem:[%s316 + $0x5c] sm:%s308] %v363
                  %v365 = vld [vmem:[%s315 + $0x120] sm:%s308]
                  %366 = vst [vmem:[%s316 + $0x60] sm:%s308] %v365
                  %v367 = vld [vmem:[%s315 + $0x12c] sm:%s308]
                  %368 = vst [vmem:[%s316 + $0x64] sm:%s308] %v367
                  %v369 = vld [vmem:[%s315 + $0x138] sm:%s308]
                  %370 = vst [vmem:[%s316 + $0x68] sm:%s308] %v369
                  %v371 = vld [vmem:[%s315 + $0x144] sm:%s308]
                  %372 = vst [vmem:[%s316 + $0x6c] sm:%s308] %v371
                  %v373 = vld [vmem:[%s315 + $0x150] sm:%s308]
                  %374 = vst [vmem:[%s316 + $0x70] sm:%s308] %v373
                  %v375 = vld [vmem:[%s315 + $0x15c] sm:%s308]
                  %376 = vst [vmem:[%s316 + $0x74] sm:%s308] %v375
                  %v377 = vld [vmem:[%s315 + $0x168] sm:%s308]
                  %378 = vst [vmem:[%s316 + $0x78] sm:%s308] %v377
                  %v379 = vld [vmem:[%s315 + $0x174] sm:%s308]
                  %380 = vst [vmem:[%s316 + $0x7c] sm:%s308] %v379
                $region59: #{up_forward.5} parent=46 // loop_footer
                  %s314 = sadd.s32 1, %s310
                $region60: #{up_forward.5} parent=46 // loop_footer_branch
                  %309 = sbr.rel target = $region56
                $region61: #{up_forward.5} parent=46 // loop_exit
                  _
              $region47: #{up_forward.5} parent=31 // pred_fallthru
                _
            $region32: #{up_forward.5} parent=27 // pred_fallthru
              _
            // Predicated region
            $region33: #{up_forward.5} parent=27 // pred_check
              _
            $region34: #{up_forward.5} parent=27 // pred_check_branch
              %222 = sbr.rel (0) target = $region36
            $region35: #{up_forward.5} parent=27 // pred_region
              %s224 = ssub.s32 16, 1
              loop: start=0, step=1, limit=1
              $region37: #{up_forward.5} parent=35 // loop_pre_header
                _
              $region38: #{up_forward.5} parent=35 // loop_header
                %s226 = sphi 0, %s230
                %p227 = scmp.ge.s32.totalorder %s226, 1
                %s231 = sphi %s216, %s216
                %s232 = sphi %s211, %s211
              $region39: #{up_forward.5} parent=35 // loop_header_branch
                %229 = sbr.rel (%p227) target = $region43
              $region40: #{up_forward.5} parent=35 // loop_body
                %v233 = vld [vmem:[%s231] sm:%s224]
                %234 = vst [vmem:[%s232] sm:%s224] %v233
                %v235 = vld [vmem:[%s231 + $0xc] sm:%s224]
                %236 = vst [vmem:[%s232 + $0x4] sm:%s224] %v235
                %v237 = vld [vmem:[%s231 + $0x18] sm:%s224]
                %238 = vst [vmem:[%s232 + $0x8] sm:%s224] %v237
                %v239 = vld [vmem:[%s231 + $0x24] sm:%s224]
                %240 = vst [vmem:[%s232 + $0xc] sm:%s224] %v239
                %v241 = vld [vmem:[%s231 + $0x30] sm:%s224]
                %242 = vst [vmem:[%s232 + $0x10] sm:%s224] %v241
                %v243 = vld [vmem:[%s231 + $0x3c] sm:%s224]
                %244 = vst [vmem:[%s232 + $0x14] sm:%s224] %v243
                %v245 = vld [vmem:[%s231 + $0x48] sm:%s224]
                %246 = vst [vmem:[%s232 + $0x18] sm:%s224] %v245
                %v247 = vld [vmem:[%s231 + $0x54] sm:%s224]
                %248 = vst [vmem:[%s232 + $0x1c] sm:%s224] %v247
                %v249 = vld [vmem:[%s231 + $0x60] sm:%s224]
                %250 = vst [vmem:[%s232 + $0x20] sm:%s224] %v249
                %v251 = vld [vmem:[%s231 + $0x6c] sm:%s224]
                %252 = vst [vmem:[%s232 + $0x24] sm:%s224] %v251
                %v253 = vld [vmem:[%s231 + $0x78] sm:%s224]
                %254 = vst [vmem:[%s232 + $0x28] sm:%s224] %v253
                %v255 = vld [vmem:[%s231 + $0x84] sm:%s224]
                %256 = vst [vmem:[%s232 + $0x2c] sm:%s224] %v255
                %v257 = vld [vmem:[%s231 + $0x90] sm:%s224]
                %258 = vst [vmem:[%s232 + $0x30] sm:%s224] %v257
                %v259 = vld [vmem:[%s231 + $0x9c] sm:%s224]
                %260 = vst [vmem:[%s232 + $0x34] sm:%s224] %v259
                %v261 = vld [vmem:[%s231 + $0xa8] sm:%s224]
                %262 = vst [vmem:[%s232 + $0x38] sm:%s224] %v261
                %v263 = vld [vmem:[%s231 + $0xb4] sm:%s224]
                %264 = vst [vmem:[%s232 + $0x3c] sm:%s224] %v263
                %v265 = vld [vmem:[%s231 + $0xc0] sm:%s224]
                %266 = vst [vmem:[%s232 + $0x40] sm:%s224] %v265
                %v267 = vld [vmem:[%s231 + $0xcc] sm:%s224]
                %268 = vst [vmem:[%s232 + $0x44] sm:%s224] %v267
                %v269 = vld [vmem:[%s231 + $0xd8] sm:%s224]
                %270 = vst [vmem:[%s232 + $0x48] sm:%s224] %v269
                %v271 = vld [vmem:[%s231 + $0xe4] sm:%s224]
                %272 = vst [vmem:[%s232 + $0x4c] sm:%s224] %v271
                %v273 = vld [vmem:[%s231 + $0xf0] sm:%s224]
                %274 = vst [vmem:[%s232 + $0x50] sm:%s224] %v273
                %v275 = vld [vmem:[%s231 + $0xfc] sm:%s224]
                %276 = vst [vmem:[%s232 + $0x54] sm:%s224] %v275
                %v277 = vld [vmem:[%s231 + $0x108] sm:%s224]
                %278 = vst [vmem:[%s232 + $0x58] sm:%s224] %v277
                %v279 = vld [vmem:[%s231 + $0x114] sm:%s224]
                %280 = vst [vmem:[%s232 + $0x5c] sm:%s224] %v279
                %v281 = vld [vmem:[%s231 + $0x120] sm:%s224]
                %282 = vst [vmem:[%s232 + $0x60] sm:%s224] %v281
                %v283 = vld [vmem:[%s231 + $0x12c] sm:%s224]
                %284 = vst [vmem:[%s232 + $0x64] sm:%s224] %v283
                %v285 = vld [vmem:[%s231 + $0x138] sm:%s224]
                %286 = vst [vmem:[%s232 + $0x68] sm:%s224] %v285
                %v287 = vld [vmem:[%s231 + $0x144] sm:%s224]
                %288 = vst [vmem:[%s232 + $0x6c] sm:%s224] %v287
                %v289 = vld [vmem:[%s231 + $0x150] sm:%s224]
                %290 = vst [vmem:[%s232 + $0x70] sm:%s224] %v289
                %v291 = vld [vmem:[%s231 + $0x15c] sm:%s224]
                %292 = vst [vmem:[%s232 + $0x74] sm:%s224] %v291
                %v293 = vld [vmem:[%s231 + $0x168] sm:%s224]
                %294 = vst [vmem:[%s232 + $0x78] sm:%s224] %v293
                %v295 = vld [vmem:[%s231 + $0x174] sm:%s224]
                %296 = vst [vmem:[%s232 + $0x7c] sm:%s224] %v295
              $region41: #{up_forward.5} parent=35 // loop_footer
                %s230 = sadd.s32 1, %s226
              $region42: #{up_forward.5} parent=35 // loop_footer_branch
                %225 = sbr.rel target = $region38
              $region43: #{up_forward.5} parent=35 // loop_exit
                _
            $region36: #{up_forward.5} parent=27 // pred_fallthru
              _
          $region28: #{up_forward.5} parent=23 // pred_fallthru
            _
          %381 = vnop
        $region24: #{up_forward.5} parent=19 // pred_fallthru
          _
        // Predicated region
        $region62: #{up_forward.5} parent=19 // pred_check
          %p382 = pneg %p78
        $region63: #{up_forward.5} parent=19 // pred_check_branch
          %384 = sbr.rel (%p382) target = $region65
        $region64: #{up_forward.5} parent=19 // pred_region
          %s385 = smul.u32 16, %s26
          %p386 = scmp.lt.s32.totalorder %s385, 47
          %s387 = scalar_select %p386, %s385, 47
          %s388 = smul.addr %s387, 4
          %s389 = scalar_lea.vmem %s1, %s388
          %s390 = smul.u32 16, %s26
        $region65: #{up_forward.5} parent=19 // pred_fallthru
          _
      $region20: #{up_forward.5} parent=5 // pred_fallthru
        _
      %p391 = scmp.le.s32.totalorder 1, %s18
      %p392 = scmp.lt.s32.totalorder %s18, 7
      %p393 = pnand %p391, %p392
      %p394 = pneg %p393
      // Predicated region
      $region66: #{up_forward.5} parent=5 // pred_check
        _
      $region67: #{up_forward.5} parent=5 // pred_check_branch
        %396 = sbr.rel (%p393) target = $region69
      $region68: #{up_forward.5} parent=5 // pred_region
        %s397 = ssub.s32 %s18, 1
        %s398 = sand.u32 %s45, 1
        %s399 = sand.u32 %s45, 1
        %s400 = smul.addr %s399, 128
        %s401 = scalar_lea.vmem [#allocation3], %s400
        // Predicated region
        $region70: #{up_forward.5} parent=68 // pred_check
          %p402 = pneg %p58
        $region71: #{up_forward.5} parent=68 // pred_check_branch
          %404 = sbr.rel (%p402) target = $region73
        $region72: #{up_forward.5} parent=68 // pred_region
          _
        $region73: #{up_forward.5} parent=68 // pred_fallthru
          _
        %s405 = sand.u32 %s45, 1
        %s406 = sand.u32 %s45, 1
        %s407 = smul.addr %s406, 128
        %s408 = scalar_lea.vmem [#allocation3], %s407
        %p409 = pneg %p58
        %p410 = pneg %p55
        %s411 = smul.u32 16, %s28
        %p412 = scmp.lt.s32.totalorder %s411, 47
        %s413 = scalar_select %p412, %s411, 47
        %s414 = smul.addr %s413, 4
        %s415 = scalar_lea.vmem %s1, %s414
        %p416 = pneg %p84
        %p417 = pneg %p81
        %p418 = pneg %p105
        %p419 = pneg %p102
        %p420 = pneg %p131
        %p421 = pneg %p128
        %s422 = smul.u32 32, %s27
        %p423 = scmp.lt.s32.totalorder %s422, 63
        %s424 = scalar_select %p423, %s422, 63
        %s425 = smul.addr %s424, 4
        %s426 = scalar_lea.vmem %s3, %s425
        %p427 = pneg %p157
        %p428 = pneg %p154
        %s429 = sand.u32 %s144, 1
        %s430 = scalar_lea.sflag [#allocation5], %s429
        %s431 = sand.u32 %s144, 1
        %s432 = smul.addr %s431, 8
        %s433 = scalar_lea.vmem [#allocation4], %s432
        %p434 = pneg %p183
        %p435 = pneg %p180
        %s436 = sand.u32 %s170, 1
        %s437 = scalar_lea.sflag [#allocation7], %s436
        %s438 = sand.u32 %s170, 1
        %s439 = smul.addr %s438, 8
        %s440 = scalar_lea.vmem [#allocation6], %s439
        %s441 = smul.u32 32, %s27
        %s442 = smul.u32 16, %s28
        %p443 = scmp.lt.s32.totalorder %s442, 47
        %s444 = scalar_select %p443, %s442, 47
        %s445 = smul.addr %s444, 4
        %s446 = scalar_lea.vmem %s1, %s445
        %s447 = smul.u32 16, %s28
        %s448 = smul.u32 32, %s27
        %p449 = scmp.lt.s32.totalorder %s448, 63
        %s450 = scalar_select %p449, %s448, 63
        %s451 = smul.addr %s450, 4
        %s452 = scalar_lea.vmem %s3, %s451
        %s453 = smul.u32 32, %s27
        %p454 = scmp.eq.s32.totalorder %s28, 0
        // Predicated region
        $region74: #{up_forward.5} parent=68 // pred_check
          %p455 = pneg %p454
        $region75: #{up_forward.5} parent=68 // pred_check_branch
          %457 = sbr.rel (%p455) target = $region77
        $region76: #{up_forward.5} parent=68 // pred_region
          %458 = vst [vmem:[#allocation2] sm:$0xff] 0.0
          %459 = vst [vmem:[#allocation2 + $0x8] sm:$0xff] 0.0
          %460 = vst [vmem:[#allocation2 + $0x10] sm:$0xff] 0.0
          %461 = vst [vmem:[#allocation2 + $0x18] sm:$0xff] 0.0
          %462 = vst [vmem:[#allocation2 + $0x20] sm:$0xff] 0.0
          %463 = vst [vmem:[#allocation2 + $0x28] sm:$0xff] 0.0
          %464 = vst [vmem:[#allocation2 + $0x30] sm:$0xff] 0.0
          %465 = vst [vmem:[#allocation2 + $0x38] sm:$0xff] 0.0
          %466 = vst [vmem:[#allocation2 + $0x40] sm:$0xff] 0.0
          %467 = vst [vmem:[#allocation2 + $0x48] sm:$0xff] 0.0
          %468 = vst [vmem:[#allocation2 + $0x50] sm:$0xff] 0.0
          %469 = vst [vmem:[#allocation2 + $0x58] sm:$0xff] 0.0
          %470 = vst [vmem:[#allocation2 + $0x60] sm:$0xff] 0.0
          %471 = vst [vmem:[#allocation2 + $0x68] sm:$0xff] 0.0
          %472 = vst [vmem:[#allocation2 + $0x70] sm:$0xff] 0.0
          %473 = vst [vmem:[#allocation2 + $0x78] sm:$0xff] 0.0
          %474 = vst [vmem:[#allocation2 + $0x80] sm:$0xff] 0.0
          %475 = vst [vmem:[#allocation2 + $0x88] sm:$0xff] 0.0
          %476 = vst [vmem:[#allocation2 + $0x90] sm:$0xff] 0.0
          %477 = vst [vmem:[#allocation2 + $0x98] sm:$0xff] 0.0
          %478 = vst [vmem:[#allocation2 + $0xa0] sm:$0xff] 0.0
          %479 = vst [vmem:[#allocation2 + $0xa8] sm:$0xff] 0.0
          %480 = vst [vmem:[#allocation2 + $0xb0] sm:$0xff] 0.0
          %481 = vst [vmem:[#allocation2 + $0xb8] sm:$0xff] 0.0
          %482 = vst [vmem:[#allocation2 + $0xc0] sm:$0xff] 0.0
          %483 = vst [vmem:[#allocation2 + $0xc8] sm:$0xff] 0.0
          %484 = vst [vmem:[#allocation2 + $0xd0] sm:$0xff] 0.0
          %485 = vst [vmem:[#allocation2 + $0xd8] sm:$0xff] 0.0
          %486 = vst [vmem:[#allocation2 + $0xe0] sm:$0xff] 0.0
          %487 = vst [vmem:[#allocation2 + $0xe8] sm:$0xff] 0.0
          %488 = vst [vmem:[#allocation2 + $0xf0] sm:$0xff] 0.0
          %489 = vst [vmem:[#allocation2 + $0xf8] sm:$0xff] 0.0
        $region77: #{up_forward.5} parent=68 // pred_fallthru
          _
        %v490 = vld [vmem:[#allocation2] sm:$0xff]
        %v491 = vld [vmem:[#allocation2 + $0x8] sm:$0xff]
        %v492 = vld [vmem:[#allocation2 + $0x10] sm:$0xff]
        %v493 = vld [vmem:[#allocation2 + $0x18] sm:$0xff]
        %v494 = vld [vmem:[#allocation2 + $0x20] sm:$0xff]
        %v495 = vld [vmem:[#allocation2 + $0x28] sm:$0xff]
        %v496 = vld [vmem:[#allocation2 + $0x30] sm:$0xff]
        %v497 = vld [vmem:[#allocation2 + $0x38] sm:$0xff]
        %v498 = vld [vmem:[#allocation2 + $0x40] sm:$0xff]
        %v499 = vld [vmem:[#allocation2 + $0x48] sm:$0xff]
        %v500 = vld [vmem:[#allocation2 + $0x50] sm:$0xff]
        %v501 = vld [vmem:[#allocation2 + $0x58] sm:$0xff]
        %v502 = vld [vmem:[#allocation2 + $0x60] sm:$0xff]
        %v503 = vld [vmem:[#allocation2 + $0x68] sm:$0xff]
        %v504 = vld [vmem:[#allocation2 + $0x70] sm:$0xff]
        %v505 = vld [vmem:[#allocation2 + $0x78] sm:$0xff]
        %v506 = vld [vmem:[#allocation2 + $0x80] sm:$0xff]
        %v507 = vld [vmem:[#allocation2 + $0x88] sm:$0xff]
        %v508 = vld [vmem:[#allocation2 + $0x90] sm:$0xff]
        %v509 = vld [vmem:[#allocation2 + $0x98] sm:$0xff]
        %v510 = vld [vmem:[#allocation2 + $0xa0] sm:$0xff]
        %v511 = vld [vmem:[#allocation2 + $0xa8] sm:$0xff]
        %v512 = vld [vmem:[#allocation2 + $0xb0] sm:$0xff]
        %v513 = vld [vmem:[#allocation2 + $0xb8] sm:$0xff]
        %v514 = vld [vmem:[#allocation2 + $0xc0] sm:$0xff]
        %v515 = vld [vmem:[#allocation2 + $0xc8] sm:$0xff]
        %v516 = vld [vmem:[#allocation2 + $0xd0] sm:$0xff]
        %v517 = vld [vmem:[#allocation2 + $0xd8] sm:$0xff]
        %v518 = vld [vmem:[#allocation2 + $0xe0] sm:$0xff]
        %v519 = vld [vmem:[#allocation2 + $0xe8] sm:$0xff]
        %v520 = vld [vmem:[#allocation2 + $0xf0] sm:$0xff]
        %v521 = vld [vmem:[#allocation2 + $0xf8] sm:$0xff]
        %v522 = vld [vmem:[%s401] sm:$0xf]
        %v523 = vld [vmem:[%s401 + $0x4] sm:$0xf]
        %v524 = vld [vmem:[%s401 + $0x8] sm:$0xf]
        %v525 = vld [vmem:[%s401 + $0xc] sm:$0xf]
        %v526 = vld [vmem:[%s401 + $0x10] sm:$0xf]
        %v527 = vld [vmem:[%s401 + $0x14] sm:$0xf]
        %v528 = vld [vmem:[%s401 + $0x18] sm:$0xf]
        %v529 = vld [vmem:[%s401 + $0x1c] sm:$0xf]
        %v530 = vld [vmem:[%s401 + $0x20] sm:$0xf]
        %v531 = vld [vmem:[%s401 + $0x24] sm:$0xf]
        %v532 = vld [vmem:[%s401 + $0x28] sm:$0xf]
        %v533 = vld [vmem:[%s401 + $0x2c] sm:$0xf]
        %v534 = vld [vmem:[%s401 + $0x30] sm:$0xf]
        %v535 = vld [vmem:[%s401 + $0x34] sm:$0xf]
        %v536 = vld [vmem:[%s401 + $0x38] sm:$0xf]
        %v537 = vld [vmem:[%s401 + $0x3c] sm:$0xf]
        %v538 = vld [vmem:[%s401 + $0x40] sm:$0xf]
        %v539 = vld [vmem:[%s401 + $0x44] sm:$0xf]
        %v540 = vld [vmem:[%s401 + $0x48] sm:$0xf]
        %v541 = vld [vmem:[%s401 + $0x4c] sm:$0xf]
        %v542 = vld [vmem:[%s401 + $0x50] sm:$0xf]
        %v543 = vld [vmem:[%s401 + $0x54] sm:$0xf]
        %v544 = vld [vmem:[%s401 + $0x58] sm:$0xf]
        %v545 = vld [vmem:[%s401 + $0x5c] sm:$0xf]
        %v546 = vld [vmem:[%s401 + $0x60] sm:$0xf]
        %v547 = vld [vmem:[%s401 + $0x64] sm:$0xf]
        %v548 = vld [vmem:[%s401 + $0x68] sm:$0xf]
        %v549 = vld [vmem:[%s401 + $0x6c] sm:$0xf]
        %v550 = vld [vmem:[%s401 + $0x70] sm:$0xf]
        %v551 = vld [vmem:[%s401 + $0x74] sm:$0xf]
        %v552 = vld [vmem:[%s401 + $0x78] sm:$0xf]
        %v553 = vld [vmem:[%s401 + $0x7c] sm:$0xf]
        %v554 = vld [vmem:[%s446] sm:$0xf]
        %v555 = vld [vmem:[%s446 + $0x4] sm:$0xf]
        %v556 = vld [vmem:[%s446 + $0x8] sm:$0xf]
        %v557 = vld [vmem:[%s446 + $0xc] sm:$0xf]
        %v558 = vld [vmem:[%s446 + $0x10] sm:$0xf]
        %v559 = vld [vmem:[%s446 + $0x14] sm:$0xf]
        %v560 = vld [vmem:[%s446 + $0x18] sm:$0xf]
        %v561 = vld [vmem:[%s446 + $0x1c] sm:$0xf]
        %v562 = vld [vmem:[%s446 + $0x20] sm:$0xf]
        %v563 = vld [vmem:[%s446 + $0x24] sm:$0xf]
        %v564 = vld [vmem:[%s446 + $0x28] sm:$0xf]
        %v565 = vld [vmem:[%s446 + $0x2c] sm:$0xf]
        %v566 = vld [vmem:[%s446 + $0x30] sm:$0xf]
        %v567 = vld [vmem:[%s446 + $0x34] sm:$0xf]
        %v568 = vld [vmem:[%s446 + $0x38] sm:$0xf]
        %v569 = vld [vmem:[%s446 + $0x3c] sm:$0xf]
        %v602 = vunpack.c.l.b16 %v522
        %v603 = vunpack.c.l.b16 %v523
        %v604 = vunpack.c.l.b16 %v524
        %v605 = vunpack.c.l.b16 %v525
        %v606 = vunpack.c.l.b16 %v526
        %v607 = vunpack.c.l.b16 %v527
        %v608 = vunpack.c.l.b16 %v528
        %v609 = vunpack.c.l.b16 %v529
        %v610 = vunpack.c.l.b16 %v530
        %v611 = vunpack.c.l.b16 %v531
        %v612 = vunpack.c.l.b16 %v532
        %v613 = vunpack.c.l.b16 %v533
        %v614 = vunpack.c.l.b16 %v534
        %v615 = vunpack.c.l.b16 %v535
        %v616 = vunpack.c.l.b16 %v536
        %v617 = vunpack.c.l.b16 %v537
        %v618 = vunpack.c.l.b16 %v538
        %v619 = vunpack.c.l.b16 %v539
        %v620 = vunpack.c.l.b16 %v540
        %v621 = vunpack.c.l.b16 %v541
        %v622 = vunpack.c.l.b16 %v542
        %v623 = vunpack.c.l.b16 %v543
        %v624 = vunpack.c.l.b16 %v544
        %v625 = vunpack.c.l.b16 %v545
        %v626 = vunpack.c.l.b16 %v546
        %v627 = vunpack.c.l.b16 %v547
        %v628 = vunpack.c.l.b16 %v548
        %v629 = vunpack.c.l.b16 %v549
        %v630 = vunpack.c.l.b16 %v550
        %v631 = vunpack.c.l.b16 %v551
        %v632 = vunpack.c.l.b16 %v552
        %v633 = vunpack.c.l.b16 %v553
        %v634 = vpack.c.b16 %v603, %v602
        %v635 = vpack.c.b16 %v605, %v604
        %v636 = vpack.c.b16 %v607, %v606
        %v637 = vpack.c.b16 %v609, %v608
        %v638 = vpack.c.b16 %v611, %v610
        %v639 = vpack.c.b16 %v613, %v612
        %v640 = vpack.c.b16 %v615, %v614
        %v641 = vpack.c.b16 %v617, %v616
        %v642 = vpack.c.b16 %v619, %v618
        %v643 = vpack.c.b16 %v621, %v620
        %v644 = vpack.c.b16 %v623, %v622
        %v645 = vpack.c.b16 %v625, %v624
        %v646 = vpack.c.b16 %v627, %v626
        %v647 = vpack.c.b16 %v629, %v628
        %v648 = vpack.c.b16 %v631, %v630
        %v649 = vpack.c.b16 %v633, %v632
        %v682 = vunpack.c.l.b16 %v554
        %v683 = vunpack.c.l.b16 %v555
        %v684 = vunpack.c.l.b16 %v556
        %v685 = vunpack.c.l.b16 %v557
        %v686 = vunpack.c.l.b16 %v558
        %v687 = vunpack.c.l.b16 %v559
        %v688 = vunpack.c.l.b16 %v560
        %v689 = vunpack.c.l.b16 %v561
        %v690 = vunpack.c.l.b16 %v562
        %v691 = vunpack.c.l.b16 %v563
        %v692 = vunpack.c.l.b16 %v564
        %v693 = vunpack.c.l.b16 %v565
        %v694 = vunpack.c.l.b16 %v566
        %v695 = vunpack.c.l.b16 %v567
        %v696 = vunpack.c.l.b16 %v568
        %v697 = vunpack.c.l.b16 %v569
        %v698 = vpack.c.b16 %v683, %v682
        %v699 = vpack.c.b16 %v685, %v684
        %v700 = vpack.c.b16 %v687, %v686
        %v701 = vpack.c.b16 %v689, %v688
        %v702 = vpack.c.b16 %v691, %v690
        %v703 = vpack.c.b16 %v693, %v692
        %v704 = vpack.c.b16 %v695, %v694
        %v705 = vpack.c.b16 %v697, %v696
        %714 = vmatpush.bf16.msra.mxu0 %v705
        %715 = vmatpush.bf16.msra.mxu0 %v704
        %716 = vmatpush.bf16.msra.mxu0 %v703
        %717 = vmatpush.bf16.msra.mxu0 %v702
        %718 = vmatpush.bf16.msra.mxu0 %v701
        %719 = vmatpush.bf16.msra.mxu0 %v700
        %720 = vmatpush.bf16.msra.mxu0 %v699
        %721 = vmatpush.bf16.msra.mxu0 %v698
        %722 = vmatmul.bf16.gmra.mxu0 %v634
        %v723 = vpop.f32.mrf.mxu0
        %v724 = vadd.f32 0.0, %v723
        %v725 = vpop.f32.mrf.mxu0
        %v726 = vadd.f32 0.0, %v725
        %727 = vmatmul.bf16.gmra.mxu0 %v635
        %v728 = vpop.f32.mrf.mxu0
        %v729 = vadd.f32 0.0, %v728
        %v730 = vpop.f32.mrf.mxu0
        %v731 = vadd.f32 0.0, %v730
        %732 = vmatmul.bf16.gmra.mxu0 %v636
        %v733 = vpop.f32.mrf.mxu0
        %v734 = vadd.f32 0.0, %v733
        %v735 = vpop.f32.mrf.mxu0
        %v736 = vadd.f32 0.0, %v735
        %737 = vmatmul.bf16.gmra.mxu0 %v637
        %v738 = vpop.f32.mrf.mxu0
        %v739 = vadd.f32 0.0, %v738
        %v740 = vpop.f32.mrf.mxu0
        %v741 = vadd.f32 0.0, %v740
        %742 = vmatmul.bf16.gmra.mxu0 %v638
        %v743 = vpop.f32.mrf.mxu0
        %v744 = vadd.f32 0.0, %v743
        %v745 = vpop.f32.mrf.mxu0
        %v746 = vadd.f32 0.0, %v745
        %747 = vmatmul.bf16.gmra.mxu0 %v639
        %v748 = vpop.f32.mrf.mxu0
        %v749 = vadd.f32 0.0, %v748
        %v750 = vpop.f32.mrf.mxu0
        %v751 = vadd.f32 0.0, %v750
        %752 = vmatmul.bf16.gmra.mxu0 %v640
        %v753 = vpop.f32.mrf.mxu0
        %v754 = vadd.f32 0.0, %v753
        %v755 = vpop.f32.mrf.mxu0
        %v756 = vadd.f32 0.0, %v755
        %757 = vmatmul.bf16.gmra.mxu0 %v641
        %v758 = vpop.f32.mrf.mxu0
        %v759 = vadd.f32 0.0, %v758
        %v760 = vpop.f32.mrf.mxu0
        %v761 = vadd.f32 0.0, %v760
        %762 = vmatmul.bf16.gmra.mxu0 %v642
        %v763 = vpop.f32.mrf.mxu0
        %v764 = vadd.f32 0.0, %v763
        %v765 = vpop.f32.mrf.mxu0
        %v766 = vadd.f32 0.0, %v765
        %767 = vmatmul.bf16.gmra.mxu0 %v643
        %v768 = vpop.f32.mrf.mxu0
        %v769 = vadd.f32 0.0, %v768
        %v770 = vpop.f32.mrf.mxu0
        %v771 = vadd.f32 0.0, %v770
        %772 = vmatmul.bf16.gmra.mxu0 %v644
        %v773 = vpop.f32.mrf.mxu0
        %v774 = vadd.f32 0.0, %v773
        %v775 = vpop.f32.mrf.mxu0
        %v776 = vadd.f32 0.0, %v775
        %777 = vmatmul.bf16.gmra.mxu0 %v645
        %v778 = vpop.f32.mrf.mxu0
        %v779 = vadd.f32 0.0, %v778
        %v780 = vpop.f32.mrf.mxu0
        %v781 = vadd.f32 0.0, %v780
        %782 = vmatmul.bf16.gmra.mxu0 %v646
        %v783 = vpop.f32.mrf.mxu0
        %v784 = vadd.f32 0.0, %v783
        %v785 = vpop.f32.mrf.mxu0
        %v786 = vadd.f32 0.0, %v785
        %787 = vmatmul.bf16.gmra.mxu0 %v647
        %v788 = vpop.f32.mrf.mxu0
        %v789 = vadd.f32 0.0, %v788
        %v790 = vpop.f32.mrf.mxu0
        %v791 = vadd.f32 0.0, %v790
        %792 = vmatmul.bf16.gmra.mxu0 %v648
        %v793 = vpop.f32.mrf.mxu0
        %v794 = vadd.f32 0.0, %v793
        %v795 = vpop.f32.mrf.mxu0
        %v796 = vadd.f32 0.0, %v795
        %797 = vmatmul.bf16.gmra.mxu0 %v649
        %v798 = vpop.f32.mrf.mxu0
        %v799 = vadd.f32 0.0, %v798
        %v800 = vpop.f32.mrf.mxu0
        %v801 = vadd.f32 0.0, %v800
        %802 = vdwg.mxu0
        %v803 = vadd.f32 %v490, %v724
        %v804 = vadd.f32 %v491, %v726
        %v805 = vadd.f32 %v492, %v729
        %v806 = vadd.f32 %v493, %v731
        %v807 = vadd.f32 %v494, %v734
        %v808 = vadd.f32 %v495, %v736
        %v809 = vadd.f32 %v496, %v739
        %v810 = vadd.f32 %v497, %v741
        %v811 = vadd.f32 %v498, %v744
        %v812 = vadd.f32 %v499, %v746
        %v813 = vadd.f32 %v500, %v749
        %v814 = vadd.f32 %v501, %v751
        %v815 = vadd.f32 %v502, %v754
        %v816 = vadd.f32 %v503, %v756
        %v817 = vadd.f32 %v504, %v759
        %v818 = vadd.f32 %v505, %v761
        %v819 = vadd.f32 %v506, %v764
        %v820 = vadd.f32 %v507, %v766
        %v821 = vadd.f32 %v508, %v769
        %v822 = vadd.f32 %v509, %v771
        %v823 = vadd.f32 %v510, %v774
        %v824 = vadd.f32 %v511, %v776
        %v825 = vadd.f32 %v512, %v779
        %v826 = vadd.f32 %v513, %v781
        %v827 = vadd.f32 %v514, %v784
        %v828 = vadd.f32 %v515, %v786
        %v829 = vadd.f32 %v516, %v789
        %v830 = vadd.f32 %v517, %v791
        %v831 = vadd.f32 %v518, %v794
        %v832 = vadd.f32 %v519, %v796
        %v833 = vadd.f32 %v520, %v799
        %v834 = vadd.f32 %v521, %v801
        %835 = vst [vmem:[#allocation2] sm:$0xff] %v803
        %836 = vst [vmem:[#allocation2 + $0x8] sm:$0xff] %v804
        %837 = vst [vmem:[#allocation2 + $0x10] sm:$0xff] %v805
        %838 = vst [vmem:[#allocation2 + $0x18] sm:$0xff] %v806
        %839 = vst [vmem:[#allocation2 + $0x20] sm:$0xff] %v807
        %840 = vst [vmem:[#allocation2 + $0x28] sm:$0xff] %v808
        %841 = vst [vmem:[#allocation2 + $0x30] sm:$0xff] %v809
        %842 = vst [vmem:[#allocation2 + $0x38] sm:$0xff] %v810
        %843 = vst [vmem:[#allocation2 + $0x40] sm:$0xff] %v811
        %844 = vst [vmem:[#allocation2 + $0x48] sm:$0xff] %v812
        %845 = vst [vmem:[#allocation2 + $0x50] sm:$0xff] %v813
        %846 = vst [vmem:[#allocation2 + $0x58] sm:$0xff] %v814
        %847 = vst [vmem:[#allocation2 + $0x60] sm:$0xff] %v815
        %848 = vst [vmem:[#allocation2 + $0x68] sm:$0xff] %v816
        %849 = vst [vmem:[#allocation2 + $0x70] sm:$0xff] %v817
        %850 = vst [vmem:[#allocation2 + $0x78] sm:$0xff] %v818
        %851 = vst [vmem:[#allocation2 + $0x80] sm:$0xff] %v819
        %852 = vst [vmem:[#allocation2 + $0x88] sm:$0xff] %v820
        %853 = vst [vmem:[#allocation2 + $0x90] sm:$0xff] %v821
        %854 = vst [vmem:[#allocation2 + $0x98] sm:$0xff] %v822
        %855 = vst [vmem:[#allocation2 + $0xa0] sm:$0xff] %v823
        %856 = vst [vmem:[#allocation2 + $0xa8] sm:$0xff] %v824
        %857 = vst [vmem:[#allocation2 + $0xb0] sm:$0xff] %v825
        %858 = vst [vmem:[#allocation2 + $0xb8] sm:$0xff] %v826
        %859 = vst [vmem:[#allocation2 + $0xc0] sm:$0xff] %v827
        %860 = vst [vmem:[#allocation2 + $0xc8] sm:$0xff] %v828
        %861 = vst [vmem:[#allocation2 + $0xd0] sm:$0xff] %v829
        %862 = vst [vmem:[#allocation2 + $0xd8] sm:$0xff] %v830
        %863 = vst [vmem:[#allocation2 + $0xe0] sm:$0xff] %v831
        %864 = vst [vmem:[#allocation2 + $0xe8] sm:$0xff] %v832
        %865 = vst [vmem:[#allocation2 + $0xf0] sm:$0xff] %v833
        %866 = vst [vmem:[#allocation2 + $0xf8] sm:$0xff] %v834
        %p867 = scmp.eq.s32.totalorder %s28, 2
        // Predicated region
        $region78: #{up_forward.5} parent=68 // pred_check
          %p868 = pneg %p867
        $region79: #{up_forward.5} parent=68 // pred_check_branch
          %870 = sbr.rel (%p868) target = $region81
        $region80: #{up_forward.5} parent=68 // pred_region
          %v871 = vld [vmem:[#allocation2] sm:$0xff]
          %v872 = vld [vmem:[#allocation2 + $0x8] sm:$0xff]
          %v873 = vld [vmem:[#allocation2 + $0x10] sm:$0xff]
          %v874 = vld [vmem:[#allocation2 + $0x18] sm:$0xff]
          %v875 = vld [vmem:[#allocation2 + $0x20] sm:$0xff]
          %v876 = vld [vmem:[#allocation2 + $0x28] sm:$0xff]
          %v877 = vld [vmem:[#allocation2 + $0x30] sm:$0xff]
          %v878 = vld [vmem:[#allocation2 + $0x38] sm:$0xff]
          %v879 = vld [vmem:[#allocation2 + $0x40] sm:$0xff]
          %v880 = vld [vmem:[#allocation2 + $0x48] sm:$0xff]
          %v881 = vld [vmem:[#allocation2 + $0x50] sm:$0xff]
          %v882 = vld [vmem:[#allocation2 + $0x58] sm:$0xff]
          %v883 = vld [vmem:[#allocation2 + $0x60] sm:$0xff]
          %v884 = vld [vmem:[#allocation2 + $0x68] sm:$0xff]
          %v885 = vld [vmem:[#allocation2 + $0x70] sm:$0xff]
          %v886 = vld [vmem:[#allocation2 + $0x78] sm:$0xff]
          %v887 = vld [vmem:[#allocation2 + $0x80] sm:$0xff]
          %v888 = vld [vmem:[#allocation2 + $0x88] sm:$0xff]
          %v889 = vld [vmem:[#allocation2 + $0x90] sm:$0xff]
          %v890 = vld [vmem:[#allocation2 + $0x98] sm:$0xff]
          %v891 = vld [vmem:[#allocation2 + $0xa0] sm:$0xff]
          %v892 = vld [vmem:[#allocation2 + $0xa8] sm:$0xff]
          %v893 = vld [vmem:[#allocation2 + $0xb0] sm:$0xff]
          %v894 = vld [vmem:[#allocation2 + $0xb8] sm:$0xff]
          %v895 = vld [vmem:[#allocation2 + $0xc0] sm:$0xff]
          %v896 = vld [vmem:[#allocation2 + $0xc8] sm:$0xff]
          %v897 = vld [vmem:[#allocation2 + $0xd0] sm:$0xff]
          %v898 = vld [vmem:[#allocation2 + $0xd8] sm:$0xff]
          %v899 = vld [vmem:[#allocation2 + $0xe0] sm:$0xff]
          %v900 = vld [vmem:[#allocation2 + $0xe8] sm:$0xff]
          %v901 = vld [vmem:[#allocation2 + $0xf0] sm:$0xff]
          %v902 = vld [vmem:[#allocation2 + $0xf8] sm:$0xff]
          %v903 = vld [vmem:[%s2] sm:$0x1]
          %v905 = vperm.slane %v903, 0
          %v907 = vadd.f32 %v871, %v905
          %v908 = vadd.f32 %v872, %v905
          %v909 = vadd.f32 %v873, %v905
          %v910 = vadd.f32 %v874, %v905
          %v911 = vadd.f32 %v875, %v905
          %v912 = vadd.f32 %v876, %v905
          %v913 = vadd.f32 %v877, %v905
          %v914 = vadd.f32 %v878, %v905
          %v915 = vadd.f32 %v879, %v905
          %v916 = vadd.f32 %v880, %v905
          %v917 = vadd.f32 %v881, %v905
          %v918 = vadd.f32 %v882, %v905
          %v919 = vadd.f32 %v883, %v905
          %v920 = vadd.f32 %v884, %v905
          %v921 = vadd.f32 %v885, %v905
          %v922 = vadd.f32 %v886, %v905
          %v923 = vadd.f32 %v887, %v905
          %v924 = vadd.f32 %v888, %v905
          %v925 = vadd.f32 %v889, %v905
          %v926 = vadd.f32 %v890, %v905
          %v927 = vadd.f32 %v891, %v905
          %v928 = vadd.f32 %v892, %v905
          %v929 = vadd.f32 %v893, %v905
          %v930 = vadd.f32 %v894, %v905
          %v931 = vadd.f32 %v895, %v905
          %v932 = vadd.f32 %v896, %v905
          %v933 = vadd.f32 %v897, %v905
          %v934 = vadd.f32 %v898, %v905
          %v935 = vadd.f32 %v899, %v905
          %v936 = vadd.f32 %v900, %v905
          %v937 = vadd.f32 %v901, %v905
          %v938 = vadd.f32 %v902, %v905
          %v939 = vpack.c.bf16 %v907, %v907
          %v940 = vpack.c.bf16 %v908, %v908
          %v941 = vpack.c.bf16 %v909, %v909
          %v942 = vpack.c.bf16 %v910, %v910
          %v943 = vpack.c.bf16 %v911, %v911
          %v944 = vpack.c.bf16 %v912, %v912
          %v945 = vpack.c.bf16 %v913, %v913
          %v946 = vpack.c.bf16 %v914, %v914
          %v947 = vpack.c.bf16 %v915, %v915
          %v948 = vpack.c.bf16 %v916, %v916
          %v949 = vpack.c.bf16 %v917, %v917
          %v950 = vpack.c.bf16 %v918, %v918
          %v951 = vpack.c.bf16 %v919, %v919
          %v952 = vpack.c.bf16 %v920, %v920
          %v953 = vpack.c.bf16 %v921, %v921
          %v954 = vpack.c.bf16 %v922, %v922
          %v955 = vpack.c.bf16 %v923, %v923
          %v956 = vpack.c.bf16 %v924, %v924
          %v957 = vpack.c.bf16 %v925, %v925
          %v958 = vpack.c.bf16 %v926, %v926
          %v959 = vpack.c.bf16 %v927, %v927
          %v960 = vpack.c.bf16 %v928, %v928
          %v961 = vpack.c.bf16 %v929, %v929
          %v962 = vpack.c.bf16 %v930, %v930
          %v963 = vpack.c.bf16 %v931, %v931
          %v964 = vpack.c.bf16 %v932, %v932
          %v965 = vpack.c.bf16 %v933, %v933
          %v966 = vpack.c.bf16 %v934, %v934
          %v967 = vpack.c.bf16 %v935, %v935
          %v968 = vpack.c.bf16 %v936, %v936
          %v969 = vpack.c.bf16 %v937, %v937
          %v970 = vpack.c.bf16 %v938, %v938
          %971 = vst [vmem:[%s452] sm:$0xf] %v939
          %972 = vst [vmem:[%s452 + $0x4] sm:$0xf] %v940
          %973 = vst [vmem:[%s452 + $0x8] sm:$0xf] %v941
          %974 = vst [vmem:[%s452 + $0xc] sm:$0xf] %v942
          %975 = vst [vmem:[%s452 + $0x10] sm:$0xf] %v943
          %976 = vst [vmem:[%s452 + $0x14] sm:$0xf] %v944
          %977 = vst [vmem:[%s452 + $0x18] sm:$0xf] %v945
          %978 = vst [vmem:[%s452 + $0x1c] sm:$0xf] %v946
          %979 = vst [vmem:[%s452 + $0x20] sm:$0xf] %v947
          %980 = vst [vmem:[%s452 + $0x24] sm:$0xf] %v948
          %981 = vst [vmem:[%s452 + $0x28] sm:$0xf] %v949
          %982 = vst [vmem:[%s452 + $0x2c] sm:$0xf] %v950
          %983 = vst [vmem:[%s452 + $0x30] sm:$0xf] %v951
          %984 = vst [vmem:[%s452 + $0x34] sm:$0xf] %v952
          %985 = vst [vmem:[%s452 + $0x38] sm:$0xf] %v953
          %986 = vst [vmem:[%s452 + $0x3c] sm:$0xf] %v954
          %987 = vst [vmem:[%s452 + $0x40] sm:$0xf] %v955
          %988 = vst [vmem:[%s452 + $0x44] sm:$0xf] %v956
          %989 = vst [vmem:[%s452 + $0x48] sm:$0xf] %v957
          %990 = vst [vmem:[%s452 + $0x4c] sm:$0xf] %v958
          %991 = vst [vmem:[%s452 + $0x50] sm:$0xf] %v959
          %992 = vst [vmem:[%s452 + $0x54] sm:$0xf] %v960
          %993 = vst [vmem:[%s452 + $0x58] sm:$0xf] %v961
          %994 = vst [vmem:[%s452 + $0x5c] sm:$0xf] %v962
          %995 = vst [vmem:[%s452 + $0x60] sm:$0xf] %v963
          %996 = vst [vmem:[%s452 + $0x64] sm:$0xf] %v964
          %997 = vst [vmem:[%s452 + $0x68] sm:$0xf] %v965
          %998 = vst [vmem:[%s452 + $0x6c] sm:$0xf] %v966
          %999 = vst [vmem:[%s452 + $0x70] sm:$0xf] %v967
          %1000 = vst [vmem:[%s452 + $0x74] sm:$0xf] %v968
          %1001 = vst [vmem:[%s452 + $0x78] sm:$0xf] %v969
          %1002 = vst [vmem:[%s452 + $0x7c] sm:$0xf] %v970
          %v1003 = vadd.f32 %v907, %v908
          %v1004 = vadd.f32 %v1003, %v909
          %v1005 = vadd.f32 %v1004, %v910
          %v1006 = vadd.f32 %v1005, %v911
          %v1007 = vadd.f32 %v1006, %v912
          %v1008 = vadd.f32 %v1007, %v913
          %v1009 = vadd.f32 %v1008, %v914
          %v1010 = vadd.f32 %v1009, %v915
          %v1011 = vadd.f32 %v1010, %v916
          %v1012 = vadd.f32 %v1011, %v917
          %v1013 = vadd.f32 %v1012, %v918
          %v1014 = vadd.f32 %v1013, %v919
          %v1015 = vadd.f32 %v1014, %v920
          %v1016 = vadd.f32 %v1015, %v921
          %v1017 = vadd.f32 %v1016, %v922
          %v1018 = vadd.f32 %v1017, %v923
          %v1019 = vadd.f32 %v1018, %v924
          %v1020 = vadd.f32 %v1019, %v925
          %v1021 = vadd.f32 %v1020, %v926
          %v1022 = vadd.f32 %v1021, %v927
          %v1023 = vadd.f32 %v1022, %v928
          %v1024 = vadd.f32 %v1023, %v929
          %v1025 = vadd.f32 %v1024, %v930
          %v1026 = vadd.f32 %v1025, %v931
          %v1027 = vadd.f32 %v1026, %v932
          %v1028 = vadd.f32 %v1027, %v933
          %v1029 = vadd.f32 %v1028, %v934
          %v1030 = vadd.f32 %v1029, %v935
          %v1031 = vadd.f32 %v1030, %v936
          %v1032 = vadd.f32 %v1031, %v937
          %v1033 = vadd.f32 %v1032, %v938
          %v1034 = vrot.slane %v1033, 4
          %v1035 = vadd.f32 %v1033, %v1034
          %v1036 = vrot.slane %v1035, 2
          %v1037 = vadd.f32 %v1035, %v1036
          %v1038 = vrot.slane %v1037, 1
          %v1039 = vadd.f32 %v1037, %v1038
          %v1040 = vmul.f32 %v907, %v907
          %v1041 = vmul.f32 %v908, %v908
          %v1042 = vmul.f32 %v909, %v909
          %v1043 = vmul.f32 %v910, %v910
          %v1044 = vmul.f32 %v911, %v911
          %v1045 = vmul.f32 %v912, %v912
          %v1046 = vmul.f32 %v913, %v913
          %v1047 = vmul.f32 %v914, %v914
          %v1048 = vmul.f32 %v915, %v915
          %v1049 = vmul.f32 %v916, %v916
          %v1050 = vmul.f32 %v917, %v917
          %v1051 = vmul.f32 %v918, %v918
          %v1052 = vmul.f32 %v919, %v919
          %v1053 = vmul.f32 %v920, %v920
          %v1054 = vmul.f32 %v921, %v921
          %v1055 = vmul.f32 %v922, %v922
          %v1056 = vmul.f32 %v923, %v923
          %v1057 = vmul.f32 %v924, %v924
          %v1058 = vmul.f32 %v925, %v925
          %v1059 = vmul.f32 %v926, %v926
          %v1060 = vmul.f32 %v927, %v927
          %v1061 = vmul.f32 %v928, %v928
          %v1062 = vmul.f32 %v929, %v929
          %v1063 = vmul.f32 %v930, %v930
          %v1064 = vmul.f32 %v931, %v931
          %v1065 = vmul.f32 %v932, %v932
          %v1066 = vmul.f32 %v933, %v933
          %v1067 = vmul.f32 %v934, %v934
          %v1068 = vmul.f32 %v935, %v935
          %v1069 = vmul.f32 %v936, %v936
          %v1070 = vmul.f32 %v937, %v937
          %v1071 = vmul.f32 %v938, %v938
          %v1072 = vadd.f32 %v1040, %v1041
          %v1073 = vadd.f32 %v1072, %v1042
          %v1074 = vadd.f32 %v1073, %v1043
          %v1075 = vadd.f32 %v1074, %v1044
          %v1076 = vadd.f32 %v1075, %v1045
          %v1077 = vadd.f32 %v1076, %v1046
          %v1078 = vadd.f32 %v1077, %v1047
          %v1079 = vadd.f32 %v1078, %v1048
          %v1080 = vadd.f32 %v1079, %v1049
          %v1081 = vadd.f32 %v1080, %v1050
          %v1082 = vadd.f32 %v1081, %v1051
          %v1083 = vadd.f32 %v1082, %v1052
          %v1084 = vadd.f32 %v1083, %v1053
          %v1085 = vadd.f32 %v1084, %v1054
          %v1086 = vadd.f32 %v1085, %v1055
          %v1087 = vadd.f32 %v1086, %v1056
          %v1088 = vadd.f32 %v1087, %v1057
          %v1089 = vadd.f32 %v1088, %v1058
          %v1090 = vadd.f32 %v1089, %v1059
          %v1091 = vadd.f32 %v1090, %v1060
          %v1092 = vadd.f32 %v1091, %v1061
          %v1093 = vadd.f32 %v1092, %v1062
          %v1094 = vadd.f32 %v1093, %v1063
          %v1095 = vadd.f32 %v1094, %v1064
          %v1096 = vadd.f32 %v1095, %v1065
          %v1097 = vadd.f32 %v1096, %v1066
          %v1098 = vadd.f32 %v1097, %v1067
          %v1099 = vadd.f32 %v1098, %v1068
          %v1100 = vadd.f32 %v1099, %v1069
          %v1101 = vadd.f32 %v1100, %v1070
          %v1102 = vadd.f32 %v1101, %v1071
          %v1103 = vrot.slane %v1102, 4
          %v1104 = vadd.f32 %v1102, %v1103
          %v1105 = vrot.slane %v1104, 2
          %v1106 = vadd.f32 %v1104, %v1105
          %v1107 = vrot.slane %v1106, 1
          %v1108 = vadd.f32 %v1106, %v1107
          %1109 = vst [vmem:[%s433] sm:$0xff] %v1039
          %1110 = vst [vmem:[%s440] sm:$0xff] %v1108
        $region81: #{up_forward.5} parent=68 // pred_fallthru
          _
        %s1111 = smul.u32 32, %s27
        %p1112 = scmp.lt.s32.totalorder %s1111, 63
        %s1113 = scalar_select %p1112, %s1111, 63
        %s1114 = smul.addr %s1113, 4
        %s1115 = scalar_lea.vmem %s3, %s1114
        %s1116 = sand.u32 %s144, 1
        %s1117 = scalar_lea.sflag [#allocation5], %s1116
        %s1118 = sand.u32 %s144, 1
        %s1119 = smul.addr %s1118, 8
        %s1120 = scalar_lea.vmem [#allocation4], %s1119
        %s1121 = sand.u32 %s170, 1
        %s1122 = scalar_lea.sflag [#allocation7], %s1121
        %s1123 = sand.u32 %s170, 1
        %s1124 = smul.addr %s1123, 8
        %s1125 = scalar_lea.vmem [#allocation6], %s1124
        // Predicated region
        $region82: #{up_forward.5} parent=68 // pred_check
          %p1126 = pneg %p128
        $region83: #{up_forward.5} parent=68 // pred_check_branch
          %1128 = sbr.rel (%p1126) target = $region85
        $region84: #{up_forward.5} parent=68 // pred_region
          %s1129 = smul.u32 32, %s27
        $region85: #{up_forward.5} parent=68 // pred_fallthru
          _
        // Predicated region
        $region86: #{up_forward.5} parent=68 // pred_check
          %p1130 = pneg %p154
        $region87: #{up_forward.5} parent=68 // pred_check_branch
          %1132 = sbr.rel (%p1130) target = $region89
        $region88: #{up_forward.5} parent=68 // pred_region
          %1134 = vsyncadd %s1117, 0
          %s1135 = smul.addr %s27, 8
          %s1136 = scalar_lea.hbm %s4, %s1135
          %s1138 = sshll.u32 %s1120, 4
          %s1139 = int_to_ptr.vmem [resolvable:$true] %s1138
          %s1140 = sshll.u32 %s1136, 4
          %s1141 = int_to_ptr.hbm [resolvable:$true] %s1140
          %1143 = dma.vmem_to_hbm [thread:$0]  %s1139, 128, %s1141, %s1117
        $region89: #{up_forward.5} parent=68 // pred_fallthru
          _
        // Predicated region
        $region90: #{up_forward.5} parent=68 // pred_check
          %p1144 = pneg %p180
        $region91: #{up_forward.5} parent=68 // pred_check_branch
          %1146 = sbr.rel (%p1144) target = $region93
        $region92: #{up_forward.5} parent=68 // pred_region
          %1148 = vsyncadd %s1122, 0
          %s1149 = smul.addr %s27, 8
          %s1150 = scalar_lea.hbm %s5, %s1149
          %s1152 = sshll.u32 %s1125, 4
          %s1153 = int_to_ptr.vmem [resolvable:$true] %s1152
          %s1154 = sshll.u32 %s1150, 4
          %s1155 = int_to_ptr.hbm [resolvable:$true] %s1154
          %1157 = dma.vmem_to_hbm [thread:$0]  %s1153, 128, %s1155, %s1122
        $region93: #{up_forward.5} parent=68 // pred_fallthru
          _
      $region69: #{up_forward.5} parent=5 // pred_fallthru
        _
      %p1158 = scmp.le.s32.totalorder 2, %s18
      // Predicated region
      $region94: #{up_forward.5} parent=5 // pred_check
        %p1159 = pneg %p1158
      $region95: #{up_forward.5} parent=5 // pred_check_branch
        %1161 = sbr.rel (%p1159) target = $region97
      $region96: #{up_forward.5} parent=5 // pred_region
        %s1162 = ssub.s32 %s18, 2
        // Predicated region
        $region98: #{up_forward.5} parent=96 // pred_check
          %p1163 = pneg %p134
        $region99: #{up_forward.5} parent=96 // pred_check_branch
          %1165 = sbr.rel (%p1163) target = $region101
        $region100: #{up_forward.5} parent=96 // pred_region
          %s1166 = smul.u32 32, %s29
          %p1167 = scmp.lt.s32.totalorder %s1166, 63
          %s1168 = scalar_select %p1167, %s1166, 63
          %s1169 = smul.addr %s1168, 4
          %s1170 = scalar_lea.vmem %s3, %s1169
        $region101: #{up_forward.5} parent=96 // pred_fallthru
          _
        // Predicated region
        $region102: #{up_forward.5} parent=96 // pred_check
          %p1171 = pneg %p160
        $region103: #{up_forward.5} parent=96 // pred_check_branch
          %1173 = sbr.rel (%p1171) target = $region105
        $region104: #{up_forward.5} parent=96 // pred_region
          %s1174 = sand.u32 %s145, 1
          %s1175 = scalar_lea.sflag [#allocation5], %s1174
          %s1176 = sand.u32 %s145, 1
          %s1177 = smul.addr %s1176, 8
          %s1178 = scalar_lea.vmem [#allocation4], %s1177
          %1180 = dma.done %s1175, 128
        $region105: #{up_forward.5} parent=96 // pred_fallthru
          _
        // Predicated region
        $region106: #{up_forward.5} parent=96 // pred_check
          %p1181 = pneg %p186
        $region107: #{up_forward.5} parent=96 // pred_check_branch
          %1183 = sbr.rel (%p1181) target = $region109
        $region108: #{up_forward.5} parent=96 // pred_region
          %s1184 = sand.u32 %s171, 1
          %s1185 = scalar_lea.sflag [#allocation7], %s1184
          %s1186 = sand.u32 %s171, 1
          %s1187 = smul.addr %s1186, 8
          %s1188 = scalar_lea.vmem [#allocation6], %s1187
          %1190 = dma.done %s1185, 128
        $region109: #{up_forward.5} parent=96 // pred_fallthru
          _
      $region97: #{up_forward.5} parent=5 // pred_fallthru
        _
    $region6: #{up_forward.5} parent=1 // loop_footer
      %s22 = sadd.s32 1, %s18
    $region7: #{up_forward.5} parent=1 // loop_footer_branch
      %17 = sbr.rel target = $region3
    $region8: #{up_forward.5} parent=1 // loop_exit
      _
    %1191 = vsyncpa [#allocation5], 1
    %s1192 = scalar_lea.sflag [#allocation5], 1
    %1193 = vsyncpa %s1192, 1
    %1194 = vsyncpa [#allocation7], 1
    %s1195 = scalar_lea.sflag [#allocation7], 1
    %1196 = vsyncpa %s1195, 1

// kernel: up_forward.6
$region0: #{up_forward.6}
  #allocation0 [shape = 'u32[]', space=smem, size = 0x4, offset = 0x4, fixed_abs, tag = 'smem constant byte address 0x4 - core index']
  #allocation1 [shape = 'u32[72,128]{1,0:T(1,128)}', space=vmem, size = 0x9000, scoped, tag = 'internal scratch']
  #allocation2 [shape = 'f32[256,128]{1,0:T(8,128)}', space=vmem, size = 0x20000, scoped, tag = 'scratch operand']
  %s0 = inlined_call_operand.vmem [shape: bf16[2048,384], index: 0, kind: input, shape index: {}]
  %s1 = inlined_call_operand.vmem [shape: bf16[384,128], index: 1, kind: input, shape index: {}]
  %s2 = inlined_call_operand.vmem [shape: f32[1,128], index: 2, kind: input, shape index: {}]
  %s3 = inlined_call_operand.vmem [shape: bf16[2048,128], index: 3, kind: output, shape index: {0}]
  %s4 = inlined_call_operand.vmem [shape: f32[8,8,128], index: 4, kind: output, shape index: {1}]
  %s5 = inlined_call_operand.vmem [shape: f32[8,8,128], index: 5, kind: output, shape index: {2}]
  %6 = xla_tuple %s3, %s4, %s5
  %s7 = sld [smem:[#allocation0]]
  $region110: #{up_forward.6} parent=0
    _
  %s9 = ssub.s32 1, %s7
  %s10 = scalar_select 0, %s9, %s7
  $region1: #{up_forward.6} parent=0
    #allocation3 [shape = 'u8[131072]{0}', space=vmem, size = 0x20000, scoped, tag = 'input window, operand 0']
    loop: start=0, step=1, limit=26
    $region2: #{up_forward.6} parent=1 // loop_pre_header
      _
    $region3: #{up_forward.6} parent=1 // loop_header
      %s12 = sphi 0, %s16
      %p13 = scmp.ge.s32.totalorder %s12, 26
      %s19 = sphi 0, %s31
      %s20 = sphi 0, %s27
      %s21 = sphi 0, %s19
      %s22 = sphi 0, %s20
      %s23 = sphi 0, %s21
      %s24 = sphi 0, %s22
      %s36 = sphi 0, %s38
      %s39 = sphi 0, %s36
      %s40 = sphi 0, %s39
      %s56 = sphi 0, %s40
      %s62 = sphi 0, %s64
      %s65 = sphi 0, %s62
      %s66 = sphi 0, %s65
      %s82 = sphi 0, %s66
      %s86 = sphi 0, %s86
      %s88 = sphi 0, %s86
      %s89 = sphi 0, %s88
      %s103 = sphi 0, %s89
      %s109 = sphi 0, %s111
      %s112 = sphi 0, %s109
      %s113 = sphi 0, %s112
      %s129 = sphi 0, %s113
      %s135 = sphi 0, %s137
      %s138 = sphi 0, %s135
      %s139 = sphi 0, %s138
      %s155 = sphi 0, %s139
      %s161 = sphi 0, %s163
      %s164 = sphi 0, %s161
      %s165 = sphi 0, %s164
      %s181 = sphi 0, %s165
    $region4: #{up_forward.6} parent=1 // loop_header_branch
      %15 = sbr.rel (%p13) target = $region8
    $region5: #{up_forward.6} parent=1 // loop_body
      %s17 = ssub.s32 %s12, 1
      %s18 = ssub.s32 %s12, 2
      %s25 = sadd.s32 1, %s20
      %p26 = scmp.ge.s32.totalorder %s25, 3
      %s27 = scalar_select %p26, 0, %s25
      %s28 = sadd.s32 1, %s19
      %s29 = scalar_select %p26, %s28, %s19
      %p30 = scmp.ge.s32.totalorder %s29, 8
      %s31 = scalar_select %p30, 0, %s29
      %s32 = ssub.s32 %s19, %s31
      %s33 = ssub.s32 %s20, %s27
      %s34 = sor.u32 %s32, %s33
      %p35 = scmp.eq.s32.totalorder %s34, 0
      %s37 = sadd.s32 %s36, 1
      %s38 = scalar_select %p35, %s36, %s37
      %p41 = pneg %p35
      %p42 = scmp.eq.s32.totalorder %s12, 23
      %p43 = por %p41, %p42
      %p44 = scmp.ne.s32.totalorder %s36, %s39
      %p45 = scmp.eq.s32.totalorder %s12, 0
      %p46 = por %p44, %p45
      %p47 = scmp.ne.s32.totalorder %s36, %s39
      %p48 = scmp.eq.s32.totalorder %s17, 23
      %p49 = por %p47, %p48
      %p50 = scmp.ne.s32.totalorder %s39, %s40
      %p51 = scmp.eq.s32.totalorder %s17, 0
      %p52 = por %p50, %p51
      %p53 = scmp.ne.s32.totalorder %s39, %s40
      %p54 = scmp.eq.s32.totalorder %s18, 23
      %p55 = por %p53, %p54
      %p57 = scmp.ne.s32.totalorder %s40, %s56
      %p58 = scmp.eq.s32.totalorder %s18, 0
      %p59 = por %p57, %p58
      %s60 = ssub.s32 %s20, %s27
      %p61 = scmp.eq.s32.totalorder %s60, 0
      %s63 = sadd.s32 %s62, 1
      %s64 = scalar_select %p61, %s62, %s63
      %p67 = pneg %p61
      %p68 = scmp.eq.s32.totalorder %s12, 23
      %p69 = por %p67, %p68
      %p70 = scmp.ne.s32.totalorder %s62, %s65
      %p71 = scmp.eq.s32.totalorder %s12, 0
      %p72 = por %p70, %p71
      %p73 = scmp.ne.s32.totalorder %s62, %s65
      %p74 = scmp.eq.s32.totalorder %s17, 23
      %p75 = por %p73, %p74
      %p76 = scmp.ne.s32.totalorder %s65, %s66
      %p77 = scmp.eq.s32.totalorder %s17, 0
      %p78 = por %p76, %p77
      %p79 = scmp.ne.s32.totalorder %s65, %s66
      %p80 = scmp.eq.s32.totalorder %s18, 23
      %p81 = por %p79, %p80
      %p83 = scmp.ne.s32.totalorder %s66, %s82
      %p84 = scmp.eq.s32.totalorder %s18, 0
      %p85 = por %p83, %p84
      %s87 = sadd.s32 %s86, 1
      %p90 = scmp.eq.s32.totalorder %s12, 23
      %p91 = scmp.ne.s32.totalorder %s86, %s88
      %p92 = scmp.eq.s32.totalorder %s12, 0
      %p93 = por %p91, %p92
      %p94 = scmp.ne.s32.totalorder %s86, %s88
      %p95 = scmp.eq.s32.totalorder %s17, 23
      %p96 = por %p94, %p95
      %p97 = scmp.ne.s32.totalorder %s88, %s89
      %p98 = scmp.eq.s32.totalorder %s17, 0
      %p99 = por %p97, %p98
      %p100 = scmp.ne.s32.totalorder %s88, %s89
      %p101 = scmp.eq.s32.totalorder %s18, 23
      %p102 = por %p100, %p101
      %p104 = scmp.ne.s32.totalorder %s89, %s103
      %p105 = scmp.eq.s32.totalorder %s18, 0
      %p106 = por %p104, %p105
      %s107 = ssub.s32 %s19, %s31
      %p108 = scmp.eq.s32.totalorder %s107, 0
      %s110 = sadd.s32 %s109, 1
      %s111 = scalar_select %p108, %s109, %s110
      %p114 = pneg %p108
      %p115 = scmp.eq.s32.totalorder %s12, 23
      %p116 = por %p114, %p115
      %p117 = scmp.ne.s32.totalorder %s109, %s112
      %p118 = scmp.eq.s32.totalorder %s12, 0
      %p119 = por %p117, %p118
      %p120 = scmp.ne.s32.totalorder %s109, %s112
      %p121 = scmp.eq.s32.totalorder %s17, 23
      %p122 = por %p120, %p121
      %p123 = scmp.ne.s32.totalorder %s112, %s113
      %p124 = scmp.eq.s32.totalorder %s17, 0
      %p125 = por %p123, %p124
      %p126 = scmp.ne.s32.totalorder %s112, %s113
      %p127 = scmp.eq.s32.totalorder %s18, 23
      %p128 = por %p126, %p127
      %p130 = scmp.ne.s32.totalorder %s113, %s129
      %p131 = scmp.eq.s32.totalorder %s18, 0
      %p132 = por %p130, %p131
      %s133 = ssub.s32 %s19, %s31
      %p134 = scmp.eq.s32.totalorder %s133, 0
      %s136 = sadd.s32 %s135, 1
      %s137 = scalar_select %p134, %s135, %s136
      %p140 = pneg %p134
      %p141 = scmp.eq.s32.totalorder %s12, 23
      %p142 = por %p140, %p141
      %p143 = scmp.ne.s32.totalorder %s135, %s138
      %p144 = scmp.eq.s32.totalorder %s12, 0
      %p145 = por %p143, %p144
      %p146 = scmp.ne.s32.totalorder %s135, %s138
      %p147 = scmp.eq.s32.totalorder %s17, 23
      %p148 = por %p146, %p147
      %p149 = scmp.ne.s32.totalorder %s138, %s139
      %p150 = scmp.eq.s32.totalorder %s17, 0
      %p151 = por %p149, %p150
      %p152 = scmp.ne.s32.totalorder %s138, %s139
      %p153 = scmp.eq.s32.totalorder %s18, 23
      %p154 = por %p152, %p153
      %p156 = scmp.ne.s32.totalorder %s139, %s155
      %p157 = scmp.eq.s32.totalorder %s18, 0
      %p158 = por %p156, %p157
      %s159 = ssub.s32 %s19, %s31
      %p160 = scmp.eq.s32.totalorder %s159, 0
      %s162 = sadd.s32 %s161, 1
      %s163 = scalar_select %p160, %s161, %s162
      %p166 = pneg %p160
      %p167 = scmp.eq.s32.totalorder %s12, 23
      %p168 = por %p166, %p167
      %p169 = scmp.ne.s32.totalorder %s161, %s164
      %p170 = scmp.eq.s32.totalorder %s12, 0
      %p171 = por %p169, %p170
      %p172 = scmp.ne.s32.totalorder %s161, %s164
      %p173 = scmp.eq.s32.totalorder %s17, 23
      %p174 = por %p172, %p173
      %p175 = scmp.ne.s32.totalorder %s164, %s165
      %p176 = scmp.eq.s32.totalorder %s17, 0
      %p177 = por %p175, %p176
      %p178 = scmp.ne.s32.totalorder %s164, %s165
      %p179 = scmp.eq.s32.totalorder %s18, 23
      %p180 = por %p178, %p179
      %p182 = scmp.ne.s32.totalorder %s165, %s181
      %p183 = scmp.eq.s32.totalorder %s18, 0
      %p184 = por %p182, %p183
      %p185 = scmp.le.s32.totalorder 1, %s12
      %p186 = scmp.lt.s32.totalorder %s12, 25
      %p187 = pnand %p185, %p186
      %p188 = pneg %p187
      // Predicated region
      $region9: #{up_forward.6} parent=5 // pred_check
        _
      $region10: #{up_forward.6} parent=5 // pred_check_branch
        %190 = sbr.rel (%p187) target = $region12
      $region11: #{up_forward.6} parent=5 // pred_region
        %s191 = ssub.s32 %s12, 1
        // Predicated region
        $region13: #{up_forward.6} parent=11 // pred_check
          %p192 = pneg %p99
        $region14: #{up_forward.6} parent=11 // pred_check_branch
          %194 = sbr.rel (%p192) target = $region16
        $region15: #{up_forward.6} parent=11 // pred_region
          _
        $region16: #{up_forward.6} parent=11 // pred_fallthru
          _
      $region12: #{up_forward.6} parent=5 // pred_fallthru
        _
      %p195 = scmp.lt.s32.totalorder %s12, 24
      // Predicated region
      $region17: #{up_forward.6} parent=5 // pred_check
        %p196 = pneg %p195
      $region18: #{up_forward.6} parent=5 // pred_check_branch
        %198 = sbr.rel (%p196) target = $region20
      $region19: #{up_forward.6} parent=5 // pred_region
        // Predicated region
        $region21: #{up_forward.6} parent=19 // pred_check
          %p199 = pneg %p46
        $region22: #{up_forward.6} parent=19 // pred_check_branch
          %201 = sbr.rel (%p199) target = $region24
        $region23: #{up_forward.6} parent=19 // pred_region
          %s202 = sand.u32 %s36, 1
          %s203 = sand.u32 %s36, 1
          %s204 = smul.addr %s203, 128
          %s205 = scalar_lea.vmem [#allocation3], %s204
          %s206 = smul.u32 32, %s19
          %s207 = smul.addr %s206, 3
          %s208 = sadd.s32 %s20, %s207
          %s209 = smul.addr %s208, 4
          %s210 = scalar_lea.vmem %s0, %s209
          // Predicated region
          $region25: #{up_forward.6} parent=23 // pred_check
            _
          $region26: #{up_forward.6} parent=23 // pred_check_branch
            %212 = sbr.rel (0) target = $region28
          $region27: #{up_forward.6} parent=23 // pred_region
            // Predicated region
            $region29: #{up_forward.6} parent=27 // pred_check
              _
            $region30: #{up_forward.6} parent=27 // pred_check_branch
              %214 = sbr.rel target = $region32
            $region31: #{up_forward.6} parent=27 // pred_region
              // Predicated region
              $region44: #{up_forward.6} parent=31 // pred_check
                _
              $region45: #{up_forward.6} parent=31 // pred_check_branch
                %292 = sbr.rel (0) target = $region47
              $region46: #{up_forward.6} parent=31 // pred_region
                loop: start=0, step=1, limit=1
                $region48: #{up_forward.6} parent=46 // loop_pre_header
                  _
                $region49: #{up_forward.6} parent=46 // loop_header
                  %s294 = sphi 0, %s298
                  %p295 = scmp.ge.s32.totalorder %s294, 1
                  %s299 = sphi %s210, %s210
                  %s300 = sphi %s205, %s205
                $region50: #{up_forward.6} parent=46 // loop_header_branch
                  %297 = sbr.rel (%p295) target = $region54
                $region51: #{up_forward.6} parent=46 // loop_body
                  _
                $region52: #{up_forward.6} parent=46 // loop_footer
                  %s298 = sadd.s32 1, %s294
                $region53: #{up_forward.6} parent=46 // loop_footer_branch
                  %293 = sbr.rel target = $region49
                $region54: #{up_forward.6} parent=46 // loop_exit
                  _
                %s302 = ssub.s32 16, 1
                loop: start=0, step=1, limit=1
                $region55: #{up_forward.6} parent=46 // loop_pre_header
                  _
                $region56: #{up_forward.6} parent=46 // loop_header
                  %s304 = sphi 0, %s308
                  %p305 = scmp.ge.s32.totalorder %s304, 1
                  %s309 = sphi %s210, %s210
                  %s310 = sphi %s205, %s205
                $region57: #{up_forward.6} parent=46 // loop_header_branch
                  %307 = sbr.rel (%p305) target = $region61
                $region58: #{up_forward.6} parent=46 // loop_body
                  %v311 = vld [vmem:[%s309] sm:%s302]
                  %312 = vst [vmem:[%s310] sm:%s302] %v311
                  %v313 = vld [vmem:[%s309 + $0xc] sm:%s302]
                  %314 = vst [vmem:[%s310 + $0x4] sm:%s302] %v313
                  %v315 = vld [vmem:[%s309 + $0x18] sm:%s302]
                  %316 = vst [vmem:[%s310 + $0x8] sm:%s302] %v315
                  %v317 = vld [vmem:[%s309 + $0x24] sm:%s302]
                  %318 = vst [vmem:[%s310 + $0xc] sm:%s302] %v317
                  %v319 = vld [vmem:[%s309 + $0x30] sm:%s302]
                  %320 = vst [vmem:[%s310 + $0x10] sm:%s302] %v319
                  %v321 = vld [vmem:[%s309 + $0x3c] sm:%s302]
                  %322 = vst [vmem:[%s310 + $0x14] sm:%s302] %v321
                  %v323 = vld [vmem:[%s309 + $0x48] sm:%s302]
                  %324 = vst [vmem:[%s310 + $0x18] sm:%s302] %v323
                  %v325 = vld [vmem:[%s309 + $0x54] sm:%s302]
                  %326 = vst [vmem:[%s310 + $0x1c] sm:%s302] %v325
                  %v327 = vld [vmem:[%s309 + $0x60] sm:%s302]
                  %328 = vst [vmem:[%s310 + $0x20] sm:%s302] %v327
                  %v329 = vld [vmem:[%s309 + $0x6c] sm:%s302]
                  %330 = vst [vmem:[%s310 + $0x24] sm:%s302] %v329
                  %v331 = vld [vmem:[%s309 + $0x78] sm:%s302]
                  %332 = vst [vmem:[%s310 + $0x28] sm:%s302] %v331
                  %v333 = vld [vmem:[%s309 + $0x84] sm:%s302]
                  %334 = vst [vmem:[%s310 + $0x2c] sm:%s302] %v333
                  %v335 = vld [vmem:[%s309 + $0x90] sm:%s302]
                  %336 = vst [vmem:[%s310 + $0x30] sm:%s302] %v335
                  %v337 = vld [vmem:[%s309 + $0x9c] sm:%s302]
                  %338 = vst [vmem:[%s310 + $0x34] sm:%s302] %v337
                  %v339 = vld [vmem:[%s309 + $0xa8] sm:%s302]
                  %340 = vst [vmem:[%s310 + $0x38] sm:%s302] %v339
                  %v341 = vld [vmem:[%s309 + $0xb4] sm:%s302]
                  %342 = vst [vmem:[%s310 + $0x3c] sm:%s302] %v341
                  %v343 = vld [vmem:[%s309 + $0xc0] sm:%s302]
                  %344 = vst [vmem:[%s310 + $0x40] sm:%s302] %v343
                  %v345 = vld [vmem:[%s309 + $0xcc] sm:%s302]
                  %346 = vst [vmem:[%s310 + $0x44] sm:%s302] %v345
                  %v347 = vld [vmem:[%s309 + $0xd8] sm:%s302]
                  %348 = vst [vmem:[%s310 + $0x48] sm:%s302] %v347
                  %v349 = vld [vmem:[%s309 + $0xe4] sm:%s302]
                  %350 = vst [vmem:[%s310 + $0x4c] sm:%s302] %v349
                  %v351 = vld [vmem:[%s309 + $0xf0] sm:%s302]
                  %352 = vst [vmem:[%s310 + $0x50] sm:%s302] %v351
                  %v353 = vld [vmem:[%s309 + $0xfc] sm:%s302]
                  %354 = vst [vmem:[%s310 + $0x54] sm:%s302] %v353
                  %v355 = vld [vmem:[%s309 + $0x108] sm:%s302]
                  %356 = vst [vmem:[%s310 + $0x58] sm:%s302] %v355
                  %v357 = vld [vmem:[%s309 + $0x114] sm:%s302]
                  %358 = vst [vmem:[%s310 + $0x5c] sm:%s302] %v357
                  %v359 = vld [vmem:[%s309 + $0x120] sm:%s302]
                  %360 = vst [vmem:[%s310 + $0x60] sm:%s302] %v359
                  %v361 = vld [vmem:[%s309 + $0x12c] sm:%s302]
                  %362 = vst [vmem:[%s310 + $0x64] sm:%s302] %v361
                  %v363 = vld [vmem:[%s309 + $0x138] sm:%s302]
                  %364 = vst [vmem:[%s310 + $0x68] sm:%s302] %v363
                  %v365 = vld [vmem:[%s309 + $0x144] sm:%s302]
                  %366 = vst [vmem:[%s310 + $0x6c] sm:%s302] %v365
                  %v367 = vld [vmem:[%s309 + $0x150] sm:%s302]
                  %368 = vst [vmem:[%s310 + $0x70] sm:%s302] %v367
                  %v369 = vld [vmem:[%s309 + $0x15c] sm:%s302]
                  %370 = vst [vmem:[%s310 + $0x74] sm:%s302] %v369
                  %v371 = vld [vmem:[%s309 + $0x168] sm:%s302]
                  %372 = vst [vmem:[%s310 + $0x78] sm:%s302] %v371
                  %v373 = vld [vmem:[%s309 + $0x174] sm:%s302]
                  %374 = vst [vmem:[%s310 + $0x7c] sm:%s302] %v373
                $region59: #{up_forward.6} parent=46 // loop_footer
                  %s308 = sadd.s32 1, %s304
                $region60: #{up_forward.6} parent=46 // loop_footer_branch
                  %303 = sbr.rel target = $region56
                $region61: #{up_forward.6} parent=46 // loop_exit
                  _
              $region47: #{up_forward.6} parent=31 // pred_fallthru
                _
            $region32: #{up_forward.6} parent=27 // pred_fallthru
              _
            // Predicated region
            $region33: #{up_forward.6} parent=27 // pred_check
              _
            $region34: #{up_forward.6} parent=27 // pred_check_branch
              %216 = sbr.rel (0) target = $region36
            $region35: #{up_forward.6} parent=27 // pred_region
              %s218 = ssub.s32 16, 1
              loop: start=0, step=1, limit=1
              $region37: #{up_forward.6} parent=35 // loop_pre_header
                _
              $region38: #{up_forward.6} parent=35 // loop_header
                %s220 = sphi 0, %s224
                %p221 = scmp.ge.s32.totalorder %s220, 1
                %s225 = sphi %s210, %s210
                %s226 = sphi %s205, %s205
              $region39: #{up_forward.6} parent=35 // loop_header_branch
                %223 = sbr.rel (%p221) target = $region43
              $region40: #{up_forward.6} parent=35 // loop_body
                %v227 = vld [vmem:[%s225] sm:%s218]
                %228 = vst [vmem:[%s226] sm:%s218] %v227
                %v229 = vld [vmem:[%s225 + $0xc] sm:%s218]
                %230 = vst [vmem:[%s226 + $0x4] sm:%s218] %v229
                %v231 = vld [vmem:[%s225 + $0x18] sm:%s218]
                %232 = vst [vmem:[%s226 + $0x8] sm:%s218] %v231
                %v233 = vld [vmem:[%s225 + $0x24] sm:%s218]
                %234 = vst [vmem:[%s226 + $0xc] sm:%s218] %v233
                %v235 = vld [vmem:[%s225 + $0x30] sm:%s218]
                %236 = vst [vmem:[%s226 + $0x10] sm:%s218] %v235
                %v237 = vld [vmem:[%s225 + $0x3c] sm:%s218]
                %238 = vst [vmem:[%s226 + $0x14] sm:%s218] %v237
                %v239 = vld [vmem:[%s225 + $0x48] sm:%s218]
                %240 = vst [vmem:[%s226 + $0x18] sm:%s218] %v239
                %v241 = vld [vmem:[%s225 + $0x54] sm:%s218]
                %242 = vst [vmem:[%s226 + $0x1c] sm:%s218] %v241
                %v243 = vld [vmem:[%s225 + $0x60] sm:%s218]
                %244 = vst [vmem:[%s226 + $0x20] sm:%s218] %v243
                %v245 = vld [vmem:[%s225 + $0x6c] sm:%s218]
                %246 = vst [vmem:[%s226 + $0x24] sm:%s218] %v245
                %v247 = vld [vmem:[%s225 + $0x78] sm:%s218]
                %248 = vst [vmem:[%s226 + $0x28] sm:%s218] %v247
                %v249 = vld [vmem:[%s225 + $0x84] sm:%s218]
                %250 = vst [vmem:[%s226 + $0x2c] sm:%s218] %v249
                %v251 = vld [vmem:[%s225 + $0x90] sm:%s218]
                %252 = vst [vmem:[%s226 + $0x30] sm:%s218] %v251
                %v253 = vld [vmem:[%s225 + $0x9c] sm:%s218]
                %254 = vst [vmem:[%s226 + $0x34] sm:%s218] %v253
                %v255 = vld [vmem:[%s225 + $0xa8] sm:%s218]
                %256 = vst [vmem:[%s226 + $0x38] sm:%s218] %v255
                %v257 = vld [vmem:[%s225 + $0xb4] sm:%s218]
                %258 = vst [vmem:[%s226 + $0x3c] sm:%s218] %v257
                %v259 = vld [vmem:[%s225 + $0xc0] sm:%s218]
                %260 = vst [vmem:[%s226 + $0x40] sm:%s218] %v259
                %v261 = vld [vmem:[%s225 + $0xcc] sm:%s218]
                %262 = vst [vmem:[%s226 + $0x44] sm:%s218] %v261
                %v263 = vld [vmem:[%s225 + $0xd8] sm:%s218]
                %264 = vst [vmem:[%s226 + $0x48] sm:%s218] %v263
                %v265 = vld [vmem:[%s225 + $0xe4] sm:%s218]
                %266 = vst [vmem:[%s226 + $0x4c] sm:%s218] %v265
                %v267 = vld [vmem:[%s225 + $0xf0] sm:%s218]
                %268 = vst [vmem:[%s226 + $0x50] sm:%s218] %v267
                %v269 = vld [vmem:[%s225 + $0xfc] sm:%s218]
                %270 = vst [vmem:[%s226 + $0x54] sm:%s218] %v269
                %v271 = vld [vmem:[%s225 + $0x108] sm:%s218]
                %272 = vst [vmem:[%s226 + $0x58] sm:%s218] %v271
                %v273 = vld [vmem:[%s225 + $0x114] sm:%s218]
                %274 = vst [vmem:[%s226 + $0x5c] sm:%s218] %v273
                %v275 = vld [vmem:[%s225 + $0x120] sm:%s218]
                %276 = vst [vmem:[%s226 + $0x60] sm:%s218] %v275
                %v277 = vld [vmem:[%s225 + $0x12c] sm:%s218]
                %278 = vst [vmem:[%s226 + $0x64] sm:%s218] %v277
                %v279 = vld [vmem:[%s225 + $0x138] sm:%s218]
                %280 = vst [vmem:[%s226 + $0x68] sm:%s218] %v279
                %v281 = vld [vmem:[%s225 + $0x144] sm:%s218]
                %282 = vst [vmem:[%s226 + $0x6c] sm:%s218] %v281
                %v283 = vld [vmem:[%s225 + $0x150] sm:%s218]
                %284 = vst [vmem:[%s226 + $0x70] sm:%s218] %v283
                %v285 = vld [vmem:[%s225 + $0x15c] sm:%s218]
                %286 = vst [vmem:[%s226 + $0x74] sm:%s218] %v285
                %v287 = vld [vmem:[%s225 + $0x168] sm:%s218]
                %288 = vst [vmem:[%s226 + $0x78] sm:%s218] %v287
                %v289 = vld [vmem:[%s225 + $0x174] sm:%s218]
                %290 = vst [vmem:[%s226 + $0x7c] sm:%s218] %v289
              $region41: #{up_forward.6} parent=35 // loop_footer
                %s224 = sadd.s32 1, %s220
              $region42: #{up_forward.6} parent=35 // loop_footer_branch
                %219 = sbr.rel target = $region38
              $region43: #{up_forward.6} parent=35 // loop_exit
                _
            $region36: #{up_forward.6} parent=27 // pred_fallthru
              _
          $region28: #{up_forward.6} parent=23 // pred_fallthru
            _
          %375 = vnop
        $region24: #{up_forward.6} parent=19 // pred_fallthru
          _
        // Predicated region
        $region62: #{up_forward.6} parent=19 // pred_check
          %p376 = pneg %p72
        $region63: #{up_forward.6} parent=19 // pred_check_branch
          %378 = sbr.rel (%p376) target = $region65
        $region64: #{up_forward.6} parent=19 // pred_region
          %s379 = smul.u32 16, %s20
          %p380 = scmp.lt.s32.totalorder %s379, 47
          %s381 = scalar_select %p380, %s379, 47
          %s382 = smul.addr %s381, 4
          %s383 = scalar_lea.vmem %s1, %s382
          %s384 = smul.u32 16, %s20
        $region65: #{up_forward.6} parent=19 // pred_fallthru
          _
      $region20: #{up_forward.6} parent=5 // pred_fallthru
        _
      %p385 = scmp.le.s32.totalorder 1, %s12
      %p386 = scmp.lt.s32.totalorder %s12, 25
      %p387 = pnand %p385, %p386
      %p388 = pneg %p387
      // Predicated region
      $region66: #{up_forward.6} parent=5 // pred_check
        _
      $region67: #{up_forward.6} parent=5 // pred_check_branch
        %390 = sbr.rel (%p387) target = $region69
      $region68: #{up_forward.6} parent=5 // pred_region
        %s391 = ssub.s32 %s12, 1
        %s392 = sand.u32 %s39, 1
        %s393 = sand.u32 %s39, 1
        %s394 = smul.addr %s393, 128
        %s395 = scalar_lea.vmem [#allocation3], %s394
        // Predicated region
        $region70: #{up_forward.6} parent=68 // pred_check
          %p396 = pneg %p52
        $region71: #{up_forward.6} parent=68 // pred_check_branch
          %398 = sbr.rel (%p396) target = $region73
        $region72: #{up_forward.6} parent=68 // pred_region
          _
        $region73: #{up_forward.6} parent=68 // pred_fallthru
          _
        %s399 = sand.u32 %s39, 1
        %s400 = sand.u32 %s39, 1
        %s401 = smul.addr %s400, 128
        %s402 = scalar_lea.vmem [#allocation3], %s401
        %p403 = pneg %p52
        %p404 = pneg %p49
        %s405 = smul.u32 16, %s22
        %p406 = scmp.lt.s32.totalorder %s405, 47
        %s407 = scalar_select %p406, %s405, 47
        %s408 = smul.addr %s407, 4
        %s409 = scalar_lea.vmem %s1, %s408
        %p410 = pneg %p78
        %p411 = pneg %p75
        %p412 = pneg %p99
        %p413 = pneg %p96
        %p414 = pneg %p125
        %p415 = pneg %p122
        %s416 = smul.u32 32, %s21
        %p417 = scmp.lt.s32.totalorder %s416, 255
        %s418 = scalar_select %p417, %s416, 255
        %s419 = smul.addr %s418, 4
        %s420 = scalar_lea.vmem %s3, %s419
        %p421 = pneg %p151
        %p422 = pneg %p148
        %p423 = scmp.lt.s32.totalorder %s21, 7
        %s424 = scalar_select %p423, %s21, 7
        %s425 = smul.addr %s424, 8
        %s426 = scalar_lea.vmem %s4, %s425
        %p427 = pneg %p177
        %p428 = pneg %p174
        %p429 = scmp.lt.s32.totalorder %s21, 7
        %s430 = scalar_select %p429, %s21, 7
        %s431 = smul.addr %s430, 8
        %s432 = scalar_lea.vmem %s5, %s431
        %s433 = smul.u32 32, %s21
        %s434 = smul.u32 16, %s22
        %p435 = scmp.lt.s32.totalorder %s434, 47
        %s436 = scalar_select %p435, %s434, 47
        %s437 = smul.addr %s436, 4
        %s438 = scalar_lea.vmem %s1, %s437
        %s439 = smul.u32 16, %s22
        %s440 = smul.u32 32, %s21
        %p441 = scmp.lt.s32.totalorder %s440, 255
        %s442 = scalar_select %p441, %s440, 255
        %s443 = smul.addr %s442, 4
        %s444 = scalar_lea.vmem %s3, %s443
        %s445 = smul.u32 32, %s21
        %p446 = scmp.lt.s32.totalorder %s21, 7
        %s447 = scalar_select %p446, %s21, 7
        %s448 = smul.addr %s447, 8
        %s449 = scalar_lea.vmem %s4, %s448
        %p450 = scmp.lt.s32.totalorder %s21, 7
        %s451 = scalar_select %p450, %s21, 7
        %s452 = smul.addr %s451, 8
        %s453 = scalar_lea.vmem %s5, %s452
        %p454 = scmp.eq.s32.totalorder %s22, 0
        // Predicated region
        $region74: #{up_forward.6} parent=68 // pred_check
          %p455 = pneg %p454
        $region75: #{up_forward.6} parent=68 // pred_check_branch
          %457 = sbr.rel (%p455) target = $region77
        $region76: #{up_forward.6} parent=68 // pred_region
          %458 = vst [vmem:[#allocation2] sm:$0xff] 0.0
          %459 = vst [vmem:[#allocation2 + $0x8] sm:$0xff] 0.0
          %460 = vst [vmem:[#allocation2 + $0x10] sm:$0xff] 0.0
          %461 = vst [vmem:[#allocation2 + $0x18] sm:$0xff] 0.0
          %462 = vst [vmem:[#allocation2 + $0x20] sm:$0xff] 0.0
          %463 = vst [vmem:[#allocation2 + $0x28] sm:$0xff] 0.0
          %464 = vst [vmem:[#allocation2 + $0x30] sm:$0xff] 0.0
          %465 = vst [vmem:[#allocation2 + $0x38] sm:$0xff] 0.0
          %466 = vst [vmem:[#allocation2 + $0x40] sm:$0xff] 0.0
          %467 = vst [vmem:[#allocation2 + $0x48] sm:$0xff] 0.0
          %468 = vst [vmem:[#allocation2 + $0x50] sm:$0xff] 0.0
          %469 = vst [vmem:[#allocation2 + $0x58] sm:$0xff] 0.0
          %470 = vst [vmem:[#allocation2 + $0x60] sm:$0xff] 0.0
          %471 = vst [vmem:[#allocation2 + $0x68] sm:$0xff] 0.0
          %472 = vst [vmem:[#allocation2 + $0x70] sm:$0xff] 0.0
          %473 = vst [vmem:[#allocation2 + $0x78] sm:$0xff] 0.0
          %474 = vst [vmem:[#allocation2 + $0x80] sm:$0xff] 0.0
          %475 = vst [vmem:[#allocation2 + $0x88] sm:$0xff] 0.0
          %476 = vst [vmem:[#allocation2 + $0x90] sm:$0xff] 0.0
          %477 = vst [vmem:[#allocation2 + $0x98] sm:$0xff] 0.0
          %478 = vst [vmem:[#allocation2 + $0xa0] sm:$0xff] 0.0
          %479 = vst [vmem:[#allocation2 + $0xa8] sm:$0xff] 0.0
          %480 = vst [vmem:[#allocation2 + $0xb0] sm:$0xff] 0.0
          %481 = vst [vmem:[#allocation2 + $0xb8] sm:$0xff] 0.0
          %482 = vst [vmem:[#allocation2 + $0xc0] sm:$0xff] 0.0
          %483 = vst [vmem:[#allocation2 + $0xc8] sm:$0xff] 0.0
          %484 = vst [vmem:[#allocation2 + $0xd0] sm:$0xff] 0.0
          %485 = vst [vmem:[#allocation2 + $0xd8] sm:$0xff] 0.0
          %486 = vst [vmem:[#allocation2 + $0xe0] sm:$0xff] 0.0
          %487 = vst [vmem:[#allocation2 + $0xe8] sm:$0xff] 0.0
          %488 = vst [vmem:[#allocation2 + $0xf0] sm:$0xff] 0.0
          %489 = vst [vmem:[#allocation2 + $0xf8] sm:$0xff] 0.0
        $region77: #{up_forward.6} parent=68 // pred_fallthru
          _
        %v490 = vld [vmem:[#allocation2] sm:$0xff]
        %v491 = vld [vmem:[#allocation2 + $0x8] sm:$0xff]
        %v492 = vld [vmem:[#allocation2 + $0x10] sm:$0xff]
        %v493 = vld [vmem:[#allocation2 + $0x18] sm:$0xff]
        %v494 = vld [vmem:[#allocation2 + $0x20] sm:$0xff]
        %v495 = vld [vmem:[#allocation2 + $0x28] sm:$0xff]
        %v496 = vld [vmem:[#allocation2 + $0x30] sm:$0xff]
        %v497 = vld [vmem:[#allocation2 + $0x38] sm:$0xff]
        %v498 = vld [vmem:[#allocation2 + $0x40] sm:$0xff]
        %v499 = vld [vmem:[#allocation2 + $0x48] sm:$0xff]
        %v500 = vld [vmem:[#allocation2 + $0x50] sm:$0xff]
        %v501 = vld [vmem:[#allocation2 + $0x58] sm:$0xff]
        %v502 = vld [vmem:[#allocation2 + $0x60] sm:$0xff]
        %v503 = vld [vmem:[#allocation2 + $0x68] sm:$0xff]
        %v504 = vld [vmem:[#allocation2 + $0x70] sm:$0xff]
        %v505 = vld [vmem:[#allocation2 + $0x78] sm:$0xff]
        %v506 = vld [vmem:[#allocation2 + $0x80] sm:$0xff]
        %v507 = vld [vmem:[#allocation2 + $0x88] sm:$0xff]
        %v508 = vld [vmem:[#allocation2 + $0x90] sm:$0xff]
        %v509 = vld [vmem:[#allocation2 + $0x98] sm:$0xff]
        %v510 = vld [vmem:[#allocation2 + $0xa0] sm:$0xff]
        %v511 = vld [vmem:[#allocation2 + $0xa8] sm:$0xff]
        %v512 = vld [vmem:[#allocation2 + $0xb0] sm:$0xff]
        %v513 = vld [vmem:[#allocation2 + $0xb8] sm:$0xff]
        %v514 = vld [vmem:[#allocation2 + $0xc0] sm:$0xff]
        %v515 = vld [vmem:[#allocation2 + $0xc8] sm:$0xff]
        %v516 = vld [vmem:[#allocation2 + $0xd0] sm:$0xff]
        %v517 = vld [vmem:[#allocation2 + $0xd8] sm:$0xff]
        %v518 = vld [vmem:[#allocation2 + $0xe0] sm:$0xff]
        %v519 = vld [vmem:[#allocation2 + $0xe8] sm:$0xff]
        %v520 = vld [vmem:[#allocation2 + $0xf0] sm:$0xff]
        %v521 = vld [vmem:[#allocation2 + $0xf8] sm:$0xff]
        %v522 = vld [vmem:[%s395] sm:$0xf]
        %v523 = vld [vmem:[%s395 + $0x4] sm:$0xf]
        %v524 = vld [vmem:[%s395 + $0x8] sm:$0xf]
        %v525 = vld [vmem:[%s395 + $0xc] sm:$0xf]
        %v526 = vld [vmem:[%s395 + $0x10] sm:$0xf]
        %v527 = vld [vmem:[%s395 + $0x14] sm:$0xf]
        %v528 = vld [vmem:[%s395 + $0x18] sm:$0xf]
        %v529 = vld [vmem:[%s395 + $0x1c] sm:$0xf]
        %v530 = vld [vmem:[%s395 + $0x20] sm:$0xf]
        %v531 = vld [vmem:[%s395 + $0x24] sm:$0xf]
        %v532 = vld [vmem:[%s395 + $0x28] sm:$0xf]
        %v533 = vld [vmem:[%s395 + $0x2c] sm:$0xf]
        %v534 = vld [vmem:[%s395 + $0x30] sm:$0xf]
        %v535 = vld [vmem:[%s395 + $0x34] sm:$0xf]
        %v536 = vld [vmem:[%s395 + $0x38] sm:$0xf]
        %v537 = vld [vmem:[%s395 + $0x3c] sm:$0xf]
        %v538 = vld [vmem:[%s395 + $0x40] sm:$0xf]
        %v539 = vld [vmem:[%s395 + $0x44] sm:$0xf]
        %v540 = vld [vmem:[%s395 + $0x48] sm:$0xf]
        %v541 = vld [vmem:[%s395 + $0x4c] sm:$0xf]
        %v542 = vld [vmem:[%s395 + $0x50] sm:$0xf]
        %v543 = vld [vmem:[%s395 + $0x54] sm:$0xf]
        %v544 = vld [vmem:[%s395 + $0x58] sm:$0xf]
        %v545 = vld [vmem:[%s395 + $0x5c] sm:$0xf]
        %v546 = vld [vmem:[%s395 + $0x60] sm:$0xf]
        %v547 = vld [vmem:[%s395 + $0x64] sm:$0xf]
        %v548 = vld [vmem:[%s395 + $0x68] sm:$0xf]
        %v549 = vld [vmem:[%s395 + $0x6c] sm:$0xf]
        %v550 = vld [vmem:[%s395 + $0x70] sm:$0xf]
        %v551 = vld [vmem:[%s395 + $0x74] sm:$0xf]
        %v552 = vld [vmem:[%s395 + $0x78] sm:$0xf]
        %v553 = vld [vmem:[%s395 + $0x7c] sm:$0xf]
        %v554 = vld [vmem:[%s438] sm:$0xf]
        %v555 = vld [vmem:[%s438 + $0x4] sm:$0xf]
        %v556 = vld [vmem:[%s438 + $0x8] sm:$0xf]
        %v557 = vld [vmem:[%s438 + $0xc] sm:$0xf]
        %v558 = vld [vmem:[%s438 + $0x10] sm:$0xf]
        %v559 = vld [vmem:[%s438 + $0x14] sm:$0xf]
        %v560 = vld [vmem:[%s438 + $0x18] sm:$0xf]
        %v561 = vld [vmem:[%s438 + $0x1c] sm:$0xf]
        %v562 = vld [vmem:[%s438 + $0x20] sm:$0xf]
        %v563 = vld [vmem:[%s438 + $0x24] sm:$0xf]
        %v564 = vld [vmem:[%s438 + $0x28] sm:$0xf]
        %v565 = vld [vmem:[%s438 + $0x2c] sm:$0xf]
        %v566 = vld [vmem:[%s438 + $0x30] sm:$0xf]
        %v567 = vld [vmem:[%s438 + $0x34] sm:$0xf]
        %v568 = vld [vmem:[%s438 + $0x38] sm:$0xf]
        %v569 = vld [vmem:[%s438 + $0x3c] sm:$0xf]
        %v602 = vunpack.c.l.b16 %v522
        %v603 = vunpack.c.l.b16 %v523
        %v604 = vunpack.c.l.b16 %v524
        %v605 = vunpack.c.l.b16 %v525
        %v606 = vunpack.c.l.b16 %v526
        %v607 = vunpack.c.l.b16 %v527
        %v608 = vunpack.c.l.b16 %v528
        %v609 = vunpack.c.l.b16 %v529
        %v610 = vunpack.c.l.b16 %v530
        %v611 = vunpack.c.l.b16 %v531
        %v612 = vunpack.c.l.b16 %v532
        %v613 = vunpack.c.l.b16 %v533
        %v614 = vunpack.c.l.b16 %v534
        %v615 = vunpack.c.l.b16 %v535
        %v616 = vunpack.c.l.b16 %v536
        %v617 = vunpack.c.l.b16 %v537
        %v618 = vunpack.c.l.b16 %v538
        %v619 = vunpack.c.l.b16 %v539
        %v620 = vunpack.c.l.b16 %v540
        %v621 = vunpack.c.l.b16 %v541
        %v622 = vunpack.c.l.b16 %v542
        %v623 = vunpack.c.l.b16 %v543
        %v624 = vunpack.c.l.b16 %v544
        %v625 = vunpack.c.l.b16 %v545
        %v626 = vunpack.c.l.b16 %v546
        %v627 = vunpack.c.l.b16 %v547
        %v628 = vunpack.c.l.b16 %v548
        %v629 = vunpack.c.l.b16 %v549
        %v630 = vunpack.c.l.b16 %v550
        %v631 = vunpack.c.l.b16 %v551
        %v632 = vunpack.c.l.b16 %v552
        %v633 = vunpack.c.l.b16 %v553
        %v634 = vpack.c.b16 %v603, %v602
        %v635 = vpack.c.b16 %v605, %v604
        %v636 = vpack.c.b16 %v607, %v606
        %v637 = vpack.c.b16 %v609, %v608
        %v638 = vpack.c.b16 %v611, %v610
        %v639 = vpack.c.b16 %v613, %v612
        %v640 = vpack.c.b16 %v615, %v614
        %v641 = vpack.c.b16 %v617, %v616
        %v642 = vpack.c.b16 %v619, %v618
        %v643 = vpack.c.b16 %v621, %v620
        %v644 = vpack.c.b16 %v623, %v622
        %v645 = vpack.c.b16 %v625, %v624
        %v646 = vpack.c.b16 %v627, %v626
        %v647 = vpack.c.b16 %v629, %v628
        %v648 = vpack.c.b16 %v631, %v630
        %v649 = vpack.c.b16 %v633, %v632
        %v682 = vunpack.c.l.b16 %v554
        %v683 = vunpack.c.l.b16 %v555
        %v684 = vunpack.c.l.b16 %v556
        %v685 = vunpack.c.l.b16 %v557
        %v686 = vunpack.c.l.b16 %v558
        %v687 = vunpack.c.l.b16 %v559
        %v688 = vunpack.c.l.b16 %v560
        %v689 = vunpack.c.l.b16 %v561
        %v690 = vunpack.c.l.b16 %v562
        %v691 = vunpack.c.l.b16 %v563
        %v692 = vunpack.c.l.b16 %v564
        %v693 = vunpack.c.l.b16 %v565
        %v694 = vunpack.c.l.b16 %v566
        %v695 = vunpack.c.l.b16 %v567
        %v696 = vunpack.c.l.b16 %v568
        %v697 = vunpack.c.l.b16 %v569
        %v698 = vpack.c.b16 %v683, %v682
        %v699 = vpack.c.b16 %v685, %v684
        %v700 = vpack.c.b16 %v687, %v686
        %v701 = vpack.c.b16 %v689, %v688
        %v702 = vpack.c.b16 %v691, %v690
        %v703 = vpack.c.b16 %v693, %v692
        %v704 = vpack.c.b16 %v695, %v694
        %v705 = vpack.c.b16 %v697, %v696
        %714 = vmatpush.bf16.msra.mxu0 %v705
        %715 = vmatpush.bf16.msra.mxu0 %v704
        %716 = vmatpush.bf16.msra.mxu0 %v703
        %717 = vmatpush.bf16.msra.mxu0 %v702
        %718 = vmatpush.bf16.msra.mxu0 %v701
        %719 = vmatpush.bf16.msra.mxu0 %v700
        %720 = vmatpush.bf16.msra.mxu0 %v699
        %721 = vmatpush.bf16.msra.mxu0 %v698
        %722 = vmatmul.bf16.gmra.mxu0 %v634
        %v723 = vpop.f32.mrf.mxu0
        %v724 = vadd.f32 0.0, %v723
        %v725 = vpop.f32.mrf.mxu0
        %v726 = vadd.f32 0.0, %v725
        %727 = vmatmul.bf16.gmra.mxu0 %v635
        %v728 = vpop.f32.mrf.mxu0
        %v729 = vadd.f32 0.0, %v728
        %v730 = vpop.f32.mrf.mxu0
        %v731 = vadd.f32 0.0, %v730
        %732 = vmatmul.bf16.gmra.mxu0 %v636
        %v733 = vpop.f32.mrf.mxu0
        %v734 = vadd.f32 0.0, %v733
        %v735 = vpop.f32.mrf.mxu0
        %v736 = vadd.f32 0.0, %v735
        %737 = vmatmul.bf16.gmra.mxu0 %v637
        %v738 = vpop.f32.mrf.mxu0
        %v739 = vadd.f32 0.0, %v738
        %v740 = vpop.f32.mrf.mxu0
        %v741 = vadd.f32 0.0, %v740
        %742 = vmatmul.bf16.gmra.mxu0 %v638
        %v743 = vpop.f32.mrf.mxu0
        %v744 = vadd.f32 0.0, %v743
        %v745 = vpop.f32.mrf.mxu0
        %v746 = vadd.f32 0.0, %v745
        %747 = vmatmul.bf16.gmra.mxu0 %v639
        %v748 = vpop.f32.mrf.mxu0
        %v749 = vadd.f32 0.0, %v748
        %v750 = vpop.f32.mrf.mxu0
        %v751 = vadd.f32 0.0, %v750
        %752 = vmatmul.bf16.gmra.mxu0 %v640
        %v753 = vpop.f32.mrf.mxu0
        %v754 = vadd.f32 0.0, %v753
        %v755 = vpop.f32.mrf.mxu0
        %v756 = vadd.f32 0.0, %v755
        %757 = vmatmul.bf16.gmra.mxu0 %v641
        %v758 = vpop.f32.mrf.mxu0
        %v759 = vadd.f32 0.0, %v758
        %v760 = vpop.f32.mrf.mxu0
        %v761 = vadd.f32 0.0, %v760
        %762 = vmatmul.bf16.gmra.mxu0 %v642
        %v763 = vpop.f32.mrf.mxu0
        %v764 = vadd.f32 0.0, %v763
        %v765 = vpop.f32.mrf.mxu0
        %v766 = vadd.f32 0.0, %v765
        %767 = vmatmul.bf16.gmra.mxu0 %v643
        %v768 = vpop.f32.mrf.mxu0
        %v769 = vadd.f32 0.0, %v768
        %v770 = vpop.f32.mrf.mxu0
        %v771 = vadd.f32 0.0, %v770
        %772 = vmatmul.bf16.gmra.mxu0 %v644
        %v773 = vpop.f32.mrf.mxu0
        %v774 = vadd.f32 0.0, %v773
        %v775 = vpop.f32.mrf.mxu0
        %v776 = vadd.f32 0.0, %v775
        %777 = vmatmul.bf16.gmra.mxu0 %v645
        %v778 = vpop.f32.mrf.mxu0
        %v779 = vadd.f32 0.0, %v778
        %v780 = vpop.f32.mrf.mxu0
        %v781 = vadd.f32 0.0, %v780
        %782 = vmatmul.bf16.gmra.mxu0 %v646
        %v783 = vpop.f32.mrf.mxu0
        %v784 = vadd.f32 0.0, %v783
        %v785 = vpop.f32.mrf.mxu0
        %v786 = vadd.f32 0.0, %v785
        %787 = vmatmul.bf16.gmra.mxu0 %v647
        %v788 = vpop.f32.mrf.mxu0
        %v789 = vadd.f32 0.0, %v788
        %v790 = vpop.f32.mrf.mxu0
        %v791 = vadd.f32 0.0, %v790
        %792 = vmatmul.bf16.gmra.mxu0 %v648
        %v793 = vpop.f32.mrf.mxu0
        %v794 = vadd.f32 0.0, %v793
        %v795 = vpop.f32.mrf.mxu0
        %v796 = vadd.f32 0.0, %v795
        %797 = vmatmul.bf16.gmra.mxu0 %v649
        %v798 = vpop.f32.mrf.mxu0
        %v799 = vadd.f32 0.0, %v798
        %v800 = vpop.f32.mrf.mxu0
        %v801 = vadd.f32 0.0, %v800
        %802 = vdwg.mxu0
        %v803 = vadd.f32 %v490, %v724
        %v804 = vadd.f32 %v491, %v726
        %v805 = vadd.f32 %v492, %v729
        %v806 = vadd.f32 %v493, %v731
        %v807 = vadd.f32 %v494, %v734
        %v808 = vadd.f32 %v495, %v736
        %v809 = vadd.f32 %v496, %v739
        %v810 = vadd.f32 %v497, %v741
        %v811 = vadd.f32 %v498, %v744
        %v812 = vadd.f32 %v499, %v746
        %v813 = vadd.f32 %v500, %v749
        %v814 = vadd.f32 %v501, %v751
        %v815 = vadd.f32 %v502, %v754
        %v816 = vadd.f32 %v503, %v756
        %v817 = vadd.f32 %v504, %v759
        %v818 = vadd.f32 %v505, %v761
        %v819 = vadd.f32 %v506, %v764
        %v820 = vadd.f32 %v507, %v766
        %v821 = vadd.f32 %v508, %v769
        %v822 = vadd.f32 %v509, %v771
        %v823 = vadd.f32 %v510, %v774
        %v824 = vadd.f32 %v511, %v776
        %v825 = vadd.f32 %v512, %v779
        %v826 = vadd.f32 %v513, %v781
        %v827 = vadd.f32 %v514, %v784
        %v828 = vadd.f32 %v515, %v786
        %v829 = vadd.f32 %v516, %v789
        %v830 = vadd.f32 %v517, %v791
        %v831 = vadd.f32 %v518, %v794
        %v832 = vadd.f32 %v519, %v796
        %v833 = vadd.f32 %v520, %v799
        %v834 = vadd.f32 %v521, %v801
        %835 = vst [vmem:[#allocation2] sm:$0xff] %v803
        %836 = vst [vmem:[#allocation2 + $0x8] sm:$0xff] %v804
        %837 = vst [vmem:[#allocation2 + $0x10] sm:$0xff] %v805
        %838 = vst [vmem:[#allocation2 + $0x18] sm:$0xff] %v806
        %839 = vst [vmem:[#allocation2 + $0x20] sm:$0xff] %v807
        %840 = vst [vmem:[#allocation2 + $0x28] sm:$0xff] %v808
        %841 = vst [vmem:[#allocation2 + $0x30] sm:$0xff] %v809
        %842 = vst [vmem:[#allocation2 + $0x38] sm:$0xff] %v810
        %843 = vst [vmem:[#allocation2 + $0x40] sm:$0xff] %v811
        %844 = vst [vmem:[#allocation2 + $0x48] sm:$0xff] %v812
        %845 = vst [vmem:[#allocation2 + $0x50] sm:$0xff] %v813
        %846 = vst [vmem:[#allocation2 + $0x58] sm:$0xff] %v814
        %847 = vst [vmem:[#allocation2 + $0x60] sm:$0xff] %v815
        %848 = vst [vmem:[#allocation2 + $0x68] sm:$0xff] %v816
        %849 = vst [vmem:[#allocation2 + $0x70] sm:$0xff] %v817
        %850 = vst [vmem:[#allocation2 + $0x78] sm:$0xff] %v818
        %851 = vst [vmem:[#allocation2 + $0x80] sm:$0xff] %v819
        %852 = vst [vmem:[#allocation2 + $0x88] sm:$0xff] %v820
        %853 = vst [vmem:[#allocation2 + $0x90] sm:$0xff] %v821
        %854 = vst [vmem:[#allocation2 + $0x98] sm:$0xff] %v822
        %855 = vst [vmem:[#allocation2 + $0xa0] sm:$0xff] %v823
        %856 = vst [vmem:[#allocation2 + $0xa8] sm:$0xff] %v824
        %857 = vst [vmem:[#allocation2 + $0xb0] sm:$0xff] %v825
        %858 = vst [vmem:[#allocation2 + $0xb8] sm:$0xff] %v826
        %859 = vst [vmem:[#allocation2 + $0xc0] sm:$0xff] %v827
        %860 = vst [vmem:[#allocation2 + $0xc8] sm:$0xff] %v828
        %861 = vst [vmem:[#allocation2 + $0xd0] sm:$0xff] %v829
        %862 = vst [vmem:[#allocation2 + $0xd8] sm:$0xff] %v830
        %863 = vst [vmem:[#allocation2 + $0xe0] sm:$0xff] %v831
        %864 = vst [vmem:[#allocation2 + $0xe8] sm:$0xff] %v832
        %865 = vst [vmem:[#allocation2 + $0xf0] sm:$0xff] %v833
        %866 = vst [vmem:[#allocation2 + $0xf8] sm:$0xff] %v834
        %p867 = scmp.eq.s32.totalorder %s22, 2
        // Predicated region
        $region78: #{up_forward.6} parent=68 // pred_check
          %p868 = pneg %p867
        $region79: #{up_forward.6} parent=68 // pred_check_branch
          %870 = sbr.rel (%p868) target = $region81
        $region80: #{up_forward.6} parent=68 // pred_region
          %v871 = vld [vmem:[#allocation2] sm:$0xff]
          %v872 = vld [vmem:[#allocation2 + $0x8] sm:$0xff]
          %v873 = vld [vmem:[#allocation2 + $0x10] sm:$0xff]
          %v874 = vld [vmem:[#allocation2 + $0x18] sm:$0xff]
          %v875 = vld [vmem:[#allocation2 + $0x20] sm:$0xff]
          %v876 = vld [vmem:[#allocation2 + $0x28] sm:$0xff]
          %v877 = vld [vmem:[#allocation2 + $0x30] sm:$0xff]
          %v878 = vld [vmem:[#allocation2 + $0x38] sm:$0xff]
          %v879 = vld [vmem:[#allocation2 + $0x40] sm:$0xff]
          %v880 = vld [vmem:[#allocation2 + $0x48] sm:$0xff]
          %v881 = vld [vmem:[#allocation2 + $0x50] sm:$0xff]
          %v882 = vld [vmem:[#allocation2 + $0x58] sm:$0xff]
          %v883 = vld [vmem:[#allocation2 + $0x60] sm:$0xff]
          %v884 = vld [vmem:[#allocation2 + $0x68] sm:$0xff]
          %v885 = vld [vmem:[#allocation2 + $0x70] sm:$0xff]
          %v886 = vld [vmem:[#allocation2 + $0x78] sm:$0xff]
          %v887 = vld [vmem:[#allocation2 + $0x80] sm:$0xff]
          %v888 = vld [vmem:[#allocation2 + $0x88] sm:$0xff]
          %v889 = vld [vmem:[#allocation2 + $0x90] sm:$0xff]
          %v890 = vld [vmem:[#allocation2 + $0x98] sm:$0xff]
          %v891 = vld [vmem:[#allocation2 + $0xa0] sm:$0xff]
          %v892 = vld [vmem:[#allocation2 + $0xa8] sm:$0xff]
          %v893 = vld [vmem:[#allocation2 + $0xb0] sm:$0xff]
          %v894 = vld [vmem:[#allocation2 + $0xb8] sm:$0xff]
          %v895 = vld [vmem:[#allocation2 + $0xc0] sm:$0xff]
          %v896 = vld [vmem:[#allocation2 + $0xc8] sm:$0xff]
          %v897 = vld [vmem:[#allocation2 + $0xd0] sm:$0xff]
          %v898 = vld [vmem:[#allocation2 + $0xd8] sm:$0xff]
          %v899 = vld [vmem:[#allocation2 + $0xe0] sm:$0xff]
          %v900 = vld [vmem:[#allocation2 + $0xe8] sm:$0xff]
          %v901 = vld [vmem:[#allocation2 + $0xf0] sm:$0xff]
          %v902 = vld [vmem:[#allocation2 + $0xf8] sm:$0xff]
          %v903 = vld [vmem:[%s2] sm:$0x1]
          %v905 = vperm.slane %v903, 0
          %v907 = vadd.f32 %v871, %v905
          %v908 = vadd.f32 %v872, %v905
          %v909 = vadd.f32 %v873, %v905
          %v910 = vadd.f32 %v874, %v905
          %v911 = vadd.f32 %v875, %v905
          %v912 = vadd.f32 %v876, %v905
          %v913 = vadd.f32 %v877, %v905
          %v914 = vadd.f32 %v878, %v905
          %v915 = vadd.f32 %v879, %v905
          %v916 = vadd.f32 %v880, %v905
          %v917 = vadd.f32 %v881, %v905
          %v918 = vadd.f32 %v882, %v905
          %v919 = vadd.f32 %v883, %v905
          %v920 = vadd.f32 %v884, %v905
          %v921 = vadd.f32 %v885, %v905
          %v922 = vadd.f32 %v886, %v905
          %v923 = vadd.f32 %v887, %v905
          %v924 = vadd.f32 %v888, %v905
          %v925 = vadd.f32 %v889, %v905
          %v926 = vadd.f32 %v890, %v905
          %v927 = vadd.f32 %v891, %v905
          %v928 = vadd.f32 %v892, %v905
          %v929 = vadd.f32 %v893, %v905
          %v930 = vadd.f32 %v894, %v905
          %v931 = vadd.f32 %v895, %v905
          %v932 = vadd.f32 %v896, %v905
          %v933 = vadd.f32 %v897, %v905
          %v934 = vadd.f32 %v898, %v905
          %v935 = vadd.f32 %v899, %v905
          %v936 = vadd.f32 %v900, %v905
          %v937 = vadd.f32 %v901, %v905
          %v938 = vadd.f32 %v902, %v905
          %v939 = vpack.c.bf16 %v907, %v907
          %v940 = vpack.c.bf16 %v908, %v908
          %v941 = vpack.c.bf16 %v909, %v909
          %v942 = vpack.c.bf16 %v910, %v910
          %v943 = vpack.c.bf16 %v911, %v911
          %v944 = vpack.c.bf16 %v912, %v912
          %v945 = vpack.c.bf16 %v913, %v913
          %v946 = vpack.c.bf16 %v914, %v914
          %v947 = vpack.c.bf16 %v915, %v915
          %v948 = vpack.c.bf16 %v916, %v916
          %v949 = vpack.c.bf16 %v917, %v917
          %v950 = vpack.c.bf16 %v918, %v918
          %v951 = vpack.c.bf16 %v919, %v919
          %v952 = vpack.c.bf16 %v920, %v920
          %v953 = vpack.c.bf16 %v921, %v921
          %v954 = vpack.c.bf16 %v922, %v922
          %v955 = vpack.c.bf16 %v923, %v923
          %v956 = vpack.c.bf16 %v924, %v924
          %v957 = vpack.c.bf16 %v925, %v925
          %v958 = vpack.c.bf16 %v926, %v926
          %v959 = vpack.c.bf16 %v927, %v927
          %v960 = vpack.c.bf16 %v928, %v928
          %v961 = vpack.c.bf16 %v929, %v929
          %v962 = vpack.c.bf16 %v930, %v930
          %v963 = vpack.c.bf16 %v931, %v931
          %v964 = vpack.c.bf16 %v932, %v932
          %v965 = vpack.c.bf16 %v933, %v933
          %v966 = vpack.c.bf16 %v934, %v934
          %v967 = vpack.c.bf16 %v935, %v935
          %v968 = vpack.c.bf16 %v936, %v936
          %v969 = vpack.c.bf16 %v937, %v937
          %v970 = vpack.c.bf16 %v938, %v938
          %971 = vst [vmem:[%s444] sm:$0xf] %v939
          %972 = vst [vmem:[%s444 + $0x4] sm:$0xf] %v940
          %973 = vst [vmem:[%s444 + $0x8] sm:$0xf] %v941
          %974 = vst [vmem:[%s444 + $0xc] sm:$0xf] %v942
          %975 = vst [vmem:[%s444 + $0x10] sm:$0xf] %v943
          %976 = vst [vmem:[%s444 + $0x14] sm:$0xf] %v944
          %977 = vst [vmem:[%s444 + $0x18] sm:$0xf] %v945
          %978 = vst [vmem:[%s444 + $0x1c] sm:$0xf] %v946
          %979 = vst [vmem:[%s444 + $0x20] sm:$0xf] %v947
          %980 = vst [vmem:[%s444 + $0x24] sm:$0xf] %v948
          %981 = vst [vmem:[%s444 + $0x28] sm:$0xf] %v949
          %982 = vst [vmem:[%s444 + $0x2c] sm:$0xf] %v950
          %983 = vst [vmem:[%s444 + $0x30] sm:$0xf] %v951
          %984 = vst [vmem:[%s444 + $0x34] sm:$0xf] %v952
          %985 = vst [vmem:[%s444 + $0x38] sm:$0xf] %v953
          %986 = vst [vmem:[%s444 + $0x3c] sm:$0xf] %v954
          %987 = vst [vmem:[%s444 + $0x40] sm:$0xf] %v955
          %988 = vst [vmem:[%s444 + $0x44] sm:$0xf] %v956
          %989 = vst [vmem:[%s444 + $0x48] sm:$0xf] %v957
          %990 = vst [vmem:[%s444 + $0x4c] sm:$0xf] %v958
          %991 = vst [vmem:[%s444 + $0x50] sm:$0xf] %v959
          %992 = vst [vmem:[%s444 + $0x54] sm:$0xf] %v960
          %993 = vst [vmem:[%s444 + $0x58] sm:$0xf] %v961
          %994 = vst [vmem:[%s444 + $0x5c] sm:$0xf] %v962
          %995 = vst [vmem:[%s444 + $0x60] sm:$0xf] %v963
          %996 = vst [vmem:[%s444 + $0x64] sm:$0xf] %v964
          %997 = vst [vmem:[%s444 + $0x68] sm:$0xf] %v965
          %998 = vst [vmem:[%s444 + $0x6c] sm:$0xf] %v966
          %999 = vst [vmem:[%s444 + $0x70] sm:$0xf] %v967
          %1000 = vst [vmem:[%s444 + $0x74] sm:$0xf] %v968
          %1001 = vst [vmem:[%s444 + $0x78] sm:$0xf] %v969
          %1002 = vst [vmem:[%s444 + $0x7c] sm:$0xf] %v970
          %v1003 = vadd.f32 %v907, %v908
          %v1004 = vadd.f32 %v1003, %v909
          %v1005 = vadd.f32 %v1004, %v910
          %v1006 = vadd.f32 %v1005, %v911
          %v1007 = vadd.f32 %v1006, %v912
          %v1008 = vadd.f32 %v1007, %v913
          %v1009 = vadd.f32 %v1008, %v914
          %v1010 = vadd.f32 %v1009, %v915
          %v1011 = vadd.f32 %v1010, %v916
          %v1012 = vadd.f32 %v1011, %v917
          %v1013 = vadd.f32 %v1012, %v918
          %v1014 = vadd.f32 %v1013, %v919
          %v1015 = vadd.f32 %v1014, %v920
          %v1016 = vadd.f32 %v1015, %v921
          %v1017 = vadd.f32 %v1016, %v922
          %v1018 = vadd.f32 %v1017, %v923
          %v1019 = vadd.f32 %v1018, %v924
          %v1020 = vadd.f32 %v1019, %v925
          %v1021 = vadd.f32 %v1020, %v926
          %v1022 = vadd.f32 %v1021, %v927
          %v1023 = vadd.f32 %v1022, %v928
          %v1024 = vadd.f32 %v1023, %v929
          %v1025 = vadd.f32 %v1024, %v930
          %v1026 = vadd.f32 %v1025, %v931
          %v1027 = vadd.f32 %v1026, %v932
          %v1028 = vadd.f32 %v1027, %v933
          %v1029 = vadd.f32 %v1028, %v934
          %v1030 = vadd.f32 %v1029, %v935
          %v1031 = vadd.f32 %v1030, %v936
          %v1032 = vadd.f32 %v1031, %v937
          %v1033 = vadd.f32 %v1032, %v938
          %v1034 = vrot.slane %v1033, 4
          %v1035 = vadd.f32 %v1033, %v1034
          %v1036 = vrot.slane %v1035, 2
          %v1037 = vadd.f32 %v1035, %v1036
          %v1038 = vrot.slane %v1037, 1
          %v1039 = vadd.f32 %v1037, %v1038
          %v1040 = vmul.f32 %v907, %v907
          %v1041 = vmul.f32 %v908, %v908
          %v1042 = vmul.f32 %v909, %v909
          %v1043 = vmul.f32 %v910, %v910
          %v1044 = vmul.f32 %v911, %v911
          %v1045 = vmul.f32 %v912, %v912
          %v1046 = vmul.f32 %v913, %v913
          %v1047 = vmul.f32 %v914, %v914
          %v1048 = vmul.f32 %v915, %v915
          %v1049 = vmul.f32 %v916, %v916
          %v1050 = vmul.f32 %v917, %v917
          %v1051 = vmul.f32 %v918, %v918
          %v1052 = vmul.f32 %v919, %v919
          %v1053 = vmul.f32 %v920, %v920
          %v1054 = vmul.f32 %v921, %v921
          %v1055 = vmul.f32 %v922, %v922
          %v1056 = vmul.f32 %v923, %v923
          %v1057 = vmul.f32 %v924, %v924
          %v1058 = vmul.f32 %v925, %v925
          %v1059 = vmul.f32 %v926, %v926
          %v1060 = vmul.f32 %v927, %v927
          %v1061 = vmul.f32 %v928, %v928
          %v1062 = vmul.f32 %v929, %v929
          %v1063 = vmul.f32 %v930, %v930
          %v1064 = vmul.f32 %v931, %v931
          %v1065 = vmul.f32 %v932, %v932
          %v1066 = vmul.f32 %v933, %v933
          %v1067 = vmul.f32 %v934, %v934
          %v1068 = vmul.f32 %v935, %v935
          %v1069 = vmul.f32 %v936, %v936
          %v1070 = vmul.f32 %v937, %v937
          %v1071 = vmul.f32 %v938, %v938
          %v1072 = vadd.f32 %v1040, %v1041
          %v1073 = vadd.f32 %v1072, %v1042
          %v1074 = vadd.f32 %v1073, %v1043
          %v1075 = vadd.f32 %v1074, %v1044
          %v1076 = vadd.f32 %v1075, %v1045
          %v1077 = vadd.f32 %v1076, %v1046
          %v1078 = vadd.f32 %v1077, %v1047
          %v1079 = vadd.f32 %v1078, %v1048
          %v1080 = vadd.f32 %v1079, %v1049
          %v1081 = vadd.f32 %v1080, %v1050
          %v1082 = vadd.f32 %v1081, %v1051
          %v1083 = vadd.f32 %v1082, %v1052
          %v1084 = vadd.f32 %v1083, %v1053
          %v1085 = vadd.f32 %v1084, %v1054
          %v1086 = vadd.f32 %v1085, %v1055
          %v1087 = vadd.f32 %v1086, %v1056
          %v1088 = vadd.f32 %v1087, %v1057
          %v1089 = vadd.f32 %v1088, %v1058
          %v1090 = vadd.f32 %v1089, %v1059
          %v1091 = vadd.f32 %v1090, %v1060
          %v1092 = vadd.f32 %v1091, %v1061
          %v1093 = vadd.f32 %v1092, %v1062
          %v1094 = vadd.f32 %v1093, %v1063
          %v1095 = vadd.f32 %v1094, %v1064
          %v1096 = vadd.f32 %v1095, %v1065
          %v1097 = vadd.f32 %v1096, %v1066
          %v1098 = vadd.f32 %v1097, %v1067
          %v1099 = vadd.f32 %v1098, %v1068
          %v1100 = vadd.f32 %v1099, %v1069
          %v1101 = vadd.f32 %v1100, %v1070
          %v1102 = vadd.f32 %v1101, %v1071
          %v1103 = vrot.slane %v1102, 4
          %v1104 = vadd.f32 %v1102, %v1103
          %v1105 = vrot.slane %v1104, 2
          %v1106 = vadd.f32 %v1104, %v1105
          %v1107 = vrot.slane %v1106, 1
          %v1108 = vadd.f32 %v1106, %v1107
          %1109 = vst [vmem:[%s449] sm:$0xff] %v1039
          %1110 = vst [vmem:[%s453] sm:$0xff] %v1108
        $region81: #{up_forward.6} parent=68 // pred_fallthru
          _
        %s1111 = smul.u32 32, %s21
        %p1112 = scmp.lt.s32.totalorder %s1111, 255
        %s1113 = scalar_select %p1112, %s1111, 255
        %s1114 = smul.addr %s1113, 4
        %s1115 = scalar_lea.vmem %s3, %s1114
        %p1116 = scmp.lt.s32.totalorder %s21, 7
        %s1117 = scalar_select %p1116, %s21, 7
        %s1118 = smul.addr %s1117, 8
        %s1119 = scalar_lea.vmem %s4, %s1118
        %p1120 = scmp.lt.s32.totalorder %s21, 7
        %s1121 = scalar_select %p1120, %s21, 7
        %s1122 = smul.addr %s1121, 8
        %s1123 = scalar_lea.vmem %s5, %s1122
        // Predicated region
        $region82: #{up_forward.6} parent=68 // pred_check
          %p1124 = pneg %p122
        $region83: #{up_forward.6} parent=68 // pred_check_branch
          %1126 = sbr.rel (%p1124) target = $region85
        $region84: #{up_forward.6} parent=68 // pred_region
          %s1127 = smul.u32 32, %s21
        $region85: #{up_forward.6} parent=68 // pred_fallthru
          _
        // Predicated region
        $region86: #{up_forward.6} parent=68 // pred_check
          %p1128 = pneg %p148
        $region87: #{up_forward.6} parent=68 // pred_check_branch
          %1130 = sbr.rel (%p1128) target = $region89
        $region88: #{up_forward.6} parent=68 // pred_region
          _
        $region89: #{up_forward.6} parent=68 // pred_fallthru
          _
        // Predicated region
        $region90: #{up_forward.6} parent=68 // pred_check
          %p1131 = pneg %p174
        $region91: #{up_forward.6} parent=68 // pred_check_branch
          %1133 = sbr.rel (%p1131) target = $region93
        $region92: #{up_forward.6} parent=68 // pred_region
          _
        $region93: #{up_forward.6} parent=68 // pred_fallthru
          _
      $region69: #{up_forward.6} parent=5 // pred_fallthru
        _
      %p1134 = scmp.le.s32.totalorder 2, %s12
      // Predicated region
      $region94: #{up_forward.6} parent=5 // pred_check
        %p1135 = pneg %p1134
      $region95: #{up_forward.6} parent=5 // pred_check_branch
        %1137 = sbr.rel (%p1135) target = $region97
      $region96: #{up_forward.6} parent=5 // pred_region
        %s1138 = ssub.s32 %s12, 2
        // Predicated region
        $region98: #{up_forward.6} parent=96 // pred_check
          %p1139 = pneg %p128
        $region99: #{up_forward.6} parent=96 // pred_check_branch
          %1141 = sbr.rel (%p1139) target = $region101
        $region100: #{up_forward.6} parent=96 // pred_region
          %s1142 = smul.u32 32, %s23
          %p1143 = scmp.lt.s32.totalorder %s1142, 255
          %s1144 = scalar_select %p1143, %s1142, 255
          %s1145 = smul.addr %s1144, 4
          %s1146 = scalar_lea.vmem %s3, %s1145
        $region101: #{up_forward.6} parent=96 // pred_fallthru
          _
        // Predicated region
        $region102: #{up_forward.6} parent=96 // pred_check
          %p1147 = pneg %p154
        $region103: #{up_forward.6} parent=96 // pred_check_branch
          %1149 = sbr.rel (%p1147) target = $region105
        $region104: #{up_forward.6} parent=96 // pred_region
          %p1150 = scmp.lt.s32.totalorder %s23, 7
          %s1151 = scalar_select %p1150, %s23, 7
          %s1152 = smul.addr %s1151, 8
          %s1153 = scalar_lea.vmem %s4, %s1152
        $region105: #{up_forward.6} parent=96 // pred_fallthru
          _
        // Predicated region
        $region106: #{up_forward.6} parent=96 // pred_check
          %p1154 = pneg %p180
        $region107: #{up_forward.6} parent=96 // pred_check_branch
          %1156 = sbr.rel (%p1154) target = $region109
        $region108: #{up_forward.6} parent=96 // pred_region
          %p1157 = scmp.lt.s32.totalorder %s23, 7
          %s1158 = scalar_select %p1157, %s23, 7
          %s1159 = smul.addr %s1158, 8
          %s1160 = scalar_lea.vmem %s5, %s1159
        $region109: #{up_forward.6} parent=96 // pred_fallthru
          _
      $region97: #{up_forward.6} parent=5 // pred_fallthru
        _
    $region6: #{up_forward.6} parent=1 // loop_footer
      %s16 = sadd.s32 1, %s12
    $region7: #{up_forward.6} parent=1 // loop_footer_branch
      %11 = sbr.rel target = $region3
    $region8: #{up_forward.6} parent=1 // loop_exit
      _

// kernel: up_forward.7
$region0: #{up_forward.7}
  #allocation0 [shape = 'u32[]', space=smem, size = 0x4, offset = 0x4, fixed_abs, tag = 'smem constant byte address 0x4 - core index']
  #allocation1 [shape = 'u32[72,128]{1,0:T(1,128)}', space=vmem, size = 0x9000, scoped, tag = 'internal scratch']
  %s0 = inlined_call_operand.vmem [shape: bf16[2048,128], index: 0, kind: input, shape index: {}]
  %s1 = inlined_call_operand.vmem [shape: f32[1,128], index: 1, kind: input, shape index: {}]
  %s2 = inlined_call_operand.vmem [shape: f32[1,128], index: 2, kind: input, shape index: {}]
  %s3 = inlined_call_operand.vmem [shape: bf16[2048,128], index: 3, kind: output, shape index: {}]
  %s4 = sld [smem:[#allocation0]]
  $region45: #{up_forward.7} parent=0
    _
  %s6 = ssub.s32 1, %s4
  %s7 = scalar_select 0, %s6, %s4
  loop: start=0, step=1, limit=10
  $region2: #{up_forward.7} parent=0 // loop_pre_header
    _
  $region3: #{up_forward.7} parent=0 // loop_header
    %s9 = sphi 0, %s13
    %p10 = scmp.ge.s32.totalorder %s9, 10
    %s19 = sphi 0, %s21
    %s22 = sphi 0, %s19
    %s23 = sphi 0, %s22
    %s39 = sphi 0, %s23
    %s43 = sphi 0, %s43
    %s45 = sphi 0, %s43
    %s46 = sphi 0, %s45
    %s60 = sphi 0, %s46
    %s64 = sphi 0, %s64
    %s66 = sphi 0, %s64
    %s67 = sphi 0, %s66
    %s81 = sphi 0, %s67
    %s87 = sphi 0, %s89
    %s90 = sphi 0, %s87
    %s91 = sphi 0, %s90
    %s107 = sphi 0, %s91
  $region4: #{up_forward.7} parent=0 // loop_header_branch
    %12 = sbr.rel (%p10) target = $region8
  $region5: #{up_forward.7} parent=0 // loop_body
    %s14 = ssub.s32 %s9, 1
    %s15 = ssub.s32 %s9, 2
    %s16 = sadd.s32 %s9, 1
    %s17 = ssub.s32 %s9, %s16
    %p18 = scmp.eq.s32.totalorder %s17, 0
    %s20 = sadd.s32 %s19, 1
    %s21 = scalar_select %p18, %s19, %s20
    %p24 = pneg %p18
    %p25 = scmp.eq.s32.totalorder %s9, 7
    %p26 = por %p24, %p25
    %p27 = scmp.ne.s32.totalorder %s19, %s22
    %p28 = scmp.eq.s32.totalorder %s9, 0
    %p29 = por %p27, %p28
    %p30 = scmp.ne.s32.totalorder %s19, %s22
    %p31 = scmp.eq.s32.totalorder %s14, 7
    %p32 = por %p30, %p31
    %p33 = scmp.ne.s32.totalorder %s22, %s23
    %p34 = scmp.eq.s32.totalorder %s14, 0
    %p35 = por %p33, %p34
    %p36 = scmp.ne.s32.totalorder %s22, %s23
    %p37 = scmp.eq.s32.totalorder %s15, 7
    %p38 = por %p36, %p37
    %p40 = scmp.ne.s32.totalorder %s23, %s39
    %p41 = scmp.eq.s32.totalorder %s15, 0
    %p42 = por %p40, %p41
    %s44 = sadd.s32 %s43, 1
    %p47 = scmp.eq.s32.totalorder %s9, 7
    %p48 = scmp.ne.s32.totalorder %s43, %s45
    %p49 = scmp.eq.s32.totalorder %s9, 0
    %p50 = por %p48, %p49
    %p51 = scmp.ne.s32.totalorder %s43, %s45
    %p52 = scmp.eq.s32.totalorder %s14, 7
    %p53 = por %p51, %p52
    %p54 = scmp.ne.s32.totalorder %s45, %s46
    %p55 = scmp.eq.s32.totalorder %s14, 0
    %p56 = por %p54, %p55
    %p57 = scmp.ne.s32.totalorder %s45, %s46
    %p58 = scmp.eq.s32.totalorder %s15, 7
    %p59 = por %p57, %p58
    %p61 = scmp.ne.s32.totalorder %s46, %s60
    %p62 = scmp.eq.s32.totalorder %s15, 0
    %p63 = por %p61, %p62
    %s65 = sadd.s32 %s64, 1
    %p68 = scmp.eq.s32.totalorder %s9, 7
    %p69 = scmp.ne.s32.totalorder %s64, %s66
    %p70 = scmp.eq.s32.totalorder %s9, 0
    %p71 = por %p69, %p70
    %p72 = scmp.ne.s32.totalorder %s64, %s66
    %p73 = scmp.eq.s32.totalorder %s14, 7
    %p74 = por %p72, %p73
    %p75 = scmp.ne.s32.totalorder %s66, %s67
    %p76 = scmp.eq.s32.totalorder %s14, 0
    %p77 = por %p75, %p76
    %p78 = scmp.ne.s32.totalorder %s66, %s67
    %p79 = scmp.eq.s32.totalorder %s15, 7
    %p80 = por %p78, %p79
    %p82 = scmp.ne.s32.totalorder %s67, %s81
    %p83 = scmp.eq.s32.totalorder %s15, 0
    %p84 = por %p82, %p83
    %s85 = ssub.s32 %s9, %s16
    %p86 = scmp.eq.s32.totalorder %s85, 0
    %s88 = sadd.s32 %s87, 1
    %s89 = scalar_select %p86, %s87, %s88
    %p92 = pneg %p86
    %p93 = scmp.eq.s32.totalorder %s9, 7
    %p94 = por %p92, %p93
    %p95 = scmp.ne.s32.totalorder %s87, %s90
    %p96 = scmp.eq.s32.totalorder %s9, 0
    %p97 = por %p95, %p96
    %p98 = scmp.ne.s32.totalorder %s87, %s90
    %p99 = scmp.eq.s32.totalorder %s14, 7
    %p100 = por %p98, %p99
    %p101 = scmp.ne.s32.totalorder %s90, %s91
    %p102 = scmp.eq.s32.totalorder %s14, 0
    %p103 = por %p101, %p102
    %p104 = scmp.ne.s32.totalorder %s90, %s91
    %p105 = scmp.eq.s32.totalorder %s15, 7
    %p106 = por %p104, %p105
    %p108 = scmp.ne.s32.totalorder %s91, %s107
    %p109 = scmp.eq.s32.totalorder %s15, 0
    %p110 = por %p108, %p109
    %p111 = scmp.le.s32.totalorder 1, %s9
    %p112 = scmp.lt.s32.totalorder %s9, 9
    %p113 = pnand %p111, %p112
    %p114 = pneg %p113
    // Predicated region
    $region9: #{up_forward.7} parent=5 // pred_check
      _
    $region10: #{up_forward.7} parent=5 // pred_check_branch
      %116 = sbr.rel (%p113) target = $region12
    $region11: #{up_forward.7} parent=5 // pred_region
      %s117 = ssub.s32 %s9, 1
      // Predicated region
      $region13: #{up_forward.7} parent=11 // pred_check
        %p118 = pneg %p56
      $region14: #{up_forward.7} parent=11 // pred_check_branch
        %120 = sbr.rel (%p118) target = $region16
      $region15: #{up_forward.7} parent=11 // pred_region
        _
      $region16: #{up_forward.7} parent=11 // pred_fallthru
        _
      // Predicated region
      $region17: #{up_forward.7} parent=11 // pred_check
        %p121 = pneg %p77
      $region18: #{up_forward.7} parent=11 // pred_check_branch
        %123 = sbr.rel (%p121) target = $region20
      $region19: #{up_forward.7} parent=11 // pred_region
        _
      $region20: #{up_forward.7} parent=11 // pred_fallthru
        _
    $region12: #{up_forward.7} parent=5 // pred_fallthru
      _
    %p124 = scmp.lt.s32.totalorder %s9, 8
    // Predicated region
    $region21: #{up_forward.7} parent=5 // pred_check
      %p125 = pneg %p124
    $region22: #{up_forward.7} parent=5 // pred_check_branch
      %127 = sbr.rel (%p125) target = $region24
    $region23: #{up_forward.7} parent=5 // pred_region
      // Predicated region
      $region25: #{up_forward.7} parent=23 // pred_check
        %p128 = pneg %p29
      $region26: #{up_forward.7} parent=23 // pred_check_branch
        %130 = sbr.rel (%p128) target = $region28
      $region27: #{up_forward.7} parent=23 // pred_region
        %s131 = smul.u32 32, %s9
        %p132 = scmp.lt.s32.totalorder %s131, 255
        %s133 = scalar_select %p132, %s131, 255
        %s134 = smul.addr %s133, 4
        %s135 = scalar_lea.vmem %s0, %s134
        %s136 = smul.u32 32, %s9
      $region28: #{up_forward.7} parent=23 // pred_fallthru
        _
    $region24: #{up_forward.7} parent=5 // pred_fallthru
      _
    %p137 = scmp.le.s32.totalorder 1, %s9
    %p138 = scmp.lt.s32.totalorder %s9, 9
    %p139 = pnand %p137, %p138
    %p140 = pneg %p139
    // Predicated region
    $region29: #{up_forward.7} parent=5 // pred_check
      _
    $region30: #{up_forward.7} parent=5 // pred_check_branch
      %142 = sbr.rel (%p139) target = $region32
    $region31: #{up_forward.7} parent=5 // pred_region
      %s143 = ssub.s32 %s9, 1
      %s144 = smul.u32 32, %s14
      %p145 = scmp.lt.s32.totalorder %s144, 255
      %s146 = scalar_select %p145, %s144, 255
      %s147 = smul.addr %s146, 4
      %s148 = scalar_lea.vmem %s0, %s147
      %p149 = pneg %p35
      %p150 = pneg %p32
      %p151 = pneg %p56
      %p152 = pneg %p53
      %p153 = pneg %p77
      %p154 = pneg %p74
      %p155 = pneg %p103
      %p156 = pneg %p100
      %s157 = smul.u32 32, %s14
      %p158 = scmp.lt.s32.totalorder %s157, 255
      %s159 = scalar_select %p158, %s157, 255
      %s160 = smul.addr %s159, 4
      %s161 = scalar_lea.vmem %s3, %s160
      %s162 = smul.u32 32, %s14
      %p163 = scmp.lt.s32.totalorder %s162, 255
      %s164 = scalar_select %p163, %s162, 255
      %s165 = smul.addr %s164, 4
      %s166 = scalar_lea.vmem %s0, %s165
      %s167 = smul.u32 32, %s14
      %s168 = smul.u32 32, %s14
      %p169 = scmp.lt.s32.totalorder %s168, 255
      %s170 = scalar_select %p169, %s168, 255
      %s171 = smul.addr %s170, 4
      %s172 = scalar_lea.vmem %s3, %s171
      %s173 = smul.u32 32, %s14
      %v174 = vld [vmem:[%s166] sm:$0xf]
      %v175 = vld [vmem:[%s166 + $0x4] sm:$0xf]
      %v176 = vld [vmem:[%s166 + $0x8] sm:$0xf]
      %v177 = vld [vmem:[%s166 + $0xc] sm:$0xf]
      %v178 = vld [vmem:[%s166 + $0x10] sm:$0xf]
      %v179 = vld [vmem:[%s166 + $0x14] sm:$0xf]
      %v180 = vld [vmem:[%s166 + $0x18] sm:$0xf]
      %v181 = vld [vmem:[%s166 + $0x1c] sm:$0xf]
      %v182 = vld [vmem:[%s166 + $0x20] sm:$0xf]
      %v183 = vld [vmem:[%s166 + $0x24] sm:$0xf]
      %v184 = vld [vmem:[%s166 + $0x28] sm:$0xf]
      %v185 = vld [vmem:[%s166 + $0x2c] sm:$0xf]
      %v186 = vld [vmem:[%s166 + $0x30] sm:$0xf]
      %v187 = vld [vmem:[%s166 + $0x34] sm:$0xf]
      %v188 = vld [vmem:[%s166 + $0x38] sm:$0xf]
      %v189 = vld [vmem:[%s166 + $0x3c] sm:$0xf]
      %v190 = vld [vmem:[%s166 + $0x40] sm:$0xf]
      %v191 = vld [vmem:[%s166 + $0x44] sm:$0xf]
      %v192 = vld [vmem:[%s166 + $0x48] sm:$0xf]
      %v193 = vld [vmem:[%s166 + $0x4c] sm:$0xf]
      %v194 = vld [vmem:[%s166 + $0x50] sm:$0xf]
      %v195 = vld [vmem:[%s166 + $0x54] sm:$0xf]
      %v196 = vld [vmem:[%s166 + $0x58] sm:$0xf]
      %v197 = vld [vmem:[%s166 + $0x5c] sm:$0xf]
      %v198 = vld [vmem:[%s166 + $0x60] sm:$0xf]
      %v199 = vld [vmem:[%s166 + $0x64] sm:$0xf]
      %v200 = vld [vmem:[%s166 + $0x68] sm:$0xf]
      %v201 = vld [vmem:[%s166 + $0x6c] sm:$0xf]
      %v202 = vld [vmem:[%s166 + $0x70] sm:$0xf]
      %v203 = vld [vmem:[%s166 + $0x74] sm:$0xf]
      %v204 = vld [vmem:[%s166 + $0x78] sm:$0xf]
      %v205 = vld [vmem:[%s166 + $0x7c] sm:$0xf]
      %v206 = vunpack.c.l.bf16 %v174
      %v207 = vunpack.c.l.bf16 %v175
      %v208 = vunpack.c.l.bf16 %v176
      %v209 = vunpack.c.l.bf16 %v177
      %v210 = vunpack.c.l.bf16 %v178
      %v211 = vunpack.c.l.bf16 %v179
      %v212 = vunpack.c.l.bf16 %v180
      %v213 = vunpack.c.l.bf16 %v181
      %v214 = vunpack.c.l.bf16 %v182
      %v215 = vunpack.c.l.bf16 %v183
      %v216 = vunpack.c.l.bf16 %v184
      %v217 = vunpack.c.l.bf16 %v185
      %v218 = vunpack.c.l.bf16 %v186
      %v219 = vunpack.c.l.bf16 %v187
      %v220 = vunpack.c.l.bf16 %v188
      %v221 = vunpack.c.l.bf16 %v189
      %v222 = vunpack.c.l.bf16 %v190
      %v223 = vunpack.c.l.bf16 %v191
      %v224 = vunpack.c.l.bf16 %v192
      %v225 = vunpack.c.l.bf16 %v193
      %v226 = vunpack.c.l.bf16 %v194
      %v227 = vunpack.c.l.bf16 %v195
      %v228 = vunpack.c.l.bf16 %v196
      %v229 = vunpack.c.l.bf16 %v197
      %v230 = vunpack.c.l.bf16 %v198
      %v231 = vunpack.c.l.bf16 %v199
      %v232 = vunpack.c.l.bf16 %v200
      %v233 = vunpack.c.l.bf16 %v201
      %v234 = vunpack.c.l.bf16 %v202
      %v235 = vunpack.c.l.bf16 %v203
      %v236 = vunpack.c.l.bf16 %v204
      %v237 = vunpack.c.l.bf16 %v205
      %v238 = vld [vmem:[%s1] sm:$0x1]
      %v240 = vperm.slane %v238, 0
      %v242 = vmul.f32 %v206, %v240
      %v243 = vmul.f32 %v207, %v240
      %v244 = vmul.f32 %v208, %v240
      %v245 = vmul.f32 %v209, %v240
      %v246 = vmul.f32 %v210, %v240
      %v247 = vmul.f32 %v211, %v240
      %v248 = vmul.f32 %v212, %v240
      %v249 = vmul.f32 %v213, %v240
      %v250 = vmul.f32 %v214, %v240
      %v251 = vmul.f32 %v215, %v240
      %v252 = vmul.f32 %v216, %v240
      %v253 = vmul.f32 %v217, %v240
      %v254 = vmul.f32 %v218, %v240
      %v255 = vmul.f32 %v219, %v240
      %v256 = vmul.f32 %v220, %v240
      %v257 = vmul.f32 %v221, %v240
      %v258 = vmul.f32 %v222, %v240
      %v259 = vmul.f32 %v223, %v240
      %v260 = vmul.f32 %v224, %v240
      %v261 = vmul.f32 %v225, %v240
      %v262 = vmul.f32 %v226, %v240
      %v263 = vmul.f32 %v227, %v240
      %v264 = vmul.f32 %v228, %v240
      %v265 = vmul.f32 %v229, %v240
      %v266 = vmul.f32 %v230, %v240
      %v267 = vmul.f32 %v231, %v240
      %v268 = vmul.f32 %v232, %v240
      %v269 = vmul.f32 %v233, %v240
      %v270 = vmul.f32 %v234, %v240
      %v271 = vmul.f32 %v235, %v240
      %v272 = vmul.f32 %v236, %v240
      %v273 = vmul.f32 %v237, %v240
      %v274 = vld [vmem:[%s2] sm:$0x1]
      %v276 = vperm.slane %v274, 0
      %v278 = vadd.f32 %v242, %v276
      %v279 = vadd.f32 %v243, %v276
      %v280 = vadd.f32 %v244, %v276
      %v281 = vadd.f32 %v245, %v276
      %v282 = vadd.f32 %v246, %v276
      %v283 = vadd.f32 %v247, %v276
      %v284 = vadd.f32 %v248, %v276
      %v285 = vadd.f32 %v249, %v276
      %v286 = vadd.f32 %v250, %v276
      %v287 = vadd.f32 %v251, %v276
      %v288 = vadd.f32 %v252, %v276
      %v289 = vadd.f32 %v253, %v276
      %v290 = vadd.f32 %v254, %v276
      %v291 = vadd.f32 %v255, %v276
      %v292 = vadd.f32 %v256, %v276
      %v293 = vadd.f32 %v257, %v276
      %v294 = vadd.f32 %v258, %v276
      %v295 = vadd.f32 %v259, %v276
      %v296 = vadd.f32 %v260, %v276
      %v297 = vadd.f32 %v261, %v276
      %v298 = vadd.f32 %v262, %v276
      %v299 = vadd.f32 %v263, %v276
      %v300 = vadd.f32 %v264, %v276
      %v301 = vadd.f32 %v265, %v276
      %v302 = vadd.f32 %v266, %v276
      %v303 = vadd.f32 %v267, %v276
      %v304 = vadd.f32 %v268, %v276
      %v305 = vadd.f32 %v269, %v276
      %v306 = vadd.f32 %v270, %v276
      %v307 = vadd.f32 %v271, %v276
      %v308 = vadd.f32 %v272, %v276
      %v309 = vadd.f32 %v273, %v276
      %v310 = vmax.f32 %v278, 0.0
      %v311 = vmax.f32 %v279, 0.0
      %v312 = vmax.f32 %v280, 0.0
      %v313 = vmax.f32 %v281, 0.0
      %v314 = vmax.f32 %v282, 0.0
      %v315 = vmax.f32 %v283, 0.0
      %v316 = vmax.f32 %v284, 0.0
      %v317 = vmax.f32 %v285, 0.0
      %v318 = vmax.f32 %v286, 0.0
      %v319 = vmax.f32 %v287, 0.0
      %v320 = vmax.f32 %v288, 0.0
      %v321 = vmax.f32 %v289, 0.0
      %v322 = vmax.f32 %v290, 0.0
      %v323 = vmax.f32 %v291, 0.0
      %v324 = vmax.f32 %v292, 0.0
      %v325 = vmax.f32 %v293, 0.0
      %v326 = vmax.f32 %v294, 0.0
      %v327 = vmax.f32 %v295, 0.0
      %v328 = vmax.f32 %v296, 0.0
      %v329 = vmax.f32 %v297, 0.0
      %v330 = vmax.f32 %v298, 0.0
      %v331 = vmax.f32 %v299, 0.0
      %v332 = vmax.f32 %v300, 0.0
      %v333 = vmax.f32 %v301, 0.0
      %v334 = vmax.f32 %v302, 0.0
      %v335 = vmax.f32 %v303, 0.0
      %v336 = vmax.f32 %v304, 0.0
      %v337 = vmax.f32 %v305, 0.0
      %v338 = vmax.f32 %v306, 0.0
      %v339 = vmax.f32 %v307, 0.0
      %v340 = vmax.f32 %v308, 0.0
      %v341 = vmax.f32 %v309, 0.0
      %v342 = vpack.c.bf16 %v310, %v310
      %v343 = vpack.c.bf16 %v311, %v311
      %v344 = vpack.c.bf16 %v312, %v312
      %v345 = vpack.c.bf16 %v313, %v313
      %v346 = vpack.c.bf16 %v314, %v314
      %v347 = vpack.c.bf16 %v315, %v315
      %v348 = vpack.c.bf16 %v316, %v316
      %v349 = vpack.c.bf16 %v317, %v317
      %v350 = vpack.c.bf16 %v318, %v318
      %v351 = vpack.c.bf16 %v319, %v319
      %v352 = vpack.c.bf16 %v320, %v320
      %v353 = vpack.c.bf16 %v321, %v321
      %v354 = vpack.c.bf16 %v322, %v322
      %v355 = vpack.c.bf16 %v323, %v323
      %v356 = vpack.c.bf16 %v324, %v324
      %v357 = vpack.c.bf16 %v325, %v325
      %v358 = vpack.c.bf16 %v326, %v326
      %v359 = vpack.c.bf16 %v327, %v327
      %v360 = vpack.c.bf16 %v328, %v328
      %v361 = vpack.c.bf16 %v329, %v329
      %v362 = vpack.c.bf16 %v330, %v330
      %v363 = vpack.c.bf16 %v331, %v331
      %v364 = vpack.c.bf16 %v332, %v332
      %v365 = vpack.c.bf16 %v333, %v333
      %v366 = vpack.c.bf16 %v334, %v334
      %v367 = vpack.c.bf16 %v335, %v335
      %v368 = vpack.c.bf16 %v336, %v336
      %v369 = vpack.c.bf16 %v337, %v337
      %v370 = vpack.c.bf16 %v338, %v338
      %v371 = vpack.c.bf16 %v339, %v339
      %v372 = vpack.c.bf16 %v340, %v340
      %v373 = vpack.c.bf16 %v341, %v341
      %374 = vst [vmem:[%s172] sm:$0xf] %v342
      %375 = vst [vmem:[%s172 + $0x4] sm:$0xf] %v343
      %376 = vst [vmem:[%s172 + $0x8] sm:$0xf] %v344
      %377 = vst [vmem:[%s172 + $0xc] sm:$0xf] %v345
      %378 = vst [vmem:[%s172 + $0x10] sm:$0xf] %v346
      %379 = vst [vmem:[%s172 + $0x14] sm:$0xf] %v347
      %380 = vst [vmem:[%s172 + $0x18] sm:$0xf] %v348
      %381 = vst [vmem:[%s172 + $0x1c] sm:$0xf] %v349
      %382 = vst [vmem:[%s172 + $0x20] sm:$0xf] %v350
      %383 = vst [vmem:[%s172 + $0x24] sm:$0xf] %v351
      %384 = vst [vmem:[%s172 + $0x28] sm:$0xf] %v352
      %385 = vst [vmem:[%s172 + $0x2c] sm:$0xf] %v353
      %386 = vst [vmem:[%s172 + $0x30] sm:$0xf] %v354
      %387 = vst [vmem:[%s172 + $0x34] sm:$0xf] %v355
      %388 = vst [vmem:[%s172 + $0x38] sm:$0xf] %v356
      %389 = vst [vmem:[%s172 + $0x3c] sm:$0xf] %v357
      %390 = vst [vmem:[%s172 + $0x40] sm:$0xf] %v358
      %391 = vst [vmem:[%s172 + $0x44] sm:$0xf] %v359
      %392 = vst [vmem:[%s172 + $0x48] sm:$0xf] %v360
      %393 = vst [vmem:[%s172 + $0x4c] sm:$0xf] %v361
      %394 = vst [vmem:[%s172 + $0x50] sm:$0xf] %v362
      %395 = vst [vmem:[%s172 + $0x54] sm:$0xf] %v363
      %396 = vst [vmem:[%s172 + $0x58] sm:$0xf] %v364
      %397 = vst [vmem:[%s172 + $0x5c] sm:$0xf] %v365
      %398 = vst [vmem:[%s172 + $0x60] sm:$0xf] %v366
      %399 = vst [vmem:[%s172 + $0x64] sm:$0xf] %v367
      %400 = vst [vmem:[%s172 + $0x68] sm:$0xf] %v368
      %401 = vst [vmem:[%s172 + $0x6c] sm:$0xf] %v369
      %402 = vst [vmem:[%s172 + $0x70] sm:$0xf] %v370
      %403 = vst [vmem:[%s172 + $0x74] sm:$0xf] %v371
      %404 = vst [vmem:[%s172 + $0x78] sm:$0xf] %v372
      %405 = vst [vmem:[%s172 + $0x7c] sm:$0xf] %v373
      %s406 = smul.u32 32, %s14
      %p407 = scmp.lt.s32.totalorder %s406, 255
      %s408 = scalar_select %p407, %s406, 255
      %s409 = smul.addr %s408, 4
      %s410 = scalar_lea.vmem %s3, %s409
      // Predicated region
      $region33: #{up_forward.7} parent=31 // pred_check
        %p411 = pneg %p100
      $region34: #{up_forward.7} parent=31 // pred_check_branch
        %413 = sbr.rel (%p411) target = $region36
      $region35: #{up_forward.7} parent=31 // pred_region
        %s414 = smul.u32 32, %s14
      $region36: #{up_forward.7} parent=31 // pred_fallthru
        _
    $region32: #{up_forward.7} parent=5 // pred_fallthru
      _
    %p415 = scmp.le.s32.totalorder 2, %s9
    // Predicated region
    $region37: #{up_forward.7} parent=5 // pred_check
      %p416 = pneg %p415
    $region38: #{up_forward.7} parent=5 // pred_check_branch
      %418 = sbr.rel (%p416) target = $region40
    $region39: #{up_forward.7} parent=5 // pred_region
      %s419 = ssub.s32 %s9, 2
      // Predicated region
      $region41: #{up_forward.7} parent=39 // pred_check
        %p420 = pneg %p106
      $region42: #{up_forward.7} parent=39 // pred_check_branch
        %422 = sbr.rel (%p420) target = $region44
      $region43: #{up_forward.7} parent=39 // pred_region
        %s423 = smul.u32 32, %s15
        %p424 = scmp.lt.s32.totalorder %s423, 255
        %s425 = scalar_select %p424, %s423, 255
        %s426 = smul.addr %s425, 4
        %s427 = scalar_lea.vmem %s3, %s426
      $region44: #{up_forward.7} parent=39 // pred_fallthru
        _
    $region40: #{up_forward.7} parent=5 // pred_fallthru
      _
  $region6: #{up_forward.7} parent=0 // loop_footer
    %s13 = sadd.s32 1, %s9
  $region7: #{up_forward.7} parent=0 // loop_footer_branch
    %8 = sbr.rel target = $region3
  $region8: #{up_forward.7} parent=0 // loop_exit
    _

// kernel: up_forward.8
$region0: #{up_forward.8}
  #allocation0 [shape = 'u32[]', space=smem, size = 0x4, offset = 0x4, fixed_abs, tag = 'smem constant byte address 0x4 - core index']
  #allocation1 [shape = 'u32[72,128]{1,0:T(1,128)}', space=vmem, size = 0x9000, scoped, tag = 'internal scratch']
  #allocation2 [shape = 'f32[256,128]{1,0:T(8,128)}', space=vmem, size = 0x20000, scoped, tag = 'scratch operand']
  %s0 = inlined_call_operand.vmem [shape: bf16[2048,1152], index: 0, kind: input, shape index: {}]
  %s1 = inlined_call_operand.vmem [shape: bf16[1152,128], index: 1, kind: input, shape index: {}]
  %s2 = inlined_call_operand.vmem [shape: f32[1,128], index: 2, kind: input, shape index: {}]
  %s3 = inlined_call_operand.vmem [shape: bf16[2048,128], index: 3, kind: output, shape index: {0}]
  %s4 = inlined_call_operand.vmem [shape: f32[8,8,128], index: 4, kind: output, shape index: {1}]
  %s5 = inlined_call_operand.vmem [shape: f32[8,8,128], index: 5, kind: output, shape index: {2}]
  %6 = xla_tuple %s3, %s4, %s5
  %s7 = sld [smem:[#allocation0]]
  $region110: #{up_forward.8} parent=0
    _
  %s9 = ssub.s32 1, %s7
  %s10 = scalar_select 0, %s9, %s7
  $region1: #{up_forward.8} parent=0
    #allocation3 [shape = 'u8[131072]{0}', space=vmem, size = 0x20000, scoped, tag = 'input window, operand 0']
    loop: start=0, step=1, limit=74
    $region2: #{up_forward.8} parent=1 // loop_pre_header
      _
    $region3: #{up_forward.8} parent=1 // loop_header
      %s12 = sphi 0, %s16
      %p13 = scmp.ge.s32.totalorder %s12, 74
      %s19 = sphi 0, %s31
      %s20 = sphi 0, %s27
      %s21 = sphi 0, %s19
      %s22 = sphi 0, %s20
      %s23 = sphi 0, %s21
      %s24 = sphi 0, %s22
      %s36 = sphi 0, %s38
      %s39 = sphi 0, %s36
      %s40 = sphi 0, %s39
      %s56 = sphi 0, %s40
      %s62 = sphi 0, %s64
      %s65 = sphi 0, %s62
      %s66 = sphi 0, %s65
      %s82 = sphi 0, %s66
      %s86 = sphi 0, %s86
      %s88 = sphi 0, %s86
      %s89 = sphi 0, %s88
      %s103 = sphi 0, %s89
      %s109 = sphi 0, %s111
      %s112 = sphi 0, %s109
      %s113 = sphi 0, %s112
      %s129 = sphi 0, %s113
      %s135 = sphi 0, %s137
      %s138 = sphi 0, %s135
      %s139 = sphi 0, %s138
      %s155 = sphi 0, %s139
      %s161 = sphi 0, %s163
      %s164 = sphi 0, %s161
      %s165 = sphi 0, %s164
      %s181 = sphi 0, %s165
    $region4: #{up_forward.8} parent=1 // loop_header_branch
      %15 = sbr.rel (%p13) target = $region8
    $region5: #{up_forward.8} parent=1 // loop_body
      %s17 = ssub.s32 %s12, 1
      %s18 = ssub.s32 %s12, 2
      %s25 = sadd.s32 1, %s20
      %p26 = scmp.ge.s32.totalorder %s25, 9
      %s27 = scalar_select %p26, 0, %s25
      %s28 = sadd.s32 1, %s19
      %s29 = scalar_select %p26, %s28, %s19
      %p30 = scmp.ge.s32.totalorder %s29, 8
      %s31 = scalar_select %p30, 0, %s29
      %s32 = ssub.s32 %s19, %s31
      %s33 = ssub.s32 %s20, %s27
      %s34 = sor.u32 %s32, %s33
      %p35 = scmp.eq.s32.totalorder %s34, 0
      %s37 = sadd.s32 %s36, 1
      %s38 = scalar_select %p35, %s36, %s37
      %p41 = pneg %p35
      %p42 = scmp.eq.s32.totalorder %s12, 71
      %p43 = por %p41, %p42
      %p44 = scmp.ne.s32.totalorder %s36, %s39
      %p45 = scmp.eq.s32.totalorder %s12, 0
      %p46 = por %p44, %p45
      %p47 = scmp.ne.s32.totalorder %s36, %s39
      %p48 = scmp.eq.s32.totalorder %s17, 71
      %p49 = por %p47, %p48
      %p50 = scmp.ne.s32.totalorder %s39, %s40
      %p51 = scmp.eq.s32.totalorder %s17, 0
      %p52 = por %p50, %p51
      %p53 = scmp.ne.s32.totalorder %s39, %s40
      %p54 = scmp.eq.s32.totalorder %s18, 71
      %p55 = por %p53, %p54
      %p57 = scmp.ne.s32.totalorder %s40, %s56
      %p58 = scmp.eq.s32.totalorder %s18, 0
      %p59 = por %p57, %p58
      %s60 = ssub.s32 %s20, %s27
      %p61 = scmp.eq.s32.totalorder %s60, 0
      %s63 = sadd.s32 %s62, 1
      %s64 = scalar_select %p61, %s62, %s63
      %p67 = pneg %p61
      %p68 = scmp.eq.s32.totalorder %s12, 71
      %p69 = por %p67, %p68
      %p70 = scmp.ne.s32.totalorder %s62, %s65
      %p71 = scmp.eq.s32.totalorder %s12, 0
      %p72 = por %p70, %p71
      %p73 = scmp.ne.s32.totalorder %s62, %s65
      %p74 = scmp.eq.s32.totalorder %s17, 71
      %p75 = por %p73, %p74
      %p76 = scmp.ne.s32.totalorder %s65, %s66
      %p77 = scmp.eq.s32.totalorder %s17, 0
      %p78 = por %p76, %p77
      %p79 = scmp.ne.s32.totalorder %s65, %s66
      %p80 = scmp.eq.s32.totalorder %s18, 71
      %p81 = por %p79, %p80
      %p83 = scmp.ne.s32.totalorder %s66, %s82
      %p84 = scmp.eq.s32.totalorder %s18, 0
      %p85 = por %p83, %p84
      %s87 = sadd.s32 %s86, 1
      %p90 = scmp.eq.s32.totalorder %s12, 71
      %p91 = scmp.ne.s32.totalorder %s86, %s88
      %p92 = scmp.eq.s32.totalorder %s12, 0
      %p93 = por %p91, %p92
      %p94 = scmp.ne.s32.totalorder %s86, %s88
      %p95 = scmp.eq.s32.totalorder %s17, 71
      %p96 = por %p94, %p95
      %p97 = scmp.ne.s32.totalorder %s88, %s89
      %p98 = scmp.eq.s32.totalorder %s17, 0
      %p99 = por %p97, %p98
      %p100 = scmp.ne.s32.totalorder %s88, %s89
      %p101 = scmp.eq.s32.totalorder %s18, 71
      %p102 = por %p100, %p101
      %p104 = scmp.ne.s32.totalorder %s89, %s103
      %p105 = scmp.eq.s32.totalorder %s18, 0
      %p106 = por %p104, %p105
      %s107 = ssub.s32 %s19, %s31
      %p108 = scmp.eq.s32.totalorder %s107, 0
      %s110 = sadd.s32 %s109, 1
      %s111 = scalar_select %p108, %s109, %s110
      %p114 = pneg %p108
      %p115 = scmp.eq.s32.totalorder %s12, 71
      %p116 = por %p114, %p115
      %p117 = scmp.ne.s32.totalorder %s109, %s112
      %p118 = scmp.eq.s32.totalorder %s12, 0
      %p119 = por %p117, %p118
      %p120 = scmp.ne.s32.totalorder %s109, %s112
      %p121 = scmp.eq.s32.totalorder %s17, 71
      %p122 = por %p120, %p121
      %p123 = scmp.ne.s32.totalorder %s112, %s113
      %p124 = scmp.eq.s32.totalorder %s17, 0
      %p125 = por %p123, %p124
      %p126 = scmp.ne.s32.totalorder %s112, %s113
      %p127 = scmp.eq.s32.totalorder %s18, 71
      %p128 = por %p126, %p127
      %p130 = scmp.ne.s32.totalorder %s113, %s129
      %p131 = scmp.eq.s32.totalorder %s18, 0
      %p132 = por %p130, %p131
      %s133 = ssub.s32 %s19, %s31
      %p134 = scmp.eq.s32.totalorder %s133, 0
      %s136 = sadd.s32 %s135, 1
      %s137 = scalar_select %p134, %s135, %s136
      %p140 = pneg %p134
      %p141 = scmp.eq.s32.totalorder %s12, 71
      %p142 = por %p140, %p141
      %p143 = scmp.ne.s32.totalorder %s135, %s138
      %p144 = scmp.eq.s32.totalorder %s12, 0
      %p145 = por %p143, %p144
      %p146 = scmp.ne.s32.totalorder %s135, %s138
      %p147 = scmp.eq.s32.totalorder %s17, 71
      %p148 = por %p146, %p147
      %p149 = scmp.ne.s32.totalorder %s138, %s139
      %p150 = scmp.eq.s32.totalorder %s17, 0
      %p151 = por %p149, %p150
      %p152 = scmp.ne.s32.totalorder %s138, %s139
      %p153 = scmp.eq.s32.totalorder %s18, 71
      %p154 = por %p152, %p153
      %p156 = scmp.ne.s32.totalorder %s139, %s155
      %p157 = scmp.eq.s32.totalorder %s18, 0
      %p158 = por %p156, %p157
      %s159 = ssub.s32 %s19, %s31
      %p160 = scmp.eq.s32.totalorder %s159, 0
      %s162 = sadd.s32 %s161, 1
      %s163 = scalar_select %p160, %s161, %s162
      %p166 = pneg %p160
      %p167 = scmp.eq.s32.totalorder %s12, 71
      %p168 = por %p166, %p167
      %p169 = scmp.ne.s32.totalorder %s161, %s164
      %p170 = scmp.eq.s32.totalorder %s12, 0
      %p171 = por %p169, %p170
      %p172 = scmp.ne.s32.totalorder %s161, %s164
      %p173 = scmp.eq.s32.totalorder %s17, 71
      %p174 = por %p172, %p173
      %p175 = scmp.ne.s32.totalorder %s164, %s165
      %p176 = scmp.eq.s32.totalorder %s17, 0
      %p177 = por %p175, %p176
      %p178 = scmp.ne.s32.totalorder %s164, %s165
      %p179 = scmp.eq.s32.totalorder %s18, 71
      %p180 = por %p178, %p179
      %p182 = scmp.ne.s32.totalorder %s165, %s181
      %p183 = scmp.eq.s32.totalorder %s18, 0
      %p184 = por %p182, %p183
      %p185 = scmp.le.s32.totalorder 1, %s12
      %p186 = scmp.lt.s32.totalorder %s12, 73
      %p187 = pnand %p185, %p186
      %p188 = pneg %p187
      // Predicated region
      $region9: #{up_forward.8} parent=5 // pred_check
        _
      $region10: #{up_forward.8} parent=5 // pred_check_branch
        %190 = sbr.rel (%p187) target = $region12
      $region11: #{up_forward.8} parent=5 // pred_region
        %s191 = ssub.s32 %s12, 1
        // Predicated region
        $region13: #{up_forward.8} parent=11 // pred_check
          %p192 = pneg %p99
        $region14: #{up_forward.8} parent=11 // pred_check_branch
          %194 = sbr.rel (%p192) target = $region16
        $region15: #{up_forward.8} parent=11 // pred_region
          _
        $region16: #{up_forward.8} parent=11 // pred_fallthru
          _
      $region12: #{up_forward.8} parent=5 // pred_fallthru
        _
      %p195 = scmp.lt.s32.totalorder %s12, 72
      // Predicated region
      $region17: #{up_forward.8} parent=5 // pred_check
        %p196 = pneg %p195
      $region18: #{up_forward.8} parent=5 // pred_check_branch
        %198 = sbr.rel (%p196) target = $region20
      $region19: #{up_forward.8} parent=5 // pred_region
        // Predicated region
        $region21: #{up_forward.8} parent=19 // pred_check
          %p199 = pneg %p46
        $region22: #{up_forward.8} parent=19 // pred_check_branch
          %201 = sbr.rel (%p199) target = $region24
        $region23: #{up_forward.8} parent=19 // pred_region
          %s202 = sand.u32 %s36, 1
          %s203 = sand.u32 %s36, 1
          %s204 = smul.addr %s203, 128
          %s205 = scalar_lea.vmem [#allocation3], %s204
          %s206 = smul.u32 32, %s19
          %s207 = smul.addr %s206, 9
          %s208 = sadd.s32 %s20, %s207
          %s209 = smul.addr %s208, 4
          %s210 = scalar_lea.vmem %s0, %s209
          // Predicated region
          $region25: #{up_forward.8} parent=23 // pred_check
            _
          $region26: #{up_forward.8} parent=23 // pred_check_branch
            %212 = sbr.rel (0) target = $region28
          $region27: #{up_forward.8} parent=23 // pred_region
            // Predicated region
            $region29: #{up_forward.8} parent=27 // pred_check
              _
            $region30: #{up_forward.8} parent=27 // pred_check_branch
              %214 = sbr.rel target = $region32
            $region31: #{up_forward.8} parent=27 // pred_region
              // Predicated region
              $region44: #{up_forward.8} parent=31 // pred_check
                _
              $region45: #{up_forward.8} parent=31 // pred_check_branch
                %292 = sbr.rel (0) target = $region47
              $region46: #{up_forward.8} parent=31 // pred_region
                loop: start=0, step=1, limit=1
                $region48: #{up_forward.8} parent=46 // loop_pre_header
                  _
                $region49: #{up_forward.8} parent=46 // loop_header
                  %s294 = sphi 0, %s298
                  %p295 = scmp.ge.s32.totalorder %s294, 1
                  %s299 = sphi %s210, %s210
                  %s300 = sphi %s205, %s205
                $region50: #{up_forward.8} parent=46 // loop_header_branch
                  %297 = sbr.rel (%p295) target = $region54
                $region51: #{up_forward.8} parent=46 // loop_body
                  _
                $region52: #{up_forward.8} parent=46 // loop_footer
                  %s298 = sadd.s32 1, %s294
                $region53: #{up_forward.8} parent=46 // loop_footer_branch
                  %293 = sbr.rel target = $region49
                $region54: #{up_forward.8} parent=46 // loop_exit
                  _
                %s302 = ssub.s32 16, 1
                loop: start=0, step=1, limit=1
                $region55: #{up_forward.8} parent=46 // loop_pre_header
                  _
                $region56: #{up_forward.8} parent=46 // loop_header
                  %s304 = sphi 0, %s308
                  %p305 = scmp.ge.s32.totalorder %s304, 1
                  %s309 = sphi %s210, %s210
                  %s310 = sphi %s205, %s205
                $region57: #{up_forward.8} parent=46 // loop_header_branch
                  %307 = sbr.rel (%p305) target = $region61
                $region58: #{up_forward.8} parent=46 // loop_body
                  %v311 = vld [vmem:[%s309] sm:%s302]
                  %312 = vst [vmem:[%s310] sm:%s302] %v311
                  %v313 = vld [vmem:[%s309 + $0x24] sm:%s302]
                  %314 = vst [vmem:[%s310 + $0x4] sm:%s302] %v313
                  %v315 = vld [vmem:[%s309 + $0x48] sm:%s302]
                  %316 = vst [vmem:[%s310 + $0x8] sm:%s302] %v315
                  %v317 = vld [vmem:[%s309 + $0x6c] sm:%s302]
                  %318 = vst [vmem:[%s310 + $0xc] sm:%s302] %v317
                  %v319 = vld [vmem:[%s309 + $0x90] sm:%s302]
                  %320 = vst [vmem:[%s310 + $0x10] sm:%s302] %v319
                  %v321 = vld [vmem:[%s309 + $0xb4] sm:%s302]
                  %322 = vst [vmem:[%s310 + $0x14] sm:%s302] %v321
                  %v323 = vld [vmem:[%s309 + $0xd8] sm:%s302]
                  %324 = vst [vmem:[%s310 + $0x18] sm:%s302] %v323
                  %v325 = vld [vmem:[%s309 + $0xfc] sm:%s302]
                  %326 = vst [vmem:[%s310 + $0x1c] sm:%s302] %v325
                  %v327 = vld [vmem:[%s309 + $0x120] sm:%s302]
                  %328 = vst [vmem:[%s310 + $0x20] sm:%s302] %v327
                  %v329 = vld [vmem:[%s309 + $0x144] sm:%s302]
                  %330 = vst [vmem:[%s310 + $0x24] sm:%s302] %v329
                  %v331 = vld [vmem:[%s309 + $0x168] sm:%s302]
                  %332 = vst [vmem:[%s310 + $0x28] sm:%s302] %v331
                  %v333 = vld [vmem:[%s309 + $0x18c] sm:%s302]
                  %334 = vst [vmem:[%s310 + $0x2c] sm:%s302] %v333
                  %v335 = vld [vmem:[%s309 + $0x1b0] sm:%s302]
                  %336 = vst [vmem:[%s310 + $0x30] sm:%s302] %v335
                  %v337 = vld [vmem:[%s309 + $0x1d4] sm:%s302]
                  %338 = vst [vmem:[%s310 + $0x34] sm:%s302] %v337
                  %v339 = vld [vmem:[%s309 + $0x1f8] sm:%s302]
                  %340 = vst [vmem:[%s310 + $0x38] sm:%s302] %v339
                  %v341 = vld [vmem:[%s309 + $0x21c] sm:%s302]
                  %342 = vst [vmem:[%s310 + $0x3c] sm:%s302] %v341
                  %v343 = vld [vmem:[%s309 + $0x240] sm:%s302]
                  %344 = vst [vmem:[%s310 + $0x40] sm:%s302] %v343
                  %v345 = vld [vmem:[%s309 + $0x264] sm:%s302]
                  %346 = vst [vmem:[%s310 + $0x44] sm:%s302] %v345
                  %v347 = vld [vmem:[%s309 + $0x288] sm:%s302]
                  %348 = vst [vmem:[%s310 + $0x48] sm:%s302] %v347
                  %v349 = vld [vmem:[%s309 + $0x2ac] sm:%s302]
                  %350 = vst [vmem:[%s310 + $0x4c] sm:%s302] %v349
                  %v351 = vld [vmem:[%s309 + $0x2d0] sm:%s302]
                  %352 = vst [vmem:[%s310 + $0x50] sm:%s302] %v351
                  %v353 = vld [vmem:[%s309 + $0x2f4] sm:%s302]
                  %354 = vst [vmem:[%s310 + $0x54] sm:%s302] %v353
                  %v355 = vld [vmem:[%s309 + $0x318] sm:%s302]
                  %356 = vst [vmem:[%s310 + $0x58] sm:%s302] %v355
                  %v357 = vld [vmem:[%s309 + $0x33c] sm:%s302]
                  %358 = vst [vmem:[%s310 + $0x5c] sm:%s302] %v357
                  %v359 = vld [vmem:[%s309 + $0x360] sm:%s302]
                  %360 = vst [vmem:[%s310 + $0x60] sm:%s302] %v359
                  %v361 = vld [vmem:[%s309 + $0x384] sm:%s302]
                  %362 = vst [vmem:[%s310 + $0x64] sm:%s302] %v361
                  %v363 = vld [vmem:[%s309 + $0x3a8] sm:%s302]
                  %364 = vst [vmem:[%s310 + $0x68] sm:%s302] %v363
                  %v365 = vld [vmem:[%s309 + $0x3cc] sm:%s302]
                  %366 = vst [vmem:[%s310 + $0x6c] sm:%s302] %v365
                  %v367 = vld [vmem:[%s309 + $0x3f0] sm:%s302]
                  %368 = vst [vmem:[%s310 + $0x70] sm:%s302] %v367
                  %v369 = vld [vmem:[%s309 + $0x414] sm:%s302]
                  %370 = vst [vmem:[%s310 + $0x74] sm:%s302] %v369
                  %v371 = vld [vmem:[%s309 + $0x438] sm:%s302]
                  %372 = vst [vmem:[%s310 + $0x78] sm:%s302] %v371
                  %v373 = vld [vmem:[%s309 + $0x45c] sm:%s302]
                  %374 = vst [vmem:[%s310 + $0x7c] sm:%s302] %v373
                $region59: #{up_forward.8} parent=46 // loop_footer
                  %s308 = sadd.s32 1, %s304
                $region60: #{up_forward.8} parent=46 // loop_footer_branch
                  %303 = sbr.rel target = $region56
                $region61: #{up_forward.8} parent=46 // loop_exit
                  _
              $region47: #{up_forward.8} parent=31 // pred_fallthru
                _
            $region32: #{up_forward.8} parent=27 // pred_fallthru
              _
            // Predicated region
            $region33: #{up_forward.8} parent=27 // pred_check
              _
            $region34: #{up_forward.8} parent=27 // pred_check_branch
              %216 = sbr.rel (0) target = $region36
            $region35: #{up_forward.8} parent=27 // pred_region
              %s218 = ssub.s32 16, 1
              loop: start=0, step=1, limit=1
              $region37: #{up_forward.8} parent=35 // loop_pre_header
                _
              $region38: #{up_forward.8} parent=35 // loop_header
                %s220 = sphi 0, %s224
                %p221 = scmp.ge.s32.totalorder %s220, 1
                %s225 = sphi %s210, %s210
                %s226 = sphi %s205, %s205
              $region39: #{up_forward.8} parent=35 // loop_header_branch
                %223 = sbr.rel (%p221) target = $region43
              $region40: #{up_forward.8} parent=35 // loop_body
                %v227 = vld [vmem:[%s225] sm:%s218]
                %228 = vst [vmem:[%s226] sm:%s218] %v227
                %v229 = vld [vmem:[%s225 + $0x24] sm:%s218]
                %230 = vst [vmem:[%s226 + $0x4] sm:%s218] %v229
                %v231 = vld [vmem:[%s225 + $0x48] sm:%s218]
                %232 = vst [vmem:[%s226 + $0x8] sm:%s218] %v231
                %v233 = vld [vmem:[%s225 + $0x6c] sm:%s218]
                %234 = vst [vmem:[%s226 + $0xc] sm:%s218] %v233
                %v235 = vld [vmem:[%s225 + $0x90] sm:%s218]
                %236 = vst [vmem:[%s226 + $0x10] sm:%s218] %v235
                %v237 = vld [vmem:[%s225 + $0xb4] sm:%s218]
                %238 = vst [vmem:[%s226 + $0x14] sm:%s218] %v237
                %v239 = vld [vmem:[%s225 + $0xd8] sm:%s218]
                %240 = vst [vmem:[%s226 + $0x18] sm:%s218] %v239
                %v241 = vld [vmem:[%s225 + $0xfc] sm:%s218]
                %242 = vst [vmem:[%s226 + $0x1c] sm:%s218] %v241
                %v243 = vld [vmem:[%s225 + $0x120] sm:%s218]
                %244 = vst [vmem:[%s226 + $0x20] sm:%s218] %v243
                %v245 = vld [vmem:[%s225 + $0x144] sm:%s218]
                %246 = vst [vmem:[%s226 + $0x24] sm:%s218] %v245
                %v247 = vld [vmem:[%s225 + $0x168] sm:%s218]
                %248 = vst [vmem:[%s226 + $0x28] sm:%s218] %v247
                %v249 = vld [vmem:[%s225 + $0x18c] sm:%s218]
                %250 = vst [vmem:[%s226 + $0x2c] sm:%s218] %v249
                %v251 = vld [vmem:[%s225 + $0x1b0] sm:%s218]
                %252 = vst [vmem:[%s226 + $0x30] sm:%s218] %v251
                %v253 = vld [vmem:[%s225 + $0x1d4] sm:%s218]
                %254 = vst [vmem:[%s226 + $0x34] sm:%s218] %v253
                %v255 = vld [vmem:[%s225 + $0x1f8] sm:%s218]
                %256 = vst [vmem:[%s226 + $0x38] sm:%s218] %v255
                %v257 = vld [vmem:[%s225 + $0x21c] sm:%s218]
                %258 = vst [vmem:[%s226 + $0x3c] sm:%s218] %v257
                %v259 = vld [vmem:[%s225 + $0x240] sm:%s218]
                %260 = vst [vmem:[%s226 + $0x40] sm:%s218] %v259
                %v261 = vld [vmem:[%s225 + $0x264] sm:%s218]
                %262 = vst [vmem:[%s226 + $0x44] sm:%s218] %v261
                %v263 = vld [vmem:[%s225 + $0x288] sm:%s218]
                %264 = vst [vmem:[%s226 + $0x48] sm:%s218] %v263
                %v265 = vld [vmem:[%s225 + $0x2ac] sm:%s218]
                %266 = vst [vmem:[%s226 + $0x4c] sm:%s218] %v265
                %v267 = vld [vmem:[%s225 + $0x2d0] sm:%s218]
                %268 = vst [vmem:[%s226 + $0x50] sm:%s218] %v267
                %v269 = vld [vmem:[%s225 + $0x2f4] sm:%s218]
                %270 = vst [vmem:[%s226 + $0x54] sm:%s218] %v269
                %v271 = vld [vmem:[%s225 + $0x318] sm:%s218]
                %272 = vst [vmem:[%s226 + $0x58] sm:%s218] %v271
                %v273 = vld [vmem:[%s225 + $0x33c] sm:%s218]
                %274 = vst [vmem:[%s226 + $0x5c] sm:%s218] %v273
                %v275 = vld [vmem:[%s225 + $0x360] sm:%s218]
                %276 = vst [vmem:[%s226 + $0x60] sm:%s218] %v275
                %v277 = vld [vmem:[%s225 + $0x384] sm:%s218]
                %278 = vst [vmem:[%s226 + $0x64] sm:%s218] %v277
                %v279 = vld [vmem:[%s225 + $0x3a8] sm:%s218]
                %280 = vst [vmem:[%s226 + $0x68] sm:%s218] %v279
                %v281 = vld [vmem:[%s225 + $0x3cc] sm:%s218]
                %282 = vst [vmem:[%s226 + $0x6c] sm:%s218] %v281
                %v283 = vld [vmem:[%s225 + $0x3f0] sm:%s218]
                %284 = vst [vmem:[%s226 + $0x70] sm:%s218] %v283
                %v285 = vld [vmem:[%s225 + $0x414] sm:%s218]
                %286 = vst [vmem:[%s226 + $0x74] sm:%s218] %v285
                %v287 = vld [vmem:[%s225 + $0x438] sm:%s218]
                %288 = vst [vmem:[%s226 + $0x78] sm:%s218] %v287
                %v289 = vld [vmem:[%s225 + $0x45c] sm:%s218]
                %290 = vst [vmem:[%s226 + $0x7c] sm:%s218] %v289
              $region41: #{up_forward.8} parent=35 // loop_footer
                %s224 = sadd.s32 1, %s220
              $region42: #{up_forward.8} parent=35 // loop_footer_branch
                %219 = sbr.rel target = $region38
              $region43: #{up_forward.8} parent=35 // loop_exit
                _
            $region36: #{up_forward.8} parent=27 // pred_fallthru
              _
          $region28: #{up_forward.8} parent=23 // pred_fallthru
            _
          %375 = vnop
        $region24: #{up_forward.8} parent=19 // pred_fallthru
          _
        // Predicated region
        $region62: #{up_forward.8} parent=19 // pred_check
          %p376 = pneg %p72
        $region63: #{up_forward.8} parent=19 // pred_check_branch
          %378 = sbr.rel (%p376) target = $region65
        $region64: #{up_forward.8} parent=19 // pred_region
          %s379 = smul.u32 16, %s20
          %p380 = scmp.lt.s32.totalorder %s379, 143
          %s381 = scalar_select %p380, %s379, 143
          %s382 = smul.addr %s381, 4
          %s383 = scalar_lea.vmem %s1, %s382
          %s384 = smul.u32 16, %s20
        $region65: #{up_forward.8} parent=19 // pred_fallthru
          _
      $region20: #{up_forward.8} parent=5 // pred_fallthru
        _
      %p385 = scmp.le.s32.totalorder 1, %s12
      %p386 = scmp.lt.s32.totalorder %s12, 73
      %p387 = pnand %p385, %p386
      %p388 = pneg %p387
      // Predicated region
      $region66: #{up_forward.8} parent=5 // pred_check
        _
      $region67: #{up_forward.8} parent=5 // pred_check_branch
        %390 = sbr.rel (%p387) target = $region69
      $region68: #{up_forward.8} parent=5 // pred_region
        %s391 = ssub.s32 %s12, 1
        %s392 = sand.u32 %s39, 1
        %s393 = sand.u32 %s39, 1
        %s394 = smul.addr %s393, 128
        %s395 = scalar_lea.vmem [#allocation3], %s394
        // Predicated region
        $region70: #{up_forward.8} parent=68 // pred_check
          %p396 = pneg %p52
        $region71: #{up_forward.8} parent=68 // pred_check_branch
          %398 = sbr.rel (%p396) target = $region73
        $region72: #{up_forward.8} parent=68 // pred_region
          _
        $region73: #{up_forward.8} parent=68 // pred_fallthru
          _
        %s399 = sand.u32 %s39, 1
        %s400 = sand.u32 %s39, 1
        %s401 = smul.addr %s400, 128
        %s402 = scalar_lea.vmem [#allocation3], %s401
        %p403 = pneg %p52
        %p404 = pneg %p49
        %s405 = smul.u32 16, %s22
        %p406 = scmp.lt.s32.totalorder %s405, 143
        %s407 = scalar_select %p406, %s405, 143
        %s408 = smul.addr %s407, 4
        %s409 = scalar_lea.vmem %s1, %s408
        %p410 = pneg %p78
        %p411 = pneg %p75
        %p412 = pneg %p99
        %p413 = pneg %p96
        %p414 = pneg %p125
        %p415 = pneg %p122
        %s416 = smul.u32 32, %s21
        %p417 = scmp.lt.s32.totalorder %s416, 255
        %s418 = scalar_select %p417, %s416, 255
        %s419 = smul.addr %s418, 4
        %s420 = scalar_lea.vmem %s3, %s419
        %p421 = pneg %p151
        %p422 = pneg %p148
        %p423 = scmp.lt.s32.totalorder %s21, 7
        %s424 = scalar_select %p423, %s21, 7
        %s425 = smul.addr %s424, 8
        %s426 = scalar_lea.vmem %s4, %s425
        %p427 = pneg %p177
        %p428 = pneg %p174
        %p429 = scmp.lt.s32.totalorder %s21, 7
        %s430 = scalar_select %p429, %s21, 7
        %s431 = smul.addr %s430, 8
        %s432 = scalar_lea.vmem %s5, %s431
        %s433 = smul.u32 32, %s21
        %s434 = smul.u32 16, %s22
        %p435 = scmp.lt.s32.totalorder %s434, 143
        %s436 = scalar_select %p435, %s434, 143
        %s437 = smul.addr %s436, 4
        %s438 = scalar_lea.vmem %s1, %s437
        %s439 = smul.u32 16, %s22
        %s440 = smul.u32 32, %s21
        %p441 = scmp.lt.s32.totalorder %s440, 255
        %s442 = scalar_select %p441, %s440, 255
        %s443 = smul.addr %s442, 4
        %s444 = scalar_lea.vmem %s3, %s443
        %s445 = smul.u32 32, %s21
        %p446 = scmp.lt.s32.totalorder %s21, 7
        %s447 = scalar_select %p446, %s21, 7
        %s448 = smul.addr %s447, 8
        %s449 = scalar_lea.vmem %s4, %s448
        %p450 = scmp.lt.s32.totalorder %s21, 7
        %s451 = scalar_select %p450, %s21, 7
        %s452 = smul.addr %s451, 8
        %s453 = scalar_lea.vmem %s5, %s452
        %p454 = scmp.eq.s32.totalorder %s22, 0
        // Predicated region
        $region74: #{up_forward.8} parent=68 // pred_check
          %p455 = pneg %p454
        $region75: #{up_forward.8} parent=68 // pred_check_branch
          %457 = sbr.rel (%p455) target = $region77
        $region76: #{up_forward.8} parent=68 // pred_region
          %458 = vst [vmem:[#allocation2] sm:$0xff] 0.0
          %459 = vst [vmem:[#allocation2 + $0x8] sm:$0xff] 0.0
          %460 = vst [vmem:[#allocation2 + $0x10] sm:$0xff] 0.0
          %461 = vst [vmem:[#allocation2 + $0x18] sm:$0xff] 0.0
          %462 = vst [vmem:[#allocation2 + $0x20] sm:$0xff] 0.0
          %463 = vst [vmem:[#allocation2 + $0x28] sm:$0xff] 0.0
          %464 = vst [vmem:[#allocation2 + $0x30] sm:$0xff] 0.0
          %465 = vst [vmem:[#allocation2 + $0x38] sm:$0xff] 0.0
          %466 = vst [vmem:[#allocation2 + $0x40] sm:$0xff] 0.0
          %467 = vst [vmem:[#allocation2 + $0x48] sm:$0xff] 0.0
          %468 = vst [vmem:[#allocation2 + $0x50] sm:$0xff] 0.0
          %469 = vst [vmem:[#allocation2 + $0x58] sm:$0xff] 0.0
          %470 = vst [vmem:[#allocation2 + $0x60] sm:$0xff] 0.0
          %471 = vst [vmem:[#allocation2 + $0x68] sm:$0xff] 0.0
          %472 = vst [vmem:[#allocation2 + $0x70] sm:$0xff] 0.0
          %473 = vst [vmem:[#allocation2 + $0x78] sm:$0xff] 0.0
          %474 = vst [vmem:[#allocation2 + $0x80] sm:$0xff] 0.0
          %475 = vst [vmem:[#allocation2 + $0x88] sm:$0xff] 0.0
          %476 = vst [vmem:[#allocation2 + $0x90] sm:$0xff] 0.0
          %477 = vst [vmem:[#allocation2 + $0x98] sm:$0xff] 0.0
          %478 = vst [vmem:[#allocation2 + $0xa0] sm:$0xff] 0.0
          %479 = vst [vmem:[#allocation2 + $0xa8] sm:$0xff] 0.0
          %480 = vst [vmem:[#allocation2 + $0xb0] sm:$0xff] 0.0
          %481 = vst [vmem:[#allocation2 + $0xb8] sm:$0xff] 0.0
          %482 = vst [vmem:[#allocation2 + $0xc0] sm:$0xff] 0.0
          %483 = vst [vmem:[#allocation2 + $0xc8] sm:$0xff] 0.0
          %484 = vst [vmem:[#allocation2 + $0xd0] sm:$0xff] 0.0
          %485 = vst [vmem:[#allocation2 + $0xd8] sm:$0xff] 0.0
          %486 = vst [vmem:[#allocation2 + $0xe0] sm:$0xff] 0.0
          %487 = vst [vmem:[#allocation2 + $0xe8] sm:$0xff] 0.0
          %488 = vst [vmem:[#allocation2 + $0xf0] sm:$0xff] 0.0
          %489 = vst [vmem:[#allocation2 + $0xf8] sm:$0xff] 0.0
        $region77: #{up_forward.8} parent=68 // pred_fallthru
          _
        %v490 = vld [vmem:[#allocation2] sm:$0xff]
        %v491 = vld [vmem:[#allocation2 + $0x8] sm:$0xff]
        %v492 = vld [vmem:[#allocation2 + $0x10] sm:$0xff]
        %v493 = vld [vmem:[#allocation2 + $0x18] sm:$0xff]
        %v494 = vld [vmem:[#allocation2 + $0x20] sm:$0xff]
        %v495 = vld [vmem:[#allocation2 + $0x28] sm:$0xff]
        %v496 = vld [vmem:[#allocation2 + $0x30] sm:$0xff]
        %v497 = vld [vmem:[#allocation2 + $0x38] sm:$0xff]
        %v498 = vld [vmem:[#allocation2 + $0x40] sm:$0xff]
        %v499 = vld [vmem:[#allocation2 + $0x48] sm:$0xff]
        %v500 = vld [vmem:[#allocation2 + $0x50] sm:$0xff]
        %v501 = vld [vmem:[#allocation2 + $0x58] sm:$0xff]
        %v502 = vld [vmem:[#allocation2 + $0x60] sm:$0xff]
        %v503 = vld [vmem:[#allocation2 + $0x68] sm:$0xff]
        %v504 = vld [vmem:[#allocation2 + $0x70] sm:$0xff]
        %v505 = vld [vmem:[#allocation2 + $0x78] sm:$0xff]
        %v506 = vld [vmem:[#allocation2 + $0x80] sm:$0xff]
        %v507 = vld [vmem:[#allocation2 + $0x88] sm:$0xff]
        %v508 = vld [vmem:[#allocation2 + $0x90] sm:$0xff]
        %v509 = vld [vmem:[#allocation2 + $0x98] sm:$0xff]
        %v510 = vld [vmem:[#allocation2 + $0xa0] sm:$0xff]
        %v511 = vld [vmem:[#allocation2 + $0xa8] sm:$0xff]
        %v512 = vld [vmem:[#allocation2 + $0xb0] sm:$0xff]
        %v513 = vld [vmem:[#allocation2 + $0xb8] sm:$0xff]
        %v514 = vld [vmem:[#allocation2 + $0xc0] sm:$0xff]
        %v515 = vld [vmem:[#allocation2 + $0xc8] sm:$0xff]
        %v516 = vld [vmem:[#allocation2 + $0xd0] sm:$0xff]
        %v517 = vld [vmem:[#allocation2 + $0xd8] sm:$0xff]
        %v518 = vld [vmem:[#allocation2 + $0xe0] sm:$0xff]
        %v519 = vld [vmem:[#allocation2 + $0xe8] sm:$0xff]
        %v520 = vld [vmem:[#allocation2 + $0xf0] sm:$0xff]
        %v521 = vld [vmem:[#allocation2 + $0xf8] sm:$0xff]
        %v522 = vld [vmem:[%s395] sm:$0xf]
        %v523 = vld [vmem:[%s395 + $0x4] sm:$0xf]
        %v524 = vld [vmem:[%s395 + $0x8] sm:$0xf]
        %v525 = vld [vmem:[%s395 + $0xc] sm:$0xf]
        %v526 = vld [vmem:[%s395 + $0x10] sm:$0xf]
        %v527 = vld [vmem:[%s395 + $0x14] sm:$0xf]
        %v528 = vld [vmem:[%s395 + $0x18] sm:$0xf]
        %v529 = vld [vmem:[%s395 + $0x1c] sm:$0xf]
        %v530 = vld [vmem:[%s395 + $0x20] sm:$0xf]
        %v531 = vld [vmem:[%s395 + $0x24] sm:$0xf]
        %v532 = vld [vmem:[%s395 + $0x28] sm:$0xf]
        %v533 = vld [vmem:[%s395 + $0x2c] sm:$0xf]
        %v534 = vld [vmem:[%s395 + $0x30] sm:$0xf]
        %v535 = vld [vmem:[%s395 + $0x34] sm:$0xf]
        %v536 = vld [vmem:[%s395 + $0x38] sm:$0xf]
        %v537 = vld [vmem:[%s395 + $0x3c] sm:$0xf]
        %v538 = vld [vmem:[%s395 + $0x40] sm:$0xf]
        %v539 = vld [vmem:[%s395 + $0x44] sm:$0xf]
        %v540 = vld [vmem:[%s395 + $0x48] sm:$0xf]
        %v541 = vld [vmem:[%s395 + $0x4c] sm:$0xf]
        %v542 = vld [vmem:[%s395 + $0x50] sm:$0xf]
        %v543 = vld [vmem:[%s395 + $0x54] sm:$0xf]
        %v544 = vld [vmem:[%s395 + $0x58] sm:$0xf]
        %v545 = vld [vmem:[%s395 + $0x5c] sm:$0xf]
        %v546 = vld [vmem:[%s395 + $0x60] sm:$0xf]
        %v547 = vld [vmem:[%s395 + $0x64] sm:$0xf]
        %v548 = vld [vmem:[%s395 + $0x68] sm:$0xf]
        %v549 = vld [vmem:[%s395 + $0x6c] sm:$0xf]
        %v550 = vld [vmem:[%s395 + $0x70] sm:$0xf]
        %v551 = vld [vmem:[%s395 + $0x74] sm:$0xf]
        %v552 = vld [vmem:[%s395 + $0x78] sm:$0xf]
        %v553 = vld [vmem:[%s395 + $0x7c] sm:$0xf]
        %v554 = vld [vmem:[%s438] sm:$0xf]
        %v555 = vld [vmem:[%s438 + $0x4] sm:$0xf]
        %v556 = vld [vmem:[%s438 + $0x8] sm:$0xf]
        %v557 = vld [vmem:[%s438 + $0xc] sm:$0xf]
        %v558 = vld [vmem:[%s438 + $0x10] sm:$0xf]
        %v559 = vld [vmem:[%s438 + $0x14] sm:$0xf]
        %v560 = vld [vmem:[%s438 + $0x18] sm:$0xf]
        %v561 = vld [vmem:[%s438 + $0x1c] sm:$0xf]
        %v562 = vld [vmem:[%s438 + $0x20] sm:$0xf]
        %v563 = vld [vmem:[%s438 + $0x24] sm:$0xf]
        %v564 = vld [vmem:[%s438 + $0x28] sm:$0xf]
        %v565 = vld [vmem:[%s438 + $0x2c] sm:$0xf]
        %v566 = vld [vmem:[%s438 + $0x30] sm:$0xf]
        %v567 = vld [vmem:[%s438 + $0x34] sm:$0xf]
        %v568 = vld [vmem:[%s438 + $0x38] sm:$0xf]
        %v569 = vld [vmem:[%s438 + $0x3c] sm:$0xf]
        %v602 = vunpack.c.l.b16 %v522
        %v603 = vunpack.c.l.b16 %v523
        %v604 = vunpack.c.l.b16 %v524
        %v605 = vunpack.c.l.b16 %v525
        %v606 = vunpack.c.l.b16 %v526
        %v607 = vunpack.c.l.b16 %v527
        %v608 = vunpack.c.l.b16 %v528
        %v609 = vunpack.c.l.b16 %v529
        %v610 = vunpack.c.l.b16 %v530
        %v611 = vunpack.c.l.b16 %v531
        %v612 = vunpack.c.l.b16 %v532
        %v613 = vunpack.c.l.b16 %v533
        %v614 = vunpack.c.l.b16 %v534
        %v615 = vunpack.c.l.b16 %v535
        %v616 = vunpack.c.l.b16 %v536
        %v617 = vunpack.c.l.b16 %v537
        %v618 = vunpack.c.l.b16 %v538
        %v619 = vunpack.c.l.b16 %v539
        %v620 = vunpack.c.l.b16 %v540
        %v621 = vunpack.c.l.b16 %v541
        %v622 = vunpack.c.l.b16 %v542
        %v623 = vunpack.c.l.b16 %v543
        %v624 = vunpack.c.l.b16 %v544
        %v625 = vunpack.c.l.b16 %v545
        %v626 = vunpack.c.l.b16 %v546
        %v627 = vunpack.c.l.b16 %v547
        %v628 = vunpack.c.l.b16 %v548
        %v629 = vunpack.c.l.b16 %v549
        %v630 = vunpack.c.l.b16 %v550
        %v631 = vunpack.c.l.b16 %v551
        %v632 = vunpack.c.l.b16 %v552
        %v633 = vunpack.c.l.b16 %v553
        %v634 = vpack.c.b16 %v603, %v602
        %v635 = vpack.c.b16 %v605, %v604
        %v636 = vpack.c.b16 %v607, %v606
        %v637 = vpack.c.b16 %v609, %v608
        %v638 = vpack.c.b16 %v611, %v610
        %v639 = vpack.c.b16 %v613, %v612
        %v640 = vpack.c.b16 %v615, %v614
        %v641 = vpack.c.b16 %v617, %v616
        %v642 = vpack.c.b16 %v619, %v618
        %v643 = vpack.c.b16 %v621, %v620
        %v644 = vpack.c.b16 %v623, %v622
        %v645 = vpack.c.b16 %v625, %v624
        %v646 = vpack.c.b16 %v627, %v626
        %v647 = vpack.c.b16 %v629, %v628
        %v648 = vpack.c.b16 %v631, %v630
        %v649 = vpack.c.b16 %v633, %v632
        %v682 = vunpack.c.l.b16 %v554
        %v683 = vunpack.c.l.b16 %v555
        %v684 = vunpack.c.l.b16 %v556
        %v685 = vunpack.c.l.b16 %v557
        %v686 = vunpack.c.l.b16 %v558
        %v687 = vunpack.c.l.b16 %v559
        %v688 = vunpack.c.l.b16 %v560
        %v689 = vunpack.c.l.b16 %v561
        %v690 = vunpack.c.l.b16 %v562
        %v691 = vunpack.c.l.b16 %v563
        %v692 = vunpack.c.l.b16 %v564
        %v693 = vunpack.c.l.b16 %v565
        %v694 = vunpack.c.l.b16 %v566
        %v695 = vunpack.c.l.b16 %v567
        %v696 = vunpack.c.l.b16 %v568
        %v697 = vunpack.c.l.b16 %v569
        %v698 = vpack.c.b16 %v683, %v682
        %v699 = vpack.c.b16 %v685, %v684
        %v700 = vpack.c.b16 %v687, %v686
        %v701 = vpack.c.b16 %v689, %v688
        %v702 = vpack.c.b16 %v691, %v690
        %v703 = vpack.c.b16 %v693, %v692
        %v704 = vpack.c.b16 %v695, %v694
        %v705 = vpack.c.b16 %v697, %v696
        %714 = vmatpush.bf16.msra.mxu0 %v705
        %715 = vmatpush.bf16.msra.mxu0 %v704
        %716 = vmatpush.bf16.msra.mxu0 %v703
        %717 = vmatpush.bf16.msra.mxu0 %v702
        %718 = vmatpush.bf16.msra.mxu0 %v701
        %719 = vmatpush.bf16.msra.mxu0 %v700
        %720 = vmatpush.bf16.msra.mxu0 %v699
        %721 = vmatpush.bf16.msra.mxu0 %v698
        %722 = vmatmul.bf16.gmra.mxu0 %v634
        %v723 = vpop.f32.mrf.mxu0
        %v724 = vadd.f32 0.0, %v723
        %v725 = vpop.f32.mrf.mxu0
        %v726 = vadd.f32 0.0, %v725
        %727 = vmatmul.bf16.gmra.mxu0 %v635
        %v728 = vpop.f32.mrf.mxu0
        %v729 = vadd.f32 0.0, %v728
        %v730 = vpop.f32.mrf.mxu0
        %v731 = vadd.f32 0.0, %v730
        %732 = vmatmul.bf16.gmra.mxu0 %v636
        %v733 = vpop.f32.mrf.mxu0
        %v734 = vadd.f32 0.0, %v733
        %v735 = vpop.f32.mrf.mxu0
        %v736 = vadd.f32 0.0, %v735
        %737 = vmatmul.bf16.gmra.mxu0 %v637
        %v738 = vpop.f32.mrf.mxu0
        %v739 = vadd.f32 0.0, %v738
        %v740 = vpop.f32.mrf.mxu0
        %v741 = vadd.f32 0.0, %v740
        %742 = vmatmul.bf16.gmra.mxu0 %v638
        %v743 = vpop.f32.mrf.mxu0
        %v744 = vadd.f32 0.0, %v743
        %v745 = vpop.f32.mrf.mxu0
        %v746 = vadd.f32 0.0, %v745
        %747 = vmatmul.bf16.gmra.mxu0 %v639
        %v748 = vpop.f32.mrf.mxu0
        %v749 = vadd.f32 0.0, %v748
        %v750 = vpop.f32.mrf.mxu0
        %v751 = vadd.f32 0.0, %v750
        %752 = vmatmul.bf16.gmra.mxu0 %v640
        %v753 = vpop.f32.mrf.mxu0
        %v754 = vadd.f32 0.0, %v753
        %v755 = vpop.f32.mrf.mxu0
        %v756 = vadd.f32 0.0, %v755
        %757 = vmatmul.bf16.gmra.mxu0 %v641
        %v758 = vpop.f32.mrf.mxu0
        %v759 = vadd.f32 0.0, %v758
        %v760 = vpop.f32.mrf.mxu0
        %v761 = vadd.f32 0.0, %v760
        %762 = vmatmul.bf16.gmra.mxu0 %v642
        %v763 = vpop.f32.mrf.mxu0
        %v764 = vadd.f32 0.0, %v763
        %v765 = vpop.f32.mrf.mxu0
        %v766 = vadd.f32 0.0, %v765
        %767 = vmatmul.bf16.gmra.mxu0 %v643
        %v768 = vpop.f32.mrf.mxu0
        %v769 = vadd.f32 0.0, %v768
        %v770 = vpop.f32.mrf.mxu0
        %v771 = vadd.f32 0.0, %v770
        %772 = vmatmul.bf16.gmra.mxu0 %v644
        %v773 = vpop.f32.mrf.mxu0
        %v774 = vadd.f32 0.0, %v773
        %v775 = vpop.f32.mrf.mxu0
        %v776 = vadd.f32 0.0, %v775
        %777 = vmatmul.bf16.gmra.mxu0 %v645
        %v778 = vpop.f32.mrf.mxu0
        %v779 = vadd.f32 0.0, %v778
        %v780 = vpop.f32.mrf.mxu0
        %v781 = vadd.f32 0.0, %v780
        %782 = vmatmul.bf16.gmra.mxu0 %v646
        %v783 = vpop.f32.mrf.mxu0
        %v784 = vadd.f32 0.0, %v783
        %v785 = vpop.f32.mrf.mxu0
        %v786 = vadd.f32 0.0, %v785
        %787 = vmatmul.bf16.gmra.mxu0 %v647
        %v788 = vpop.f32.mrf.mxu0
        %v789 = vadd.f32 0.0, %v788
        %v790 = vpop.f32.mrf.mxu0
        %v791 = vadd.f32 0.0, %v790
        %792 = vmatmul.bf16.gmra.mxu0 %v648
        %v793 = vpop.f32.mrf.mxu0
        %v794 = vadd.f32 0.0, %v793
        %v795 = vpop.f32.mrf.mxu0
        %v796 = vadd.f32 0.0, %v795
        %797 = vmatmul.bf16.gmra.mxu0 %v649
        %v798 = vpop.f32.mrf.mxu0
        %v799 = vadd.f32 0.0, %v798
        %v800 = vpop.f32.mrf.mxu0
        %v801 = vadd.f32 0.0, %v800
        %802 = vdwg.mxu0
        %v803 = vadd.f32 %v490, %v724
        %v804 = vadd.f32 %v491, %v726
        %v805 = vadd.f32 %v492, %v729
        %v806 = vadd.f32 %v493, %v731
        %v807 = vadd.f32 %v494, %v734
        %v808 = vadd.f32 %v495, %v736
        %v809 = vadd.f32 %v496, %v739
        %v810 = vadd.f32 %v497, %v741
        %v811 = vadd.f32 %v498, %v744
        %v812 = vadd.f32 %v499, %v746
        %v813 = vadd.f32 %v500, %v749
        %v814 = vadd.f32 %v501, %v751
        %v815 = vadd.f32 %v502, %v754
        %v816 = vadd.f32 %v503, %v756
        %v817 = vadd.f32 %v504, %v759
        %v818 = vadd.f32 %v505, %v761
        %v819 = vadd.f32 %v506, %v764
        %v820 = vadd.f32 %v507, %v766
        %v821 = vadd.f32 %v508, %v769
        %v822 = vadd.f32 %v509, %v771
        %v823 = vadd.f32 %v510, %v774
        %v824 = vadd.f32 %v511, %v776
        %v825 = vadd.f32 %v512, %v779
        %v826 = vadd.f32 %v513, %v781
        %v827 = vadd.f32 %v514, %v784
        %v828 = vadd.f32 %v515, %v786
        %v829 = vadd.f32 %v516, %v789
        %v830 = vadd.f32 %v517, %v791
        %v831 = vadd.f32 %v518, %v794
        %v832 = vadd.f32 %v519, %v796
        %v833 = vadd.f32 %v520, %v799
        %v834 = vadd.f32 %v521, %v801
        %835 = vst [vmem:[#allocation2] sm:$0xff] %v803
        %836 = vst [vmem:[#allocation2 + $0x8] sm:$0xff] %v804
        %837 = vst [vmem:[#allocation2 + $0x10] sm:$0xff] %v805
        %838 = vst [vmem:[#allocation2 + $0x18] sm:$0xff] %v806
        %839 = vst [vmem:[#allocation2 + $0x20] sm:$0xff] %v807
        %840 = vst [vmem:[#allocation2 + $0x28] sm:$0xff] %v808
        %841 = vst [vmem:[#allocation2 + $0x30] sm:$0xff] %v809
        %842 = vst [vmem:[#allocation2 + $0x38] sm:$0xff] %v810
        %843 = vst [vmem:[#allocation2 + $0x40] sm:$0xff] %v811
        %844 = vst [vmem:[#allocation2 + $0x48] sm:$0xff] %v812
        %845 = vst [vmem:[#allocation2 + $0x50] sm:$0xff] %v813
        %846 = vst [vmem:[#allocation2 + $0x58] sm:$0xff] %v814
        %847 = vst [vmem:[#allocation2 + $0x60] sm:$0xff] %v815
        %848 = vst [vmem:[#allocation2 + $0x68] sm:$0xff] %v816
        %849 = vst [vmem:[#allocation2 + $0x70] sm:$0xff] %v817
        %850 = vst [vmem:[#allocation2 + $0x78] sm:$0xff] %v818
        %851 = vst [vmem:[#allocation2 + $0x80] sm:$0xff] %v819
        %852 = vst [vmem:[#allocation2 + $0x88] sm:$0xff] %v820
        %853 = vst [vmem:[#allocation2 + $0x90] sm:$0xff] %v821
        %854 = vst [vmem:[#allocation2 + $0x98] sm:$0xff] %v822
        %855 = vst [vmem:[#allocation2 + $0xa0] sm:$0xff] %v823
        %856 = vst [vmem:[#allocation2 + $0xa8] sm:$0xff] %v824
        %857 = vst [vmem:[#allocation2 + $0xb0] sm:$0xff] %v825
        %858 = vst [vmem:[#allocation2 + $0xb8] sm:$0xff] %v826
        %859 = vst [vmem:[#allocation2 + $0xc0] sm:$0xff] %v827
        %860 = vst [vmem:[#allocation2 + $0xc8] sm:$0xff] %v828
        %861 = vst [vmem:[#allocation2 + $0xd0] sm:$0xff] %v829
        %862 = vst [vmem:[#allocation2 + $0xd8] sm:$0xff] %v830
        %863 = vst [vmem:[#allocation2 + $0xe0] sm:$0xff] %v831
        %864 = vst [vmem:[#allocation2 + $0xe8] sm:$0xff] %v832
        %865 = vst [vmem:[#allocation2 + $0xf0] sm:$0xff] %v833
        %866 = vst [vmem:[#allocation2 + $0xf8] sm:$0xff] %v834
        %p867 = scmp.eq.s32.totalorder %s22, 8
        // Predicated region
        $region78: #{up_forward.8} parent=68 // pred_check
          %p868 = pneg %p867
        $region79: #{up_forward.8} parent=68 // pred_check_branch
          %870 = sbr.rel (%p868) target = $region81
        $region80: #{up_forward.8} parent=68 // pred_region
          %v871 = vld [vmem:[#allocation2] sm:$0xff]
          %v872 = vld [vmem:[#allocation2 + $0x8] sm:$0xff]
          %v873 = vld [vmem:[#allocation2 + $0x10] sm:$0xff]
          %v874 = vld [vmem:[#allocation2 + $0x18] sm:$0xff]
          %v875 = vld [vmem:[#allocation2 + $0x20] sm:$0xff]
          %v876 = vld [vmem:[#allocation2 + $0x28] sm:$0xff]
          %v877 = vld [vmem:[#allocation2 + $0x30] sm:$0xff]
          %v878 = vld [vmem:[#allocation2 + $0x38] sm:$0xff]
          %v879 = vld [vmem:[#allocation2 + $0x40] sm:$0xff]
          %v880 = vld [vmem:[#allocation2 + $0x48] sm:$0xff]
          %v881 = vld [vmem:[#allocation2 + $0x50] sm:$0xff]
          %v882 = vld [vmem:[#allocation2 + $0x58] sm:$0xff]
          %v883 = vld [vmem:[#allocation2 + $0x60] sm:$0xff]
          %v884 = vld [vmem:[#allocation2 + $0x68] sm:$0xff]
          %v885 = vld [vmem:[#allocation2 + $0x70] sm:$0xff]
          %v886 = vld [vmem:[#allocation2 + $0x78] sm:$0xff]
          %v887 = vld [vmem:[#allocation2 + $0x80] sm:$0xff]
          %v888 = vld [vmem:[#allocation2 + $0x88] sm:$0xff]
          %v889 = vld [vmem:[#allocation2 + $0x90] sm:$0xff]
          %v890 = vld [vmem:[#allocation2 + $0x98] sm:$0xff]
          %v891 = vld [vmem:[#allocation2 + $0xa0] sm:$0xff]
          %v892 = vld [vmem:[#allocation2 + $0xa8] sm:$0xff]
          %v893 = vld [vmem:[#allocation2 + $0xb0] sm:$0xff]
          %v894 = vld [vmem:[#allocation2 + $0xb8] sm:$0xff]
          %v895 = vld [vmem:[#allocation2 + $0xc0] sm:$0xff]
          %v896 = vld [vmem:[#allocation2 + $0xc8] sm:$0xff]
          %v897 = vld [vmem:[#allocation2 + $0xd0] sm:$0xff]
          %v898 = vld [vmem:[#allocation2 + $0xd8] sm:$0xff]
          %v899 = vld [vmem:[#allocation2 + $0xe0] sm:$0xff]
          %v900 = vld [vmem:[#allocation2 + $0xe8] sm:$0xff]
          %v901 = vld [vmem:[#allocation2 + $0xf0] sm:$0xff]
          %v902 = vld [vmem:[#allocation2 + $0xf8] sm:$0xff]
          %v903 = vld [vmem:[%s2] sm:$0x1]
          %v905 = vperm.slane %v903, 0
          %v907 = vadd.f32 %v871, %v905
          %v908 = vadd.f32 %v872, %v905
          %v909 = vadd.f32 %v873, %v905
          %v910 = vadd.f32 %v874, %v905
          %v911 = vadd.f32 %v875, %v905
          %v912 = vadd.f32 %v876, %v905
          %v913 = vadd.f32 %v877, %v905
          %v914 = vadd.f32 %v878, %v905
          %v915 = vadd.f32 %v879, %v905
          %v916 = vadd.f32 %v880, %v905
          %v917 = vadd.f32 %v881, %v905
          %v918 = vadd.f32 %v882, %v905
          %v919 = vadd.f32 %v883, %v905
          %v920 = vadd.f32 %v884, %v905
          %v921 = vadd.f32 %v885, %v905
          %v922 = vadd.f32 %v886, %v905
          %v923 = vadd.f32 %v887, %v905
          %v924 = vadd.f32 %v888, %v905
          %v925 = vadd.f32 %v889, %v905
          %v926 = vadd.f32 %v890, %v905
          %v927 = vadd.f32 %v891, %v905
          %v928 = vadd.f32 %v892, %v905
          %v929 = vadd.f32 %v893, %v905
          %v930 = vadd.f32 %v894, %v905
          %v931 = vadd.f32 %v895, %v905
          %v932 = vadd.f32 %v896, %v905
          %v933 = vadd.f32 %v897, %v905
          %v934 = vadd.f32 %v898, %v905
          %v935 = vadd.f32 %v899, %v905
          %v936 = vadd.f32 %v900, %v905
          %v937 = vadd.f32 %v901, %v905
          %v938 = vadd.f32 %v902, %v905
          %v939 = vpack.c.bf16 %v907, %v907
          %v940 = vpack.c.bf16 %v908, %v908
          %v941 = vpack.c.bf16 %v909, %v909
          %v942 = vpack.c.bf16 %v910, %v910
          %v943 = vpack.c.bf16 %v911, %v911
          %v944 = vpack.c.bf16 %v912, %v912
          %v945 = vpack.c.bf16 %v913, %v913
          %v946 = vpack.c.bf16 %v914, %v914
          %v947 = vpack.c.bf16 %v915, %v915
          %v948 = vpack.c.bf16 %v916, %v916
          %v949 = vpack.c.bf16 %v917, %v917
          %v950 = vpack.c.bf16 %v918, %v918
          %v951 = vpack.c.bf16 %v919, %v919
          %v952 = vpack.c.bf16 %v920, %v920
          %v953 = vpack.c.bf16 %v921, %v921
          %v954 = vpack.c.bf16 %v922, %v922
          %v955 = vpack.c.bf16 %v923, %v923
          %v956 = vpack.c.bf16 %v924, %v924
          %v957 = vpack.c.bf16 %v925, %v925
          %v958 = vpack.c.bf16 %v926, %v926
          %v959 = vpack.c.bf16 %v927, %v927
          %v960 = vpack.c.bf16 %v928, %v928
          %v961 = vpack.c.bf16 %v929, %v929
          %v962 = vpack.c.bf16 %v930, %v930
          %v963 = vpack.c.bf16 %v931, %v931
          %v964 = vpack.c.bf16 %v932, %v932
          %v965 = vpack.c.bf16 %v933, %v933
          %v966 = vpack.c.bf16 %v934, %v934
          %v967 = vpack.c.bf16 %v935, %v935
          %v968 = vpack.c.bf16 %v936, %v936
          %v969 = vpack.c.bf16 %v937, %v937
          %v970 = vpack.c.bf16 %v938, %v938
          %971 = vst [vmem:[%s444] sm:$0xf] %v939
          %972 = vst [vmem:[%s444 + $0x4] sm:$0xf] %v940
          %973 = vst [vmem:[%s444 + $0x8] sm:$0xf] %v941
          %974 = vst [vmem:[%s444 + $0xc] sm:$0xf] %v942
          %975 = vst [vmem:[%s444 + $0x10] sm:$0xf] %v943
          %976 = vst [vmem:[%s444 + $0x14] sm:$0xf] %v944
          %977 = vst [vmem:[%s444 + $0x18] sm:$0xf] %v945
          %978 = vst [vmem:[%s444 + $0x1c] sm:$0xf] %v946
          %979 = vst [vmem:[%s444 + $0x20] sm:$0xf] %v947
          %980 = vst [vmem:[%s444 + $0x24] sm:$0xf] %v948
          %981 = vst [vmem:[%s444 + $0x28] sm:$0xf] %v949
          %982 = vst [vmem:[%s444 + $0x2c] sm:$0xf] %v950
          %983 = vst [vmem:[%s444 + $0x30] sm:$0xf] %v951
          %984 = vst [vmem:[%s444 + $0x34] sm:$0xf] %v952
          %985 = vst [vmem:[%s444 + $0x38] sm:$0xf] %v953
          %986 = vst [vmem:[%s444 + $0x3c] sm:$0xf] %v954
          %987 = vst [vmem:[%s444 + $0x40] sm:$0xf] %v955
          %988 = vst [vmem:[%s444 + $0x44] sm:$0xf] %v956
          %989 = vst [vmem:[%s444 + $0x48] sm:$0xf] %v957
          %990 = vst [vmem:[%s444 + $0x4c] sm:$0xf] %v958
          %991 = vst [vmem:[%s444 + $0x50] sm:$0xf] %v959
          %992 = vst [vmem:[%s444 + $0x54] sm:$0xf] %v960
          %993 = vst [vmem:[%s444 + $0x58] sm:$0xf] %v961
          %994 = vst [vmem:[%s444 + $0x5c] sm:$0xf] %v962
          %995 = vst [vmem:[%s444 + $0x60] sm:$0xf] %v963
          %996 = vst [vmem:[%s444 + $0x64] sm:$0xf] %v964
          %997 = vst [vmem:[%s444 + $0x68] sm:$0xf] %v965
          %998 = vst [vmem:[%s444 + $0x6c] sm:$0xf] %v966
          %999 = vst [vmem:[%s444 + $0x70] sm:$0xf] %v967
          %1000 = vst [vmem:[%s444 + $0x74] sm:$0xf] %v968
          %1001 = vst [vmem:[%s444 + $0x78] sm:$0xf] %v969
          %1002 = vst [vmem:[%s444 + $0x7c] sm:$0xf] %v970
          %v1003 = vadd.f32 %v907, %v908
          %v1004 = vadd.f32 %v1003, %v909
          %v1005 = vadd.f32 %v1004, %v910
          %v1006 = vadd.f32 %v1005, %v911
          %v1007 = vadd.f32 %v1006, %v912
          %v1008 = vadd.f32 %v1007, %v913
          %v1009 = vadd.f32 %v1008, %v914
          %v1010 = vadd.f32 %v1009, %v915
          %v1011 = vadd.f32 %v1010, %v916
          %v1012 = vadd.f32 %v1011, %v917
          %v1013 = vadd.f32 %v1012, %v918
          %v1014 = vadd.f32 %v1013, %v919
          %v1015 = vadd.f32 %v1014, %v920
          %v1016 = vadd.f32 %v1015, %v921
          %v1017 = vadd.f32 %v1016, %v922
          %v1018 = vadd.f32 %v1017, %v923
          %v1019 = vadd.f32 %v1018, %v924
          %v1020 = vadd.f32 %v1019, %v925
          %v1021 = vadd.f32 %v1020, %v926
          %v1022 = vadd.f32 %v1021, %v927
          %v1023 = vadd.f32 %v1022, %v928
          %v1024 = vadd.f32 %v1023, %v929
          %v1025 = vadd.f32 %v1024, %v930
          %v1026 = vadd.f32 %v1025, %v931
          %v1027 = vadd.f32 %v1026, %v932
          %v1028 = vadd.f32 %v1027, %v933
          %v1029 = vadd.f32 %v1028, %v934
          %v1030 = vadd.f32 %v1029, %v935
          %v1031 = vadd.f32 %v1030, %v936
          %v1032 = vadd.f32 %v1031, %v937
          %v1033 = vadd.f32 %v1032, %v938
          %v1034 = vrot.slane %v1033, 4
          %v1035 = vadd.f32 %v1033, %v1034
          %v1036 = vrot.slane %v1035, 2
          %v1037 = vadd.f32 %v1035, %v1036
          %v1038 = vrot.slane %v1037, 1
          %v1039 = vadd.f32 %v1037, %v1038
          %v1040 = vmul.f32 %v907, %v907
          %v1041 = vmul.f32 %v908, %v908
          %v1042 = vmul.f32 %v909, %v909
          %v1043 = vmul.f32 %v910, %v910
          %v1044 = vmul.f32 %v911, %v911
          %v1045 = vmul.f32 %v912, %v912
          %v1046 = vmul.f32 %v913, %v913
          %v1047 = vmul.f32 %v914, %v914
          %v1048 = vmul.f32 %v915, %v915
          %v1049 = vmul.f32 %v916, %v916
          %v1050 = vmul.f32 %v917, %v917
          %v1051 = vmul.f32 %v918, %v918
          %v1052 = vmul.f32 %v919, %v919
          %v1053 = vmul.f32 %v920, %v920
          %v1054 = vmul.f32 %v921, %v921
          %v1055 = vmul.f32 %v922, %v922
          %v1056 = vmul.f32 %v923, %v923
          %v1057 = vmul.f32 %v924, %v924
          %v1058 = vmul.f32 %v925, %v925
          %v1059 = vmul.f32 %v926, %v926
          %v1060 = vmul.f32 %v927, %v927
          %v1061 = vmul.f32 %v928, %v928
          %v1062 = vmul.f32 %v929, %v929
          %v1063 = vmul.f32 %v930, %v930
          %v1064 = vmul.f32 %v931, %v931
          %v1065 = vmul.f32 %v932, %v932
          %v1066 = vmul.f32 %v933, %v933
          %v1067 = vmul.f32 %v934, %v934
          %v1068 = vmul.f32 %v935, %v935
          %v1069 = vmul.f32 %v936, %v936
          %v1070 = vmul.f32 %v937, %v937
          %v1071 = vmul.f32 %v938, %v938
          %v1072 = vadd.f32 %v1040, %v1041
          %v1073 = vadd.f32 %v1072, %v1042
          %v1074 = vadd.f32 %v1073, %v1043
          %v1075 = vadd.f32 %v1074, %v1044
          %v1076 = vadd.f32 %v1075, %v1045
          %v1077 = vadd.f32 %v1076, %v1046
          %v1078 = vadd.f32 %v1077, %v1047
          %v1079 = vadd.f32 %v1078, %v1048
          %v1080 = vadd.f32 %v1079, %v1049
          %v1081 = vadd.f32 %v1080, %v1050
          %v1082 = vadd.f32 %v1081, %v1051
          %v1083 = vadd.f32 %v1082, %v1052
          %v1084 = vadd.f32 %v1083, %v1053
          %v1085 = vadd.f32 %v1084, %v1054
          %v1086 = vadd.f32 %v1085, %v1055
          %v1087 = vadd.f32 %v1086, %v1056
          %v1088 = vadd.f32 %v1087, %v1057
          %v1089 = vadd.f32 %v1088, %v1058
          %v1090 = vadd.f32 %v1089, %v1059
          %v1091 = vadd.f32 %v1090, %v1060
          %v1092 = vadd.f32 %v1091, %v1061
          %v1093 = vadd.f32 %v1092, %v1062
          %v1094 = vadd.f32 %v1093, %v1063
          %v1095 = vadd.f32 %v1094, %v1064
          %v1096 = vadd.f32 %v1095, %v1065
          %v1097 = vadd.f32 %v1096, %v1066
          %v1098 = vadd.f32 %v1097, %v1067
          %v1099 = vadd.f32 %v1098, %v1068
          %v1100 = vadd.f32 %v1099, %v1069
          %v1101 = vadd.f32 %v1100, %v1070
          %v1102 = vadd.f32 %v1101, %v1071
          %v1103 = vrot.slane %v1102, 4
          %v1104 = vadd.f32 %v1102, %v1103
          %v1105 = vrot.slane %v1104, 2
          %v1106 = vadd.f32 %v1104, %v1105
          %v1107 = vrot.slane %v1106, 1
          %v1108 = vadd.f32 %v1106, %v1107
          %1109 = vst [vmem:[%s449] sm:$0xff] %v1039
          %1110 = vst [vmem:[%s453] sm:$0xff] %v1108
        $region81: #{up_forward.8} parent=68 // pred_fallthru
          _
        %s1111 = smul.u32 32, %s21
        %p1112 = scmp.lt.s32.totalorder %s1111, 255
        %s1113 = scalar_select %p1112, %s1111, 255
        %s1114 = smul.addr %s1113, 4
        %s1115 = scalar_lea.vmem %s3, %s1114
        %p1116 = scmp.lt.s32.totalorder %s21, 7
        %s1117 = scalar_select %p1116, %s21, 7
        %s1118 = smul.addr %s1117, 8
        %s1119 = scalar_lea.vmem %s4, %s1118
        %p1120 = scmp.lt.s32.totalorder %s21, 7
        %s1121 = scalar_select %p1120, %s21, 7
        %s1122 = smul.addr %s1121, 8
        %s1123 = scalar_lea.vmem %s5, %s1122
        // Predicated region
        $region82: #{up_forward.8} parent=68 // pred_check
          %p1124 = pneg %p122
        $region83: #{up_forward.8} parent=68 // pred_check_branch
          %1126 = sbr.rel (%p1124) target = $region85
        $region84: #{up_forward.8} parent=68 // pred_region
          %s1127 = smul.u32 32, %s21
        $region85: #{up_forward.8} parent=68 // pred_fallthru
          _
        // Predicated region
        $region86: #{up_forward.8} parent=68 // pred_check
          %p1128 = pneg %p148
        $region87: #{up_forward.8} parent=68 // pred_check_branch
          %1130 = sbr.rel (%p1128) target = $region89
        $region88: #{up_forward.8} parent=68 // pred_region
          _
        $region89: #{up_forward.8} parent=68 // pred_fallthru
          _
        // Predicated region
        $region90: #{up_forward.8} parent=68 // pred_check
          %p1131 = pneg %p174
        $region91: #{up_forward.8} parent=68 // pred_check_branch
          %1133 = sbr.rel (%p1131) target = $region93
        $region92: #{up_forward.8} parent=68 // pred_region
          _
        $region93: #{up_forward.8} parent=68 // pred_fallthru
          _
      $region69: #{up_forward.8} parent=5 // pred_fallthru
        _
      %p1134 = scmp.le.s32.totalorder 2, %s12
      // Predicated region
      $region94: #{up_forward.8} parent=5 // pred_check
        %p1135 = pneg %p1134
      $region95: #{up_forward.8} parent=5 // pred_check_branch
        %1137 = sbr.rel (%p1135) target = $region97
      $region96: #{up_forward.8} parent=5 // pred_region
        %s1138 = ssub.s32 %s12, 2
        // Predicated region
        $region98: #{up_forward.8} parent=96 // pred_check
          %p1139 = pneg %p128
        $region99: #{up_forward.8} parent=96 // pred_check_branch
          %1141 = sbr.rel (%p1139) target = $region101
        $region100: #{up_forward.8} parent=96 // pred_region
          %s1142 = smul.u32 32, %s23
          %p1143 = scmp.lt.s32.totalorder %s1142, 255
          %s1144 = scalar_select %p1143, %s1142, 255
          %s1145 = smul.addr %s1144, 4
          %s1146 = scalar_lea.vmem %s3, %s1145
        $region101: #{up_forward.8} parent=96 // pred_fallthru
          _
        // Predicated region
        $region102: #{up_forward.8} parent=96 // pred_check
          %p1147 = pneg %p154
        $region103: #{up_forward.8} parent=96 // pred_check_branch
          %1149 = sbr.rel (%p1147) target = $region105
        $region104: #{up_forward.8} parent=96 // pred_region
          %p1150 = scmp.lt.s32.totalorder %s23, 7
          %s1151 = scalar_select %p1150, %s23, 7
          %s1152 = smul.addr %s1151, 8
          %s1153 = scalar_lea.vmem %s4, %s1152
        $region105: #{up_forward.8} parent=96 // pred_fallthru
          _
        // Predicated region
        $region106: #{up_forward.8} parent=96 // pred_check
          %p1154 = pneg %p180
        $region107: #{up_forward.8} parent=96 // pred_check_branch
          %1156 = sbr.rel (%p1154) target = $region109
        $region108: #{up_forward.8} parent=96 // pred_region
          %p1157 = scmp.lt.s32.totalorder %s23, 7
          %s1158 = scalar_select %p1157, %s23, 7
          %s1159 = smul.addr %s1158, 8
          %s1160 = scalar_lea.vmem %s5, %s1159
        $region109: #{up_forward.8} parent=96 // pred_fallthru
          _
      $region97: #{up_forward.8} parent=5 // pred_fallthru
        _
    $region6: #{up_forward.8} parent=1 // loop_footer
      %s16 = sadd.s32 1, %s12
    $region7: #{up_forward.8} parent=1 // loop_footer_branch
      %11 = sbr.rel target = $region3
    $region8: #{up_forward.8} parent=1 // loop_exit
      _

</llo_original>
